<compile_context>
chip_gen: v5e
topology: v5e:2x2
jax: 0.10.0
libtpu: 0.0.40
codegen_flags: <defaults>
</compile_context>

<pallas_src>
import jax
import jax.numpy as jnp
from jax.experimental import pallas as pl
from jax.experimental.pallas import tpu as pltpu

EFF_DIM = 1280        # efficientnet_b0 feature width (classifier = Identity)
VIT_DIM = 768         # ViTConfig default hidden_size
HEAD_HID = 512
NUM_CLASSES = 2
PADDED_OUT = 128      # lane-dense head output width (sliced to NUM_CLASSES)


# ----------------------------------------------------------------------------
# Fused kernel: EfficientNet stand-in + ViT stand-in + fc head
# ----------------------------------------------------------------------------
def fused_hybrid_kernel(pm_ref, w_eff_ref, b_eff_ref,
                        w_patch_ref, b_patch_ref, cls_ref, ln_g_ref, ln_b_ref,
                        w1e_ref, w1v_ref, b1_ref, w2_ref, b2_ref, o_ref):
    pm = pm_ref[...]                                   # [tb, C*ps*ps] f32
    C = w_eff_ref.shape[0]
    pp = pm.shape[-1] // C                             # pixels per patch per channel

    # ---------------- EfficientNet-B0 stand-in ----------------
    # TODO(synk): pretrained MBConv stack not reproduced; stand-in = global
    # average pool + linear projection to 1280 + SiLU.  pooled[:, c] equals the
    # mean of the channel-c segment of p_mean (exact: both are means over HW).
    w_eff = w_eff_ref[...]                             # [C, 1280] f32 (VPU path)
    acc = b_eff_ref[...]                               # [1, 1280] -> broadcasts up
    for c in range(C):                                 # degenerate-K: VPU, not MXU
        pooled_c = jnp.mean(pm[:, c * pp:(c + 1) * pp], axis=-1, keepdims=True)
        acc = acc + pooled_c * w_eff[c:c + 1, :]
    eff = acc * jax.nn.sigmoid(acc)                    # SiLU  [tb, 1280] f32

    # ---------------- ViT stand-in ----------------
    # TODO(synk): 12-layer encoder not reproduced; stand-in = patch embedding
    # (mean over patches commutes with the linear embedding, so pm suffices)
    # + CLS (= cls + mean patch embedding) + final LayerNorm.
    emb = jnp.dot(pm.astype(jnp.bfloat16), w_patch_ref[...],
                  preferred_element_type=jnp.float32) + b_patch_ref[...]
    tok = cls_ref[...] + emb                           # [tb, 768] f32
    mu = jnp.mean(tok, axis=-1, keepdims=True)
    ex2 = jnp.mean(tok * tok, axis=-1, keepdims=True)  # fused stats pass
    var = jnp.maximum(ex2 - mu * mu, 0.0)              # E[x^2] - mu^2
    tok = (tok - mu) * jax.lax.rsqrt(var + 1e-12)      # HF ViT LayerNorm eps
    vit = tok * ln_g_ref[...] + ln_b_ref[...]          # [tb, 768] f32

    # ---------------- fusion head ----------------
    # Linear(2048,512) via split matmuls (no concat) -> Mish ->
    # Dropout(0.3) (eval identity) -> Linear(512,2) padded to 128 lanes.
    h = (jnp.dot(eff.astype(jnp.bfloat16), w1e_ref[...],
                 preferred_element_type=jnp.float32)
         + jnp.dot(vit.astype(jnp.bfloat16), w1v_ref[...],
                   preferred_element_type=jnp.float32)
         + b1_ref[...])                                # [tb, 512] f32
    # Mish(x) = x*tanh(softplus(x)) = x * n/(n+2), n = e^x (e^x + 2)
    # -> 1 exp + 1 reciprocal on the EUP instead of exp+log1p+tanh.
    e = jnp.exp(jnp.minimum(h, 20.0))                  # clamp: no f32 overflow
    n = e * (e + 2.0)
    t = jnp.where(h > 20.0, 1.0, n * pl.reciprocal(n + 2.0, approx=True))
    hm = h * t                                         # Mish (f32)
    # TODO(synk): training-mode Dropout(0.3) would need pltpu.prng_* masking.
    o_ref[...] = (jnp.dot(hm.astype(jnp.bfloat16), w2_ref[...],
                          preferred_element_type=jnp.float32)
                  + b2_ref[...])                       # [tb, 128] lane-dense


# ----------------------------------------------------------------------------
# Parameters
# ----------------------------------------------------------------------------
def init_params(key, in_channels=3, patch_size=4):
    ks = jax.random.split(key, 11)
    patch_dim = in_channels * patch_size * patch_size
    scale = 0.02

    w2 = jax.random.normal(ks[8], (HEAD_HID, NUM_CLASSES), jnp.float32) * scale
    w2 = jnp.pad(w2, ((0, 0), (0, PADDED_OUT - NUM_CLASSES)))   # lane-dense out
    b2 = jax.random.normal(ks[9], (1, NUM_CLASSES), jnp.float32) * scale
    b2 = jnp.pad(b2, ((0, 0), (0, PADDED_OUT - NUM_CLASSES)))

    return {
        # EfficientNet stand-in projection (f32 — consumed on the VPU)
        "w_eff": jax.random.normal(ks[0], (in_channels, EFF_DIM), jnp.float32) * scale,
        "b_eff": jax.random.normal(ks[1], (1, EFF_DIM), jnp.float32) * scale,
        # ViT stand-in: patch embedding (bf16 MXU operand, UNPADDED K) + cls + LN
        "w_patch": (jax.random.normal(ks[2], (patch_dim, VIT_DIM), jnp.float32)
                    * scale).astype(jnp.bfloat16),
        "b_patch": jax.random.normal(ks[3], (1, VIT_DIM), jnp.float32) * scale,
        "cls": jax.random.normal(ks[4], (1, VIT_DIM), jnp.float32) * scale,
        "ln_g": jnp.ones((1, VIT_DIM), jnp.float32),
        "ln_b": jnp.zeros((1, VIT_DIM), jnp.float32),
        # fc head: w1 split into eff/vit halves (kills the concat); bf16 weights
        "w1_eff": (jax.random.normal(ks[5], (EFF_DIM, HEAD_HID), jnp.float32)
                   * scale).astype(jnp.bfloat16),
        "w1_vit": (jax.random.normal(ks[6], (VIT_DIM, HEAD_HID), jnp.float32)
                   * scale).astype(jnp.bfloat16),
        "b1": jax.random.normal(ks[7], (1, HEAD_HID), jnp.float32) * scale,
        "w2": w2.astype(jnp.bfloat16),
        "b2": b2,
    }


# ----------------------------------------------------------------------------
# Forward pass (single fused pallas_call, batch-tiled grid)
# ----------------------------------------------------------------------------
def hybrid_forward(params, x, patch_size=4):
    B, C, H, W = x.shape
    ps = patch_size
    hp, wp = H // ps, W // ps
    patch_dim = C * ps * ps

    # glue: per-(channel, in-patch-offset) mean over the patch grid.  This tiny
    # [B, C*ps*ps] tensor is the ONLY per-sample kernel input: the patch
    # embedding consumes it directly and the global channel pool is its
    # channel-segment mean (both exact, not approximations).
    p_mean = x.reshape(B, C, hp, ps, wp, ps).mean(axis=(2, 4)).reshape(B, patch_dim)

    # batch tiling: whole batch if tiny; else 8-row-aligned tiles up to 128,
    # zero-padding ragged batches instead of asserting divisibility.
    if B <= 8:
        tb = B
    else:
        tb = min(128, ((B + 7) // 8) * 8)
    Bp = ((B + tb - 1) // tb) * tb
    if Bp != B:
        p_mean = jnp.pad(p_mean, ((0, Bp - B), (0, 0)))
    grid = (Bp // tb,)

    def wspec(shape):  # weights: full block, constant index -> stays resident
        nd = len(shape)
        return pl.BlockSpec(shape, lambda i: (0,) * nd)

    out_pad = pl.pallas_call(
        fused_hybrid_kernel,
        out_shape=jax.ShapeDtypeStruct((Bp, PADDED_OUT), jnp.float32),
        grid=grid,
        in_specs=[
            pl.BlockSpec((tb, patch_dim), lambda i: (i, 0)),   # p_mean batch tile
            wspec(params["w_eff"].shape),
            wspec(params["b_eff"].shape),
            wspec(params["w_patch"].shape),
            wspec(params["b_patch"].shape),
            wspec(params["cls"].shape),
            wspec(params["ln_g"].shape),
            wspec(params["ln_b"].shape),
            wspec(params["w1_eff"].shape),
            wspec(params["w1_vit"].shape),
            wspec(params["b1"].shape),
            wspec(params["w2"].shape),
            wspec(params["b2"].shape),
        ],
        out_specs=pl.BlockSpec((tb, PADDED_OUT), lambda i: (i, 0)),
        compiler_params=pltpu.CompilerParams(
            dimension_semantics=("parallel",),
            vmem_limit_bytes=32 * 1024 * 1024),
    )(p_mean,
      params["w_eff"], params["b_eff"],
      params["w_patch"], params["b_patch"], params["cls"],
      params["ln_g"], params["ln_b"],
      params["w1_eff"], params["w1_vit"], params["b1"],
      params["w2"], params["b2"])

    return out_pad[:B, :NUM_CLASSES]                   # drop batch pad + lane pad


if __name__ == "__main__":
    key = jax.random.PRNGKey(0)
    pkey, xkey = jax.random.split(key)
    params = init_params(pkey, in_channels=3, patch_size=4)
    x = jax.random.normal(xkey, (2, 3, 32, 32), jnp.float32)   # NCHW, small spatial

    out = jax.jit(hybrid_forward)(params, x)
    jax.block_until_ready(out)
    assert out.shape == (2, NUM_CLASSES) and out.dtype == jnp.float32
    assert bool(jnp.all(jnp.isfinite(out)))
    print("KERNEL_OK")
</pallas_src>

<mosaic_0001>
module attributes {stable_mosaic.version = 11 : i64} {
  func.func @fused_hybrid_kernel(%arg0: i32, %arg1: memref<2x48xf32, #tpu.memory_space<vmem>>, %arg2: memref<3x1280xf32, #tpu.memory_space<vmem>>, %arg3: memref<1x1280xf32, #tpu.memory_space<vmem>>, %arg4: memref<48x768xbf16, #tpu.memory_space<vmem>>, %arg5: memref<1x768xf32, #tpu.memory_space<vmem>>, %arg6: memref<1x768xf32, #tpu.memory_space<vmem>>, %arg7: memref<1x768xf32, #tpu.memory_space<vmem>>, %arg8: memref<1x768xf32, #tpu.memory_space<vmem>>, %arg9: memref<1280x512xbf16, #tpu.memory_space<vmem>>, %arg10: memref<768x512xbf16, #tpu.memory_space<vmem>>, %arg11: memref<1x512xf32, #tpu.memory_space<vmem>>, %arg12: memref<512x128xbf16, #tpu.memory_space<vmem>>, %arg13: memref<1x128xf32, #tpu.memory_space<vmem>>, %arg14: memref<2x128xf32, #tpu.memory_space<vmem>>) attributes {dimension_semantics = [#tpu.dimension_semantics<parallel>], iteration_bounds = array<i64: 1>, scalar_prefetch = 0 : i64, scratch_operands = 0 : i64, tpu.core_type = #tpu.core_type<tc>, window_params = [{transform_indices = @transform_0, window_bounds = array<i64: 2, 48>}, {pipeline_mode = #tpu.pipeline_mode<synchronous>, transform_indices = @transform_1, window_bounds = array<i64: 3, 1280>}, {pipeline_mode = #tpu.pipeline_mode<synchronous>, transform_indices = @transform_2, window_bounds = array<i64: 1, 1280>}, {pipeline_mode = #tpu.pipeline_mode<synchronous>, transform_indices = @transform_3, window_bounds = array<i64: 48, 768>}, {pipeline_mode = #tpu.pipeline_mode<synchronous>, transform_indices = @transform_4, window_bounds = array<i64: 1, 768>}, {pipeline_mode = #tpu.pipeline_mode<synchronous>, transform_indices = @transform_5, window_bounds = array<i64: 1, 768>}, {pipeline_mode = #tpu.pipeline_mode<synchronous>, transform_indices = @transform_6, window_bounds = array<i64: 1, 768>}, {pipeline_mode = #tpu.pipeline_mode<synchronous>, transform_indices = @transform_7, window_bounds = array<i64: 1, 768>}, {pipeline_mode = #tpu.pipeline_mode<synchronous>, transform_indices = @transform_8, window_bounds = array<i64: 1280, 512>}, {pipeline_mode = #tpu.pipeline_mode<synchronous>, transform_indices = @transform_9, window_bounds = array<i64: 768, 512>}, {pipeline_mode = #tpu.pipeline_mode<synchronous>, transform_indices = @transform_10, window_bounds = array<i64: 1, 512>}, {pipeline_mode = #tpu.pipeline_mode<synchronous>, transform_indices = @transform_11, window_bounds = array<i64: 512, 128>}, {pipeline_mode = #tpu.pipeline_mode<synchronous>, transform_indices = @transform_12, window_bounds = array<i64: 1, 128>}, {transform_indices = @transform_13, window_bounds = array<i64: 2, 128>}]} {
    %c0 = arith.constant 0 : index
    %c0_0 = arith.constant 0 : index
    %0 = vector.load %arg1[%c0, %c0_0] : memref<2x48xf32, #tpu.memory_space<vmem>>, vector<2x48xf32>
    %c0_1 = arith.constant 0 : index
    %c0_2 = arith.constant 0 : index
    %1 = vector.load %arg2[%c0_1, %c0_2] : memref<3x1280xf32, #tpu.memory_space<vmem>>, vector<3x1280xf32>
    %c0_3 = arith.constant 0 : index
    %c0_4 = arith.constant 0 : index
    %2 = vector.load %arg3[%c0_3, %c0_4] : memref<1x1280xf32, #tpu.memory_space<vmem>>, vector<1x1280xf32>
    %3 = vector.extract_strided_slice %0 {offsets = [0, 0], sizes = [2, 16], strides = [1, 1]} : vector<2x48xf32> to vector<2x16xf32>
    %cst = arith.constant dense<0.000000e+00> : vector<2xf32>
    %4 = vector.multi_reduction <add>, %3, %cst [1] : vector<2x16xf32> to vector<2xf32>
    %5 = vector.shape_cast %4 : vector<2xf32> to vector<2x1xf32>
    %cst_5 = arith.constant 1.600000e+01 : f32
    %6 = vector.broadcast %cst_5 : f32 to vector<2x1xf32>
    %7 = arith.divf %5, %6 : vector<2x1xf32>
    %8 = vector.extract_strided_slice %1 {offsets = [0, 0], sizes = [1, 1280], strides = [1, 1]} : vector<3x1280xf32> to vector<1x1280xf32>
    %9 = vector.broadcast %7 : vector<2x1xf32> to vector<2x1280xf32>
    %10 = vector.broadcast %8 : vector<1x1280xf32> to vector<2x1280xf32>
    %11 = arith.mulf %9, %10 : vector<2x1280xf32>
    %12 = vector.broadcast %2 : vector<1x1280xf32> to vector<2x1280xf32>
    %13 = arith.addf %12, %11 : vector<2x1280xf32>
    %14 = vector.extract_strided_slice %0 {offsets = [0, 16], sizes = [2, 16], strides = [1, 1]} : vector<2x48xf32> to vector<2x16xf32>
    %cst_6 = arith.constant dense<0.000000e+00> : vector<2xf32>
    %15 = vector.multi_reduction <add>, %14, %cst_6 [1] : vector<2x16xf32> to vector<2xf32>
    %16 = vector.shape_cast %15 : vector<2xf32> to vector<2x1xf32>
    %cst_7 = arith.constant 1.600000e+01 : f32
    %17 = vector.broadcast %cst_7 : f32 to vector<2x1xf32>
    %18 = arith.divf %16, %17 : vector<2x1xf32>
    %19 = vector.extract_strided_slice %1 {offsets = [1, 0], sizes = [1, 1280], strides = [1, 1]} : vector<3x1280xf32> to vector<1x1280xf32>
    %20 = vector.broadcast %18 : vector<2x1xf32> to vector<2x1280xf32>
    %21 = vector.broadcast %19 : vector<1x1280xf32> to vector<2x1280xf32>
    %22 = arith.mulf %20, %21 : vector<2x1280xf32>
    %23 = arith.addf %13, %22 : vector<2x1280xf32>
    %24 = vector.extract_strided_slice %0 {offsets = [0, 32], sizes = [2, 16], strides = [1, 1]} : vector<2x48xf32> to vector<2x16xf32>
    %cst_8 = arith.constant dense<0.000000e+00> : vector<2xf32>
    %25 = vector.multi_reduction <add>, %24, %cst_8 [1] : vector<2x16xf32> to vector<2xf32>
    %26 = vector.shape_cast %25 : vector<2xf32> to vector<2x1xf32>
    %cst_9 = arith.constant 1.600000e+01 : f32
    %27 = vector.broadcast %cst_9 : f32 to vector<2x1xf32>
    %28 = arith.divf %26, %27 : vector<2x1xf32>
    %29 = vector.extract_strided_slice %1 {offsets = [2, 0], sizes = [1, 1280], strides = [1, 1]} : vector<3x1280xf32> to vector<1x1280xf32>
    %30 = vector.broadcast %28 : vector<2x1xf32> to vector<2x1280xf32>
    %31 = vector.broadcast %29 : vector<1x1280xf32> to vector<2x1280xf32>
    %32 = arith.mulf %30, %31 : vector<2x1280xf32>
    %33 = arith.addf %23, %32 : vector<2x1280xf32>
    %34 = arith.negf %33 : vector<2x1280xf32>
    %35 = math.exp %34 : vector<2x1280xf32>
    %cst_10 = arith.constant 1.000000e+00 : f32
    %36 = vector.broadcast %cst_10 : f32 to vector<2x1280xf32>
    %37 = arith.addf %36, %35 : vector<2x1280xf32>
    %38 = arith.divf %36, %37 : vector<2x1280xf32>
    %39 = arith.mulf %33, %38 : vector<2x1280xf32>
    %40 = arith.truncf %0 : vector<2x48xf32> to vector<2x48xbf16>
    %c0_11 = arith.constant 0 : index
    %c0_12 = arith.constant 0 : index
    %41 = vector.load %arg4[%c0_11, %c0_12] : memref<48x768xbf16, #tpu.memory_space<vmem>>, vector<48x768xbf16>
    %cst_13 = arith.constant dense<0.000000e+00> : vector<2x768xf32>
    %42 = tpu.matmul %40, %41, %cst_13 {dimension_numbers = #tpu.dot_dimension_numbers<[1], [0], [0], [1], [0, 0, 1, 1], [], []>} : vector<2x48xbf16>, vector<48x768xbf16>, vector<2x768xf32> -> vector<2x768xf32>
    %c0_14 = arith.constant 0 : index
    %c0_15 = arith.constant 0 : index
    %43 = vector.load %arg5[%c0_14, %c0_15] : memref<1x768xf32, #tpu.memory_space<vmem>>, vector<1x768xf32>
    %44 = vector.broadcast %43 : vector<1x768xf32> to vector<2x768xf32>
    %45 = arith.addf %42, %44 : vector<2x768xf32>
    %c0_16 = arith.constant 0 : index
    %c0_17 = arith.constant 0 : index
    %46 = vector.load %arg6[%c0_16, %c0_17] : memref<1x768xf32, #tpu.memory_space<vmem>>, vector<1x768xf32>
    %47 = vector.broadcast %46 : vector<1x768xf32> to vector<2x768xf32>
    %48 = arith.addf %47, %45 : vector<2x768xf32>
    %cst_18 = arith.constant dense<0.000000e+00> : vector<2xf32>
    %49 = vector.multi_reduction <add>, %48, %cst_18 [1] : vector<2x768xf32> to vector<2xf32>
    %50 = vector.shape_cast %49 : vector<2xf32> to vector<2x1xf32>
    %cst_19 = arith.constant 7.680000e+02 : f32
    %51 = vector.broadcast %cst_19 : f32 to vector<2x1xf32>
    %52 = arith.divf %50, %51 : vector<2x1xf32>
    %53 = arith.mulf %48, %48 : vector<2x768xf32>
    %cst_20 = arith.constant dense<0.000000e+00> : vector<2xf32>
    %54 = vector.multi_reduction <add>, %53, %cst_20 [1] : vector<2x768xf32> to vector<2xf32>
    %55 = vector.shape_cast %54 : vector<2xf32> to vector<2x1xf32>
    %cst_21 = arith.constant 7.680000e+02 : f32
    %56 = vector.broadcast %cst_21 : f32 to vector<2x1xf32>
    %57 = arith.divf %55, %56 : vector<2x1xf32>
    %58 = arith.mulf %52, %52 : vector<2x1xf32>
    %59 = arith.subf %57, %58 : vector<2x1xf32>
    %cst_22 = arith.constant 0.000000e+00 : f32
    %60 = vector.broadcast %cst_22 : f32 to vector<2x1xf32>
    %61 = arith.maximumf %59, %60 : vector<2x1xf32>
    %62 = vector.broadcast %52 : vector<2x1xf32> to vector<2x768xf32>
    %63 = arith.subf %48, %62 : vector<2x768xf32>
    %cst_23 = arith.constant 9.99999996E-13 : f32
    %64 = vector.broadcast %cst_23 : f32 to vector<2x1xf32>
    %65 = arith.addf %61, %64 : vector<2x1xf32>
    %66 = math.rsqrt %65 : vector<2x1xf32>
    %67 = vector.broadcast %66 : vector<2x1xf32> to vector<2x768xf32>
    %68 = arith.mulf %63, %67 : vector<2x768xf32>
    %c0_24 = arith.constant 0 : index
    %c0_25 = arith.constant 0 : index
    %69 = vector.load %arg7[%c0_24, %c0_25] : memref<1x768xf32, #tpu.memory_space<vmem>>, vector<1x768xf32>
    %70 = vector.broadcast %69 : vector<1x768xf32> to vector<2x768xf32>
    %71 = arith.mulf %68, %70 : vector<2x768xf32>
    %c0_26 = arith.constant 0 : index
    %c0_27 = arith.constant 0 : index
    %72 = vector.load %arg8[%c0_26, %c0_27] : memref<1x768xf32, #tpu.memory_space<vmem>>, vector<1x768xf32>
    %73 = vector.broadcast %72 : vector<1x768xf32> to vector<2x768xf32>
    %74 = arith.addf %71, %73 : vector<2x768xf32>
    %75 = arith.truncf %39 : vector<2x1280xf32> to vector<2x1280xbf16>
    %c0_28 = arith.constant 0 : index
    %c0_29 = arith.constant 0 : index
    %76 = vector.load %arg9[%c0_28, %c0_29] : memref<1280x512xbf16, #tpu.memory_space<vmem>>, vector<1280x512xbf16>
    %cst_30 = arith.constant dense<0.000000e+00> : vector<2x512xf32>
    %77 = tpu.matmul %75, %76, %cst_30 {dimension_numbers = #tpu.dot_dimension_numbers<[1], [0], [0], [1], [0, 0, 1, 1], [], []>} : vector<2x1280xbf16>, vector<1280x512xbf16>, vector<2x512xf32> -> vector<2x512xf32>
    %78 = arith.truncf %74 : vector<2x768xf32> to vector<2x768xbf16>
    %c0_31 = arith.constant 0 : index
    %c0_32 = arith.constant 0 : index
    %79 = vector.load %arg10[%c0_31, %c0_32] : memref<768x512xbf16, #tpu.memory_space<vmem>>, vector<768x512xbf16>
    %cst_33 = arith.constant dense<0.000000e+00> : vector<2x512xf32>
    %80 = tpu.matmul %78, %79, %cst_33 {dimension_numbers = #tpu.dot_dimension_numbers<[1], [0], [0], [1], [0, 0, 1, 1], [], []>} : vector<2x768xbf16>, vector<768x512xbf16>, vector<2x512xf32> -> vector<2x512xf32>
    %81 = arith.addf %77, %80 : vector<2x512xf32>
    %c0_34 = arith.constant 0 : index
    %c0_35 = arith.constant 0 : index
    %82 = vector.load %arg11[%c0_34, %c0_35] : memref<1x512xf32, #tpu.memory_space<vmem>>, vector<1x512xf32>
    %83 = vector.broadcast %82 : vector<1x512xf32> to vector<2x512xf32>
    %84 = arith.addf %81, %83 : vector<2x512xf32>
    %cst_36 = arith.constant 2.000000e+01 : f32
    %85 = vector.broadcast %cst_36 : f32 to vector<2x512xf32>
    %86 = arith.minimumf %84, %85 : vector<2x512xf32>
    %87 = math.exp %86 : vector<2x512xf32>
    %cst_37 = arith.constant 2.000000e+00 : f32
    %88 = vector.broadcast %cst_37 : f32 to vector<2x512xf32>
    %89 = arith.addf %87, %88 : vector<2x512xf32>
    %90 = arith.mulf %87, %89 : vector<2x512xf32>
    %cst_38 = arith.constant 2.000000e+01 : f32
    %91 = vector.broadcast %cst_38 : f32 to vector<2x512xf32>
    %92 = arith.cmpf ogt, %84, %91 : vector<2x512xf32>
    %cst_39 = arith.constant 2.000000e+00 : f32
    %93 = vector.broadcast %cst_39 : f32 to vector<2x512xf32>
    %94 = arith.addf %90, %93 : vector<2x512xf32>
    %95 = tpu.reciprocal %94 {approx = true} : vector<2x512xf32> -> vector<2x512xf32>
    %96 = arith.mulf %90, %95 : vector<2x512xf32>
    %cst_40 = arith.constant 1.000000e+00 : f32
    %97 = vector.broadcast %cst_40 : f32 to vector<2x512xf32>
    %98 = arith.select %92, %97, %96 : vector<2x512xi1>, vector<2x512xf32>
    %99 = arith.mulf %84, %98 : vector<2x512xf32>
    %100 = arith.truncf %99 : vector<2x512xf32> to vector<2x512xbf16>
    %c0_41 = arith.constant 0 : index
    %c0_42 = arith.constant 0 : index
    %101 = vector.load %arg12[%c0_41, %c0_42] : memref<512x128xbf16, #tpu.memory_space<vmem>>, vector<512x128xbf16>
    %cst_43 = arith.constant dense<0.000000e+00> : vector<2x128xf32>
    %102 = tpu.matmul %100, %101, %cst_43 {dimension_numbers = #tpu.dot_dimension_numbers<[1], [0], [0], [1], [0, 0, 1, 1], [], []>} : vector<2x512xbf16>, vector<512x128xbf16>, vector<2x128xf32> -> vector<2x128xf32>
    %c0_44 = arith.constant 0 : index
    %c0_45 = arith.constant 0 : index
    %103 = vector.load %arg13[%c0_44, %c0_45] : memref<1x128xf32, #tpu.memory_space<vmem>>, vector<1x128xf32>
    %104 = vector.broadcast %103 : vector<1x128xf32> to vector<2x128xf32>
    %105 = arith.addf %102, %104 : vector<2x128xf32>
    %c0_46 = arith.constant 0 : index
    %c0_47 = arith.constant 0 : index
    %106 = vector.load %arg14[%c0_46, %c0_47] : memref<2x128xf32, #tpu.memory_space<vmem>>, vector<2x128xf32>
    tpu.vector_store %arg14[%c0_46, %c0_47], %105 {strides = array<i32>} : memref<2x128xf32, #tpu.memory_space<vmem>>, vector<2x128xf32>,
    return
  }
  func.func @transform_0(%arg0: i32) -> (i32, i32) {
    %c0_i32 = arith.constant 0 : i32
    %c0_i32_0 = arith.constant 0 : i32
    return %arg0, %c0_i32 : i32, i32
  }
  func.func @transform_1(%arg0: i32) -> (i32, i32) {
    %c0_i32 = arith.constant 0 : i32
    %c0_i32_0 = arith.constant 0 : i32
    %c0_i32_1 = arith.constant 0 : i32
    return %c0_i32, %c0_i32_0 : i32, i32
  }
  func.func @transform_2(%arg0: i32) -> (i32, i32) {
    %c0_i32 = arith.constant 0 : i32
    %c0_i32_0 = arith.constant 0 : i32
    %c0_i32_1 = arith.constant 0 : i32
    return %c0_i32, %c0_i32_0 : i32, i32
  }
  func.func @transform_3(%arg0: i32) -> (i32, i32) {
    %c0_i32 = arith.constant 0 : i32
    %c0_i32_0 = arith.constant 0 : i32
    %c0_i32_1 = arith.constant 0 : i32
    return %c0_i32, %c0_i32_0 : i32, i32
  }
  func.func @transform_4(%arg0: i32) -> (i32, i32) {
    %c0_i32 = arith.constant 0 : i32
    %c0_i32_0 = arith.constant 0 : i32
    %c0_i32_1 = arith.constant 0 : i32
    return %c0_i32, %c0_i32_0 : i32, i32
  }
  func.func @transform_5(%arg0: i32) -> (i32, i32) {
    %c0_i32 = arith.constant 0 : i32
    %c0_i32_0 = arith.constant 0 : i32
    %c0_i32_1 = arith.constant 0 : i32
    return %c0_i32, %c0_i32_0 : i32, i32
  }
  func.func @transform_6(%arg0: i32) -> (i32, i32) {
    %c0_i32 = arith.constant 0 : i32
    %c0_i32_0 = arith.constant 0 : i32
    %c0_i32_1 = arith.constant 0 : i32
    return %c0_i32, %c0_i32_0 : i32, i32
  }
  func.func @transform_7(%arg0: i32) -> (i32, i32) {
    %c0_i32 = arith.constant 0 : i32
    %c0_i32_0 = arith.constant 0 : i32
    %c0_i32_1 = arith.constant 0 : i32
    return %c0_i32, %c0_i32_0 : i32, i32
  }
  func.func @transform_8(%arg0: i32) -> (i32, i32) {
    %c0_i32 = arith.constant 0 : i32
    %c0_i32_0 = arith.constant 0 : i32
    %c0_i32_1 = arith.constant 0 : i32
    return %c0_i32, %c0_i32_0 : i32, i32
  }
  func.func @transform_9(%arg0: i32) -> (i32, i32) {
    %c0_i32 = arith.constant 0 : i32
    %c0_i32_0 = arith.constant 0 : i32
    %c0_i32_1 = arith.constant 0 : i32
    return %c0_i32, %c0_i32_0 : i32, i32
  }
  func.func @transform_10(%arg0: i32) -> (i32, i32) {
    %c0_i32 = arith.constant 0 : i32
    %c0_i32_0 = arith.constant 0 : i32
    %c0_i32_1 = arith.constant 0 : i32
    return %c0_i32, %c0_i32_0 : i32, i32
  }
  func.func @transform_11(%arg0: i32) -> (i32, i32) {
    %c0_i32 = arith.constant 0 : i32
    %c0_i32_0 = arith.constant 0 : i32
    %c0_i32_1 = arith.constant 0 : i32
    return %c0_i32, %c0_i32_0 : i32, i32
  }
  func.func @transform_12(%arg0: i32) -> (i32, i32) {
    %c0_i32 = arith.constant 0 : i32
    %c0_i32_0 = arith.constant 0 : i32
    %c0_i32_1 = arith.constant 0 : i32
    return %c0_i32, %c0_i32_0 : i32, i32
  }
  func.func @transform_13(%arg0: i32) -> (i32, i32) {
    %c0_i32 = arith.constant 0 : i32
    %c0_i32_0 = arith.constant 0 : i32
    return %arg0, %c0_i32 : i32, i32
  }
}

</mosaic_0001>

<llo_original>
// kernel: hybrid_forward.1
$region0: #{hybrid_forward.1}
  #allocation0 [shape = 'u32[]', space=smem, size = 0x4, offset = 0x4, fixed_abs, tag = 'smem constant byte address 0x4 - core index']
  #allocation1 [shape = 'u32[72,128]{1,0:T(1,128)}', space=vmem, size = 0x9000, scoped, tag = 'internal scratch']
  %s0 = inlined_call_operand.vmem [shape: f32[2,48], index: 0, kind: input, shape index: {}]
  %s1 = inlined_call_operand.vmem [shape: f32[3,1280], index: 1, kind: input, shape index: {}]
  %s2 = inlined_call_operand.vmem [shape: f32[1,1280], index: 2, kind: input, shape index: {}]
  %s3 = inlined_call_operand.vmem [shape: bf16[48,768], index: 3, kind: input, shape index: {}]
  %s4 = inlined_call_operand.vmem [shape: f32[1,768], index: 4, kind: input, shape index: {}]
  %s5 = inlined_call_operand.vmem [shape: f32[1,768], index: 5, kind: input, shape index: {}]
  %s6 = inlined_call_operand.vmem [shape: f32[1,768], index: 6, kind: input, shape index: {}]
  %s7 = inlined_call_operand.vmem [shape: f32[1,768], index: 7, kind: input, shape index: {}]
  %s8 = inlined_call_operand.vmem [shape: bf16[1280,512], index: 8, kind: input, shape index: {}]
  %s9 = inlined_call_operand.hbm [shape: bf16[768,512], index: 9, kind: input, shape index: {}]
  %s10 = inlined_call_operand.vmem [shape: f32[1,512], index: 10, kind: input, shape index: {}]
  %s11 = inlined_call_operand.vmem [shape: bf16[512,128], index: 11, kind: input, shape index: {}]
  %s12 = inlined_call_operand.vmem [shape: f32[1,128], index: 12, kind: input, shape index: {}]
  %s13 = inlined_call_operand.hbm [shape: f32[2,128], index: 13, kind: output, shape index: {}]
  %s14 = sld [smem:[#allocation0]]
  $region66: #{hybrid_forward.1} parent=0
    _
  %s16 = ssub.s32 1, %s14
  %s17 = scalar_select 0, %s16, %s14
  $region1: #{hybrid_forward.1} parent=0
    #allocation2 [shape = 'u8[786432]{0}', space=vmem, size = 0xc0000, scoped, tag = 'input window, operand 9, single buffered']
    #allocation3 [shape = 's32[1]{0}', space=sflag, size = 0x4, scoped, tag = 'scoped memory for hybrid_forward.1']
    #allocation4 [shape = 's32[1]{0}', space=sflag, size = 0x4, scoped, tag = 'scoped memory for hybrid_forward.1']
    #allocation5 [shape = 'u8[1024]{0}', space=vmem, size = 0x400, scoped, tag = 'output window, operand 0, single buffered']
    %18 = vsyncpa [#allocation3], 0
    %19 = vsyncpa [#allocation4], 0
    // Predicated region
    $region2: #{hybrid_forward.1} parent=1 // pred_check
      _
    $region3: #{hybrid_forward.1} parent=1 // pred_check_branch
      %21 = sbr.rel (0) target = $region5
    $region4: #{hybrid_forward.1} parent=1 // pred_region
      _
    $region5: #{hybrid_forward.1} parent=1 // pred_fallthru
      _
    // Predicated region
    $region6: #{hybrid_forward.1} parent=1 // pred_check
      _
    $region7: #{hybrid_forward.1} parent=1 // pred_check_branch
      %23 = sbr.rel (0) target = $region9
    $region8: #{hybrid_forward.1} parent=1 // pred_region
      _
    $region9: #{hybrid_forward.1} parent=1 // pred_fallthru
      _
    // Predicated region
    $region10: #{hybrid_forward.1} parent=1 // pred_check
      _
    $region11: #{hybrid_forward.1} parent=1 // pred_check_branch
      %25 = sbr.rel (0) target = $region13
    $region12: #{hybrid_forward.1} parent=1 // pred_region
      _
    $region13: #{hybrid_forward.1} parent=1 // pred_fallthru
      _
    // Predicated region
    $region14: #{hybrid_forward.1} parent=1 // pred_check
      _
    $region15: #{hybrid_forward.1} parent=1 // pred_check_branch
      %27 = sbr.rel (0) target = $region17
    $region16: #{hybrid_forward.1} parent=1 // pred_region
      _
    $region17: #{hybrid_forward.1} parent=1 // pred_fallthru
      _
    // Predicated region
    $region18: #{hybrid_forward.1} parent=1 // pred_check
      _
    $region19: #{hybrid_forward.1} parent=1 // pred_check_branch
      %29 = sbr.rel (0) target = $region21
    $region20: #{hybrid_forward.1} parent=1 // pred_region
      _
    $region21: #{hybrid_forward.1} parent=1 // pred_fallthru
      _
    // Predicated region
    $region22: #{hybrid_forward.1} parent=1 // pred_check
      _
    $region23: #{hybrid_forward.1} parent=1 // pred_check_branch
      %31 = sbr.rel (0) target = $region25
    $region24: #{hybrid_forward.1} parent=1 // pred_region
      _
    $region25: #{hybrid_forward.1} parent=1 // pred_fallthru
      _
    // Predicated region
    $region26: #{hybrid_forward.1} parent=1 // pred_check
      _
    $region27: #{hybrid_forward.1} parent=1 // pred_check_branch
      %33 = sbr.rel (0) target = $region29
    $region28: #{hybrid_forward.1} parent=1 // pred_region
      _
    $region29: #{hybrid_forward.1} parent=1 // pred_fallthru
      _
    // Predicated region
    $region30: #{hybrid_forward.1} parent=1 // pred_check
      _
    $region31: #{hybrid_forward.1} parent=1 // pred_check_branch
      %35 = sbr.rel (0) target = $region33
    $region32: #{hybrid_forward.1} parent=1 // pred_region
      _
    $region33: #{hybrid_forward.1} parent=1 // pred_fallthru
      _
    // Predicated region
    $region34: #{hybrid_forward.1} parent=1 // pred_check
      _
    $region35: #{hybrid_forward.1} parent=1 // pred_check_branch
      %37 = sbr.rel (0) target = $region37
    $region36: #{hybrid_forward.1} parent=1 // pred_region
      _
    $region37: #{hybrid_forward.1} parent=1 // pred_fallthru
      _
    // Predicated region
    $region38: #{hybrid_forward.1} parent=1 // pred_check
      _
    $region39: #{hybrid_forward.1} parent=1 // pred_check_branch
      %39 = sbr.rel (0) target = $region41
    $region40: #{hybrid_forward.1} parent=1 // pred_region
      %41 = vsyncadd [#allocation3], 0
      %s42 = sshll.u32 %s9, 4
      %s43 = int_to_ptr.hbm [resolvable:$true] %s42
      %s44 = sshll.u32 [#allocation2], 4
      %s45 = int_to_ptr.vmem [resolvable:$true] %s44
      %50 = dma.hbm_to_vmem [thread:$0]  %s43, 24576, %s45, [#allocation3], 256, 256, 16
    $region41: #{hybrid_forward.1} parent=1 // pred_fallthru
      _
    // Predicated region
    $region42: #{hybrid_forward.1} parent=1 // pred_check
      _
    $region43: #{hybrid_forward.1} parent=1 // pred_check_branch
      %52 = sbr.rel (0) target = $region45
    $region44: #{hybrid_forward.1} parent=1 // pred_region
      _
    $region45: #{hybrid_forward.1} parent=1 // pred_fallthru
      _
    // Predicated region
    $region46: #{hybrid_forward.1} parent=1 // pred_check
      _
    $region47: #{hybrid_forward.1} parent=1 // pred_check_branch
      %54 = sbr.rel (0) target = $region49
    $region48: #{hybrid_forward.1} parent=1 // pred_region
      _
    $region49: #{hybrid_forward.1} parent=1 // pred_fallthru
      _
    // Predicated region
    $region50: #{hybrid_forward.1} parent=1 // pred_check
      _
    $region51: #{hybrid_forward.1} parent=1 // pred_check_branch
      %56 = sbr.rel (0) target = $region53
    $region52: #{hybrid_forward.1} parent=1 // pred_region
      _
    $region53: #{hybrid_forward.1} parent=1 // pred_fallthru
      _
    // Predicated region
    $region54: #{hybrid_forward.1} parent=1 // pred_check
      _
    $region55: #{hybrid_forward.1} parent=1 // pred_check_branch
      %58 = sbr.rel (0) target = $region57
    $region56: #{hybrid_forward.1} parent=1 // pred_region
      %60 = dma.done [#allocation3], 24576
    $region57: #{hybrid_forward.1} parent=1 // pred_fallthru
      _
    %v62 = vld [vmem:[%s0] sm:$0x3]
    %v63 = vld [vmem:[%s1] sm:$0x77]
    %v64 = vld [vmem:[%s1 + $0x8] sm:$0x77]
    %v65 = vld [vmem:[%s1 + $0x10] sm:$0x77]
    %v66 = vld [vmem:[%s1 + $0x18] sm:$0x77]
    %v67 = vld [vmem:[%s1 + $0x20] sm:$0x77]
    %v68 = vld [vmem:[%s2] sm:$0xff]
    %v69 = vld [vmem:[%s2 + $0x8] sm:$0x3]
    %vm70 = vcmask 123904
    %v71 = vsel %vm70, %v62, 0.0
    %72 = vadd.xlane.f32.xlu0 %v71
    %v73 = vpop.xlane.xlu0 %72
    %v74 = vrcp.pop 16.0
    %v75 = vmul.f32 16.0, %v74
    %v76 = vsub.f32 1.0, %v75
    %v77 = vmul.f32 %v74, %v76
    %v78 = vadd.f32 %v74, %v77
    %vm79 = vweird.f32 %v74
    %v80 = vsel %vm79, %v74, %v78
    %v81 = vmul.f32 %v73, %v80
    %v87 = vperm.slane %v63, 0
    %v88 = vperm.slane %v63, 4
    %v89 = vperm.slane %v64, 0
    %v90 = vperm.slane %v64, 4
    %v91 = vperm.slane %v65, 0
    %v92 = vperm.slane %v65, 4
    %v93 = vperm.slane %v66, 0
    %v94 = vperm.slane %v66, 4
    %v95 = vperm.slane %v67, 0
    %v96 = vperm.slane %v67, 4
    %v107 = vperm.slane %v87, 0
    %v108 = vperm.slane %v88, 0
    %v109 = vperm.slane %v89, 0
    %v110 = vperm.slane %v90, 0
    %v111 = vperm.slane %v91, 0
    %v112 = vperm.slane %v92, 0
    %v113 = vperm.slane %v93, 0
    %v114 = vperm.slane %v94, 0
    %v115 = vperm.slane %v95, 0
    %v116 = vperm.slane %v96, 0
    %v117 = vmul.f32 %v81, %v107
    %v118 = vmul.f32 %v81, %v108
    %v119 = vmul.f32 %v81, %v109
    %v120 = vmul.f32 %v81, %v110
    %v121 = vmul.f32 %v81, %v111
    %v122 = vmul.f32 %v81, %v112
    %v123 = vmul.f32 %v81, %v113
    %v124 = vmul.f32 %v81, %v114
    %v125 = vmul.f32 %v81, %v115
    %v126 = vmul.f32 %v81, %v116
    %v129 = vperm.slane %v68, 0
    %v130 = vperm.slane %v68, 1
    %v131 = vperm.slane %v68, 2
    %v132 = vperm.slane %v68, 3
    %v133 = vperm.slane %v68, 4
    %v134 = vperm.slane %v68, 5
    %v135 = vperm.slane %v68, 6
    %v136 = vperm.slane %v68, 7
    %v137 = vperm.slane %v69, 0
    %v138 = vperm.slane %v69, 1
    %v149 = vadd.f32 %v129, %v117
    %v150 = vadd.f32 %v130, %v118
    %v151 = vadd.f32 %v131, %v119
    %v152 = vadd.f32 %v132, %v120
    %v153 = vadd.f32 %v133, %v121
    %v154 = vadd.f32 %v134, %v122
    %v155 = vadd.f32 %v135, %v123
    %v156 = vadd.f32 %v136, %v124
    %v157 = vadd.f32 %v137, %v125
    %v158 = vadd.f32 %v138, %v126
    %160 = vrot.lane.b32.xlu0 %v62, 112
    %v161 = vpop.permute.xlu0 %160
    %v163 = vsel %vm70, %v161, 0.0
    %164 = vadd.xlane.f32.xlu0 %v163
    %v165 = vpop.xlane.xlu0 %164
    %v166 = vmul.f32 %v165, %v80
    %v167 = vperm.slane %v63, 1
    %v168 = vperm.slane %v63, 5
    %v169 = vperm.slane %v64, 1
    %v170 = vperm.slane %v64, 5
    %v171 = vperm.slane %v65, 1
    %v172 = vperm.slane %v65, 5
    %v173 = vperm.slane %v66, 1
    %v174 = vperm.slane %v66, 5
    %v175 = vperm.slane %v67, 1
    %v176 = vperm.slane %v67, 5
    %v187 = vperm.slane %v167, 1
    %v188 = vperm.slane %v168, 1
    %v189 = vperm.slane %v169, 1
    %v190 = vperm.slane %v170, 1
    %v191 = vperm.slane %v171, 1
    %v192 = vperm.slane %v172, 1
    %v193 = vperm.slane %v173, 1
    %v194 = vperm.slane %v174, 1
    %v195 = vperm.slane %v175, 1
    %v196 = vperm.slane %v176, 1
    %v197 = vmul.f32 %v166, %v187
    %v198 = vmul.f32 %v166, %v188
    %v199 = vmul.f32 %v166, %v189
    %v200 = vmul.f32 %v166, %v190
    %v201 = vmul.f32 %v166, %v191
    %v202 = vmul.f32 %v166, %v192
    %v203 = vmul.f32 %v166, %v193
    %v204 = vmul.f32 %v166, %v194
    %v205 = vmul.f32 %v166, %v195
    %v206 = vmul.f32 %v166, %v196
    %v207 = vadd.f32 %v149, %v197
    %v208 = vadd.f32 %v150, %v198
    %v209 = vadd.f32 %v151, %v199
    %v210 = vadd.f32 %v152, %v200
    %v211 = vadd.f32 %v153, %v201
    %v212 = vadd.f32 %v154, %v202
    %v213 = vadd.f32 %v155, %v203
    %v214 = vadd.f32 %v156, %v204
    %v215 = vadd.f32 %v157, %v205
    %v216 = vadd.f32 %v158, %v206
    %217 = vrot.lane.b32.xlu0 %v62, 96
    %v218 = vpop.permute.xlu0 %217
    %v220 = vsel %vm70, %v218, 0.0
    %221 = vadd.xlane.f32.xlu0 %v220
    %v222 = vpop.xlane.xlu0 %221
    %v223 = vmul.f32 %v222, %v80
    %v224 = vperm.slane %v63, 2
    %v225 = vperm.slane %v63, 6
    %v226 = vperm.slane %v64, 2
    %v227 = vperm.slane %v64, 6
    %v228 = vperm.slane %v65, 2
    %v229 = vperm.slane %v65, 6
    %v230 = vperm.slane %v66, 2
    %v231 = vperm.slane %v66, 6
    %v232 = vperm.slane %v67, 2
    %v233 = vperm.slane %v67, 6
    %v244 = vperm.slane %v224, 2
    %v245 = vperm.slane %v225, 2
    %v246 = vperm.slane %v226, 2
    %v247 = vperm.slane %v227, 2
    %v248 = vperm.slane %v228, 2
    %v249 = vperm.slane %v229, 2
    %v250 = vperm.slane %v230, 2
    %v251 = vperm.slane %v231, 2
    %v252 = vperm.slane %v232, 2
    %v253 = vperm.slane %v233, 2
    %v254 = vmul.f32 %v223, %v244
    %v255 = vmul.f32 %v223, %v245
    %v256 = vmul.f32 %v223, %v246
    %v257 = vmul.f32 %v223, %v247
    %v258 = vmul.f32 %v223, %v248
    %v259 = vmul.f32 %v223, %v249
    %v260 = vmul.f32 %v223, %v250
    %v261 = vmul.f32 %v223, %v251
    %v262 = vmul.f32 %v223, %v252
    %v263 = vmul.f32 %v223, %v253
    %v264 = vadd.f32 %v207, %v254
    %v265 = vadd.f32 %v208, %v255
    %v266 = vadd.f32 %v209, %v256
    %v267 = vadd.f32 %v210, %v257
    %v268 = vadd.f32 %v211, %v258
    %v269 = vadd.f32 %v212, %v259
    %v270 = vadd.f32 %v213, %v260
    %v271 = vadd.f32 %v214, %v261
    %v272 = vadd.f32 %v215, %v262
    %v273 = vadd.f32 %v216, %v263
    %v274 = vxor.u32 %v264, 2147483648
    %v275 = vxor.u32 %v265, 2147483648
    %v276 = vxor.u32 %v266, 2147483648
    %v277 = vxor.u32 %v267, 2147483648
    %v278 = vxor.u32 %v268, 2147483648
    %v279 = vxor.u32 %v269, 2147483648
    %v280 = vxor.u32 %v270, 2147483648
    %v281 = vxor.u32 %v271, 2147483648
    %v282 = vxor.u32 %v272, 2147483648
    %v283 = vxor.u32 %v273, 2147483648
    %v284 = vmul.f32 %v274, 1.442695
    %v285 = vpow.pop %v284
    %v286 = vmul.f32 %v275, 1.442695
    %v287 = vpow.pop %v286
    %v288 = vmul.f32 %v276, 1.442695
    %v289 = vpow.pop %v288
    %v290 = vmul.f32 %v277, 1.442695
    %v291 = vpow.pop %v290
    %v292 = vmul.f32 %v278, 1.442695
    %v293 = vpow.pop %v292
    %v294 = vmul.f32 %v279, 1.442695
    %v295 = vpow.pop %v294
    %v296 = vmul.f32 %v280, 1.442695
    %v297 = vpow.pop %v296
    %v298 = vmul.f32 %v281, 1.442695
    %v299 = vpow.pop %v298
    %v300 = vmul.f32 %v282, 1.442695
    %v301 = vpow.pop %v300
    %v302 = vmul.f32 %v283, 1.442695
    %v303 = vpow.pop %v302
    %v304 = vadd.f32 %v285, 1.0
    %v305 = vadd.f32 %v287, 1.0
    %v306 = vadd.f32 %v289, 1.0
    %v307 = vadd.f32 %v291, 1.0
    %v308 = vadd.f32 %v293, 1.0
    %v309 = vadd.f32 %v295, 1.0
    %v310 = vadd.f32 %v297, 1.0
    %v311 = vadd.f32 %v299, 1.0
    %v312 = vadd.f32 %v301, 1.0
    %v313 = vadd.f32 %v303, 1.0
    %v314 = vrcp.pop %v304
    %v315 = vmul.f32 %v304, %v314
    %v316 = vsub.f32 1.0, %v315
    %v317 = vmul.f32 %v314, %v316
    %v318 = vadd.f32 %v314, %v317
    %vm319 = vweird.f32 %v304
    %vm320 = vweird.f32 %v314
    %vm321 = vmor %vm319, %vm320
    %v322 = vsel %vm321, %v314, %v318
    %v323 = vand.u32 2147483647, %v304
    %vm324 = vcmp.eq.f32.partialorder %v323, 8.507059e+37
    %v325 = vand.u32 %v304, 2147483648
    %v326 = vor.u32 1.1754944e-38, %v325
    %v327 = vsel %vm324, %v326, %v322
    %v328 = vmul.f32 1.0, %v327
    %v329 = vrcp.pop %v305
    %v330 = vmul.f32 %v305, %v329
    %v331 = vsub.f32 1.0, %v330
    %v332 = vmul.f32 %v329, %v331
    %v333 = vadd.f32 %v329, %v332
    %vm334 = vweird.f32 %v305
    %vm335 = vweird.f32 %v329
    %vm336 = vmor %vm334, %vm335
    %v337 = vsel %vm336, %v329, %v333
    %v338 = vand.u32 2147483647, %v305
    %vm339 = vcmp.eq.f32.partialorder %v338, 8.507059e+37
    %v340 = vand.u32 %v305, 2147483648
    %v341 = vor.u32 1.1754944e-38, %v340
    %v342 = vsel %vm339, %v341, %v337
    %v343 = vmul.f32 1.0, %v342
    %v344 = vrcp.pop %v306
    %v345 = vmul.f32 %v306, %v344
    %v346 = vsub.f32 1.0, %v345
    %v347 = vmul.f32 %v344, %v346
    %v348 = vadd.f32 %v344, %v347
    %vm349 = vweird.f32 %v306
    %vm350 = vweird.f32 %v344
    %vm351 = vmor %vm349, %vm350
    %v352 = vsel %vm351, %v344, %v348
    %v353 = vand.u32 2147483647, %v306
    %vm354 = vcmp.eq.f32.partialorder %v353, 8.507059e+37
    %v355 = vand.u32 %v306, 2147483648
    %v356 = vor.u32 1.1754944e-38, %v355
    %v357 = vsel %vm354, %v356, %v352
    %v358 = vmul.f32 1.0, %v357
    %v359 = vrcp.pop %v307
    %v360 = vmul.f32 %v307, %v359
    %v361 = vsub.f32 1.0, %v360
    %v362 = vmul.f32 %v359, %v361
    %v363 = vadd.f32 %v359, %v362
    %vm364 = vweird.f32 %v307
    %vm365 = vweird.f32 %v359
    %vm366 = vmor %vm364, %vm365
    %v367 = vsel %vm366, %v359, %v363
    %v368 = vand.u32 2147483647, %v307
    %vm369 = vcmp.eq.f32.partialorder %v368, 8.507059e+37
    %v370 = vand.u32 %v307, 2147483648
    %v371 = vor.u32 1.1754944e-38, %v370
    %v372 = vsel %vm369, %v371, %v367
    %v373 = vmul.f32 1.0, %v372
    %v374 = vrcp.pop %v308
    %v375 = vmul.f32 %v308, %v374
    %v376 = vsub.f32 1.0, %v375
    %v377 = vmul.f32 %v374, %v376
    %v378 = vadd.f32 %v374, %v377
    %vm379 = vweird.f32 %v308
    %vm380 = vweird.f32 %v374
    %vm381 = vmor %vm379, %vm380
    %v382 = vsel %vm381, %v374, %v378
    %v383 = vand.u32 2147483647, %v308
    %vm384 = vcmp.eq.f32.partialorder %v383, 8.507059e+37
    %v385 = vand.u32 %v308, 2147483648
    %v386 = vor.u32 1.1754944e-38, %v385
    %v387 = vsel %vm384, %v386, %v382
    %v388 = vmul.f32 1.0, %v387
    %v389 = vrcp.pop %v309
    %v390 = vmul.f32 %v309, %v389
    %v391 = vsub.f32 1.0, %v390
    %v392 = vmul.f32 %v389, %v391
    %v393 = vadd.f32 %v389, %v392
    %vm394 = vweird.f32 %v309
    %vm395 = vweird.f32 %v389
    %vm396 = vmor %vm394, %vm395
    %v397 = vsel %vm396, %v389, %v393
    %v398 = vand.u32 2147483647, %v309
    %vm399 = vcmp.eq.f32.partialorder %v398, 8.507059e+37
    %v400 = vand.u32 %v309, 2147483648
    %v401 = vor.u32 1.1754944e-38, %v400
    %v402 = vsel %vm399, %v401, %v397
    %v403 = vmul.f32 1.0, %v402
    %v404 = vrcp.pop %v310
    %v405 = vmul.f32 %v310, %v404
    %v406 = vsub.f32 1.0, %v405
    %v407 = vmul.f32 %v404, %v406
    %v408 = vadd.f32 %v404, %v407
    %vm409 = vweird.f32 %v310
    %vm410 = vweird.f32 %v404
    %vm411 = vmor %vm409, %vm410
    %v412 = vsel %vm411, %v404, %v408
    %v413 = vand.u32 2147483647, %v310
    %vm414 = vcmp.eq.f32.partialorder %v413, 8.507059e+37
    %v415 = vand.u32 %v310, 2147483648
    %v416 = vor.u32 1.1754944e-38, %v415
    %v417 = vsel %vm414, %v416, %v412
    %v418 = vmul.f32 1.0, %v417
    %v419 = vrcp.pop %v311
    %v420 = vmul.f32 %v311, %v419
    %v421 = vsub.f32 1.0, %v420
    %v422 = vmul.f32 %v419, %v421
    %v423 = vadd.f32 %v419, %v422
    %vm424 = vweird.f32 %v311
    %vm425 = vweird.f32 %v419
    %vm426 = vmor %vm424, %vm425
    %v427 = vsel %vm426, %v419, %v423
    %v428 = vand.u32 2147483647, %v311
    %vm429 = vcmp.eq.f32.partialorder %v428, 8.507059e+37
    %v430 = vand.u32 %v311, 2147483648
    %v431 = vor.u32 1.1754944e-38, %v430
    %v432 = vsel %vm429, %v431, %v427
    %v433 = vmul.f32 1.0, %v432
    %v434 = vrcp.pop %v312
    %v435 = vmul.f32 %v312, %v434
    %v436 = vsub.f32 1.0, %v435
    %v437 = vmul.f32 %v434, %v436
    %v438 = vadd.f32 %v434, %v437
    %vm439 = vweird.f32 %v312
    %vm440 = vweird.f32 %v434
    %vm441 = vmor %vm439, %vm440
    %v442 = vsel %vm441, %v434, %v438
    %v443 = vand.u32 2147483647, %v312
    %vm444 = vcmp.eq.f32.partialorder %v443, 8.507059e+37
    %v445 = vand.u32 %v312, 2147483648
    %v446 = vor.u32 1.1754944e-38, %v445
    %v447 = vsel %vm444, %v446, %v442
    %v448 = vmul.f32 1.0, %v447
    %v449 = vrcp.pop %v313
    %v450 = vmul.f32 %v313, %v449
    %v451 = vsub.f32 1.0, %v450
    %v452 = vmul.f32 %v449, %v451
    %v453 = vadd.f32 %v449, %v452
    %vm454 = vweird.f32 %v313
    %vm455 = vweird.f32 %v449
    %vm456 = vmor %vm454, %vm455
    %v457 = vsel %vm456, %v449, %v453
    %v458 = vand.u32 2147483647, %v313
    %vm459 = vcmp.eq.f32.partialorder %v458, 8.507059e+37
    %v460 = vand.u32 %v313, 2147483648
    %v461 = vor.u32 1.1754944e-38, %v460
    %v462 = vsel %vm459, %v461, %v457
    %v463 = vmul.f32 1.0, %v462
    %v464 = vmul.f32 %v264, %v328
    %v465 = vmul.f32 %v265, %v343
    %v466 = vmul.f32 %v266, %v358
    %v467 = vmul.f32 %v267, %v373
    %v468 = vmul.f32 %v268, %v388
    %v469 = vmul.f32 %v269, %v403
    %v470 = vmul.f32 %v270, %v418
    %v471 = vmul.f32 %v271, %v433
    %v472 = vmul.f32 %v272, %v448
    %v473 = vmul.f32 %v273, %v463
    %v474 = vpack.c.bf16 %v62, %v62
    %v475 = vld [vmem:[%s3] sm:$0xff]
    %v476 = vld [vmem:[%s3 + $0x8] sm:$0xff]
    %v477 = vld [vmem:[%s3 + $0x10] sm:$0xff]
    %v478 = vld [vmem:[%s3 + $0x18] sm:$0xff]
    %v479 = vld [vmem:[%s3 + $0x20] sm:$0xff]
    %v480 = vld [vmem:[%s3 + $0x28] sm:$0xff]
    %v481 = vld [vmem:[%s3 + $0x30] sm:$0xff]
    %v482 = vld [vmem:[%s3 + $0x38] sm:$0xff]
    %v483 = vld [vmem:[%s3 + $0x40] sm:$0xff]
    %v484 = vld [vmem:[%s3 + $0x48] sm:$0xff]
    %v485 = vld [vmem:[%s3 + $0x50] sm:$0xff]
    %v486 = vld [vmem:[%s3 + $0x58] sm:$0xff]
    %v487 = vld [vmem:[%s3 + $0x60] sm:$0xff]
    %v488 = vld [vmem:[%s3 + $0x68] sm:$0xff]
    %v489 = vld [vmem:[%s3 + $0x70] sm:$0xff]
    %v490 = vld [vmem:[%s3 + $0x78] sm:$0xff]
    %v491 = vld [vmem:[%s3 + $0x80] sm:$0xff]
    %v492 = vld [vmem:[%s3 + $0x88] sm:$0xff]
    %v493 = vld [vmem:[%s4] sm:$0x3f]
    %v495 = vperm.slane %v493, 0
    %v496 = vperm.slane %v493, 1
    %v497 = vperm.slane %v493, 2
    %v498 = vperm.slane %v493, 3
    %v499 = vperm.slane %v493, 4
    %v500 = vperm.slane %v493, 5
    %v525 = vunpack.c.l.b16 %v475
    %v526 = vunpack.c.h.b16 %v475
    %v527 = vunpack.c.l.b16 %v476
    %v528 = vunpack.c.h.b16 %v476
    %v529 = vunpack.c.l.b16 %v477
    %v530 = vunpack.c.h.b16 %v477
    %v531 = vunpack.c.l.b16 %v478
    %v532 = vunpack.c.h.b16 %v478
    %v533 = vunpack.c.l.b16 %v479
    %v534 = vunpack.c.h.b16 %v479
    %v535 = vunpack.c.l.b16 %v480
    %v536 = vunpack.c.h.b16 %v480
    %v537 = vunpack.c.l.b16 %v481
    %v538 = vunpack.c.h.b16 %v481
    %v539 = vunpack.c.l.b16 %v482
    %v540 = vunpack.c.h.b16 %v482
    %v541 = vunpack.c.l.b16 %v483
    %v542 = vunpack.c.h.b16 %v483
    %v543 = vunpack.c.l.b16 %v484
    %v544 = vunpack.c.h.b16 %v484
    %v545 = vunpack.c.l.b16 %v485
    %v546 = vunpack.c.h.b16 %v485
    %v547 = vunpack.c.l.b16 %v486
    %v548 = vunpack.c.h.b16 %v486
    %v549 = vunpack.c.l.b16 %v487
    %v550 = vunpack.c.h.b16 %v487
    %v551 = vunpack.c.l.b16 %v488
    %v552 = vunpack.c.h.b16 %v488
    %v553 = vunpack.c.l.b16 %v489
    %v554 = vunpack.c.h.b16 %v489
    %v555 = vunpack.c.l.b16 %v490
    %v556 = vunpack.c.h.b16 %v490
    %v557 = vunpack.c.l.b16 %v491
    %v558 = vunpack.c.h.b16 %v491
    %v559 = vunpack.c.l.b16 %v492
    %v560 = vunpack.c.h.b16 %v492
    %v561 = vpack.c.b16 %v531, %v525
    %v562 = vpack.c.b16 %v532, %v526
    %v563 = vpack.c.b16 %v533, %v527
    %v564 = vpack.c.b16 %v534, %v528
    %v565 = vpack.c.b16 %v535, %v529
    %v566 = vpack.c.b16 %v536, %v530
    %v567 = vpack.c.b16 %v543, %v537
    %v568 = vpack.c.b16 %v544, %v538
    %v569 = vpack.c.b16 %v545, %v539
    %v570 = vpack.c.b16 %v546, %v540
    %v571 = vpack.c.b16 %v547, %v541
    %v572 = vpack.c.b16 %v548, %v542
    %v573 = vpack.c.b16 %v555, %v549
    %v574 = vpack.c.b16 %v556, %v550
    %v575 = vpack.c.b16 %v557, %v551
    %v576 = vpack.c.b16 %v558, %v552
    %v577 = vpack.c.b16 %v559, %v553
    %v578 = vpack.c.b16 %v560, %v554
    %vm597 = vcmask 392192
    %v599 = vsel %vm597, %v474, 0
    %601 = vmatpush.bf16.msra.mxu0 0
    %602 = vmatpush.bf16.msra.mxu0 0
    %603 = vmatpush.bf16.msra.mxu0 0
    %604 = vmatpush.bf16.msra.mxu0 0
    %605 = vmatpush.bf16.msra.mxu0 0
    %606 = vmatpush.bf16.msra.mxu0 %v573
    %607 = vmatpush.bf16.msra.mxu0 %v567
    %608 = vmatpush.bf16.msra.mxu0 %v561
    %609 = vmatmul.bf16.gmra.mxu0 %v599
    %v610 = vpop.f32.mrf.mxu0
    %v611 = vadd.f32 %v495, %v610
    %v612 = vpop.f32.mrf.mxu0
    %613 = vdwg.mxu0
    %614 = vmatpush.bf16.msra.mxu0 0
    %615 = vmatpush.bf16.msra.mxu0 0
    %616 = vmatpush.bf16.msra.mxu0 0
    %617 = vmatpush.bf16.msra.mxu0 0
    %618 = vmatpush.bf16.msra.mxu0 0
    %619 = vmatpush.bf16.msra.mxu0 %v574
    %620 = vmatpush.bf16.msra.mxu0 %v568
    %621 = vmatpush.bf16.msra.mxu0 %v562
    %622 = vmatmul.bf16.gmra.mxu0 %v599
    %v623 = vpop.f32.mrf.mxu0
    %v624 = vadd.f32 %v496, %v623
    %v625 = vpop.f32.mrf.mxu0
    %626 = vdwg.mxu0
    %627 = vmatpush.bf16.msra.mxu0 0
    %628 = vmatpush.bf16.msra.mxu0 0
    %629 = vmatpush.bf16.msra.mxu0 0
    %630 = vmatpush.bf16.msra.mxu0 0
    %631 = vmatpush.bf16.msra.mxu0 0
    %632 = vmatpush.bf16.msra.mxu0 %v575
    %633 = vmatpush.bf16.msra.mxu0 %v569
    %634 = vmatpush.bf16.msra.mxu0 %v563
    %635 = vmatmul.bf16.gmra.mxu0 %v599
    %v636 = vpop.f32.mrf.mxu0
    %v637 = vadd.f32 %v497, %v636
    %v638 = vpop.f32.mrf.mxu0
    %639 = vdwg.mxu0
    %640 = vmatpush.bf16.msra.mxu0 0
    %641 = vmatpush.bf16.msra.mxu0 0
    %642 = vmatpush.bf16.msra.mxu0 0
    %643 = vmatpush.bf16.msra.mxu0 0
    %644 = vmatpush.bf16.msra.mxu0 0
    %645 = vmatpush.bf16.msra.mxu0 %v576
    %646 = vmatpush.bf16.msra.mxu0 %v570
    %647 = vmatpush.bf16.msra.mxu0 %v564
    %648 = vmatmul.bf16.gmra.mxu0 %v599
    %v649 = vpop.f32.mrf.mxu0
    %v650 = vadd.f32 %v498, %v649
    %v651 = vpop.f32.mrf.mxu0
    %652 = vdwg.mxu0
    %653 = vmatpush.bf16.msra.mxu0 0
    %654 = vmatpush.bf16.msra.mxu0 0
    %655 = vmatpush.bf16.msra.mxu0 0
    %656 = vmatpush.bf16.msra.mxu0 0
    %657 = vmatpush.bf16.msra.mxu0 0
    %658 = vmatpush.bf16.msra.mxu0 %v577
    %659 = vmatpush.bf16.msra.mxu0 %v571
    %660 = vmatpush.bf16.msra.mxu0 %v565
    %661 = vmatmul.bf16.gmra.mxu0 %v599
    %v662 = vpop.f32.mrf.mxu0
    %v663 = vadd.f32 %v499, %v662
    %v664 = vpop.f32.mrf.mxu0
    %665 = vdwg.mxu0
    %666 = vmatpush.bf16.msra.mxu0 0
    %667 = vmatpush.bf16.msra.mxu0 0
    %668 = vmatpush.bf16.msra.mxu0 0
    %669 = vmatpush.bf16.msra.mxu0 0
    %670 = vmatpush.bf16.msra.mxu0 0
    %671 = vmatpush.bf16.msra.mxu0 %v578
    %672 = vmatpush.bf16.msra.mxu0 %v572
    %673 = vmatpush.bf16.msra.mxu0 %v566
    %674 = vmatmul.bf16.gmra.mxu0 %v599
    %v675 = vpop.f32.mrf.mxu0
    %v676 = vadd.f32 %v500, %v675
    %v677 = vpop.f32.mrf.mxu0
    %678 = vdwg.mxu0
    %v679 = vld [vmem:[%s5] sm:$0x3f]
    %v681 = vperm.slane %v679, 0
    %v682 = vperm.slane %v679, 1
    %v683 = vperm.slane %v679, 2
    %v684 = vperm.slane %v679, 3
    %v685 = vperm.slane %v679, 4
    %v686 = vperm.slane %v679, 5
    %v693 = vadd.f32 %v681, %v611
    %v694 = vadd.f32 %v682, %v624
    %v695 = vadd.f32 %v683, %v637
    %v696 = vadd.f32 %v684, %v650
    %v697 = vadd.f32 %v685, %v663
    %v698 = vadd.f32 %v686, %v676
    %vm699 = vcmask 1041408
    %v700 = vsel %vm699, %v693, 0.0
    %v701 = vsel %vm699, %v694, 0.0
    %v702 = vadd.f32 %v700, %v701
    %v703 = vsel %vm699, %v695, 0.0
    %v704 = vadd.f32 %v702, %v703
    %v705 = vsel %vm699, %v696, 0.0
    %v706 = vadd.f32 %v704, %v705
    %v707 = vsel %vm699, %v697, 0.0
    %v708 = vadd.f32 %v706, %v707
    %v709 = vsel %vm699, %v698, 0.0
    %v710 = vadd.f32 %v708, %v709
    %711 = vadd.xlane.f32.xlu0 %v710
    %v712 = vpop.xlane.xlu0 %711
    %v713 = vrcp.pop 768.0
    %v714 = vmul.f32 768.0, %v713
    %v715 = vsub.f32 1.0, %v714
    %v716 = vmul.f32 %v713, %v715
    %v717 = vadd.f32 %v713, %v716
    %vm718 = vweird.f32 %v713
    %v719 = vsel %vm718, %v713, %v717
    %v720 = vmul.f32 %v712, %v719
    %v721 = vmul.f32 %v693, %v693
    %v722 = vmul.f32 %v694, %v694
    %v723 = vmul.f32 %v695, %v695
    %v724 = vmul.f32 %v696, %v696
    %v725 = vmul.f32 %v697, %v697
    %v726 = vmul.f32 %v698, %v698
    %v727 = vsel %vm699, %v721, 0.0
    %v728 = vsel %vm699, %v722, 0.0
    %v729 = vadd.f32 %v727, %v728
    %v730 = vsel %vm699, %v723, 0.0
    %v731 = vadd.f32 %v729, %v730
    %v732 = vsel %vm699, %v724, 0.0
    %v733 = vadd.f32 %v731, %v732
    %v734 = vsel %vm699, %v725, 0.0
    %v735 = vadd.f32 %v733, %v734
    %v736 = vsel %vm699, %v726, 0.0
    %v737 = vadd.f32 %v735, %v736
    %738 = vadd.xlane.f32.xlu0 %v737
    %v739 = vpop.xlane.xlu0 %738
    %v740 = vmul.f32 %v739, %v719
    %v741 = vmul.f32 %v720, %v720
    %v742 = vsub.f32 %v740, %v741
    %v743 = vmax.f32 %v742, 0.0
    %v744 = vsub.f32 %v693, %v720
    %v745 = vsub.f32 %v694, %v720
    %v746 = vsub.f32 %v695, %v720
    %v747 = vsub.f32 %v696, %v720
    %v748 = vsub.f32 %v697, %v720
    %v749 = vsub.f32 %v698, %v720
    %v750 = vadd.f32 %v743, 1e-12
    %v751 = vrsqrt.pop %v750
    %v752 = vmul.f32 %v751, %v750
    %v753 = vmul.f32 %v752, %v751
    %v754 = vmul.f32 0.5, %v753
    %v755 = vsub.f32 1.5, %v754
    %v756 = vmul.f32 %v751, %v755
    %vm757 = vweird.f32 %v750
    %vm758 = vweird.f32 %v751
    %vm759 = vmor %vm757, %vm758
    %v760 = vsel %vm759, %v751, %v756
    %v761 = vmul.f32 %v744, %v760
    %v762 = vmul.f32 %v745, %v760
    %v763 = vmul.f32 %v746, %v760
    %v764 = vmul.f32 %v747, %v760
    %v765 = vmul.f32 %v748, %v760
    %v766 = vmul.f32 %v749, %v760
    %v767 = vld [vmem:[%s6] sm:$0x3f]
    %v769 = vperm.slane %v767, 0
    %v770 = vperm.slane %v767, 1
    %v771 = vperm.slane %v767, 2
    %v772 = vperm.slane %v767, 3
    %v773 = vperm.slane %v767, 4
    %v774 = vperm.slane %v767, 5
    %v781 = vmul.f32 %v761, %v769
    %v782 = vmul.f32 %v762, %v770
    %v783 = vmul.f32 %v763, %v771
    %v784 = vmul.f32 %v764, %v772
    %v785 = vmul.f32 %v765, %v773
    %v786 = vmul.f32 %v766, %v774
    %v787 = vld [vmem:[%s7] sm:$0x3f]
    %v789 = vperm.slane %v787, 0
    %v790 = vperm.slane %v787, 1
    %v791 = vperm.slane %v787, 2
    %v792 = vperm.slane %v787, 3
    %v793 = vperm.slane %v787, 4
    %v794 = vperm.slane %v787, 5
    %v801 = vadd.f32 %v781, %v789
    %v802 = vadd.f32 %v782, %v790
    %v803 = vadd.f32 %v783, %v791
    %v804 = vadd.f32 %v784, %v792
    %v805 = vadd.f32 %v785, %v793
    %v806 = vadd.f32 %v786, %v794
    %v807 = vpack.c.bf16 %v464, %v464
    %v808 = vpack.c.bf16 %v465, %v465
    %v809 = vpack.c.bf16 %v466, %v466
    %v810 = vpack.c.bf16 %v467, %v467
    %v811 = vpack.c.bf16 %v468, %v468
    %v812 = vpack.c.bf16 %v469, %v469
    %v813 = vpack.c.bf16 %v470, %v470
    %v814 = vpack.c.bf16 %v471, %v471
    %v815 = vpack.c.bf16 %v472, %v472
    %v816 = vpack.c.bf16 %v473, %v473
    %v817 = vld [vmem:[%s8] sm:$0xff]
    %v818 = vld [vmem:[%s8 + $0x8] sm:$0xff]
    %v819 = vld [vmem:[%s8 + $0x10] sm:$0xff]
    %v820 = vld [vmem:[%s8 + $0x18] sm:$0xff]
    %v821 = vld [vmem:[%s8 + $0x20] sm:$0xff]
    %v822 = vld [vmem:[%s8 + $0x28] sm:$0xff]
    %v823 = vld [vmem:[%s8 + $0x30] sm:$0xff]
    %v824 = vld [vmem:[%s8 + $0x38] sm:$0xff]
    %v825 = vld [vmem:[%s8 + $0x40] sm:$0xff]
    %v826 = vld [vmem:[%s8 + $0x48] sm:$0xff]
    %v827 = vld [vmem:[%s8 + $0x50] sm:$0xff]
    %v828 = vld [vmem:[%s8 + $0x58] sm:$0xff]
    %v829 = vld [vmem:[%s8 + $0x60] sm:$0xff]
    %v830 = vld [vmem:[%s8 + $0x68] sm:$0xff]
    %v831 = vld [vmem:[%s8 + $0x70] sm:$0xff]
    %v832 = vld [vmem:[%s8 + $0x78] sm:$0xff]
    %v833 = vld [vmem:[%s8 + $0x80] sm:$0xff]
    %v834 = vld [vmem:[%s8 + $0x88] sm:$0xff]
    %v835 = vld [vmem:[%s8 + $0x90] sm:$0xff]
    %v836 = vld [vmem:[%s8 + $0x98] sm:$0xff]
    %v837 = vld [vmem:[%s8 + $0xa0] sm:$0xff]
    %v838 = vld [vmem:[%s8 + $0xa8] sm:$0xff]
    %v839 = vld [vmem:[%s8 + $0xb0] sm:$0xff]
    %v840 = vld [vmem:[%s8 + $0xb8] sm:$0xff]
    %v841 = vld [vmem:[%s8 + $0xc0] sm:$0xff]
    %v842 = vld [vmem:[%s8 + $0xc8] sm:$0xff]
    %v843 = vld [vmem:[%s8 + $0xd0] sm:$0xff]
    %v844 = vld [vmem:[%s8 + $0xd8] sm:$0xff]
    %v845 = vld [vmem:[%s8 + $0xe0] sm:$0xff]
    %v846 = vld [vmem:[%s8 + $0xe8] sm:$0xff]
    %v847 = vld [vmem:[%s8 + $0xf0] sm:$0xff]
    %v848 = vld [vmem:[%s8 + $0xf8] sm:$0xff]
    %v849 = vld [vmem:[%s8 + $0x100] sm:$0xff]
    %v850 = vld [vmem:[%s8 + $0x108] sm:$0xff]
    %v851 = vld [vmem:[%s8 + $0x110] sm:$0xff]
    %v852 = vld [vmem:[%s8 + $0x118] sm:$0xff]
    %v853 = vld [vmem:[%s8 + $0x120] sm:$0xff]
    %v854 = vld [vmem:[%s8 + $0x128] sm:$0xff]
    %v855 = vld [vmem:[%s8 + $0x130] sm:$0xff]
    %v856 = vld [vmem:[%s8 + $0x138] sm:$0xff]
    %v857 = vld [vmem:[%s8 + $0x140] sm:$0xff]
    %v858 = vld [vmem:[%s8 + $0x148] sm:$0xff]
    %v859 = vld [vmem:[%s8 + $0x150] sm:$0xff]
    %v860 = vld [vmem:[%s8 + $0x158] sm:$0xff]
    %v861 = vld [vmem:[%s8 + $0x160] sm:$0xff]
    %v862 = vld [vmem:[%s8 + $0x168] sm:$0xff]
    %v863 = vld [vmem:[%s8 + $0x170] sm:$0xff]
    %v864 = vld [vmem:[%s8 + $0x178] sm:$0xff]
    %v865 = vld [vmem:[%s8 + $0x180] sm:$0xff]
    %v866 = vld [vmem:[%s8 + $0x188] sm:$0xff]
    %v867 = vld [vmem:[%s8 + $0x190] sm:$0xff]
    %v868 = vld [vmem:[%s8 + $0x198] sm:$0xff]
    %v869 = vld [vmem:[%s8 + $0x1a0] sm:$0xff]
    %v870 = vld [vmem:[%s8 + $0x1a8] sm:$0xff]
    %v871 = vld [vmem:[%s8 + $0x1b0] sm:$0xff]
    %v872 = vld [vmem:[%s8 + $0x1b8] sm:$0xff]
    %v873 = vld [vmem:[%s8 + $0x1c0] sm:$0xff]
    %v874 = vld [vmem:[%s8 + $0x1c8] sm:$0xff]
    %v875 = vld [vmem:[%s8 + $0x1d0] sm:$0xff]
    %v876 = vld [vmem:[%s8 + $0x1d8] sm:$0xff]
    %v877 = vld [vmem:[%s8 + $0x1e0] sm:$0xff]
    %v878 = vld [vmem:[%s8 + $0x1e8] sm:$0xff]
    %v879 = vld [vmem:[%s8 + $0x1f0] sm:$0xff]
    %v880 = vld [vmem:[%s8 + $0x1f8] sm:$0xff]
    %v881 = vld [vmem:[%s8 + $0x200] sm:$0xff]
    %v882 = vld [vmem:[%s8 + $0x208] sm:$0xff]
    %v883 = vld [vmem:[%s8 + $0x210] sm:$0xff]
    %v884 = vld [vmem:[%s8 + $0x218] sm:$0xff]
    %v885 = vld [vmem:[%s8 + $0x220] sm:$0xff]
    %v886 = vld [vmem:[%s8 + $0x228] sm:$0xff]
    %v887 = vld [vmem:[%s8 + $0x230] sm:$0xff]
    %v888 = vld [vmem:[%s8 + $0x238] sm:$0xff]
    %v889 = vld [vmem:[%s8 + $0x240] sm:$0xff]
    %v890 = vld [vmem:[%s8 + $0x248] sm:$0xff]
    %v891 = vld [vmem:[%s8 + $0x250] sm:$0xff]
    %v892 = vld [vmem:[%s8 + $0x258] sm:$0xff]
    %v893 = vld [vmem:[%s8 + $0x260] sm:$0xff]
    %v894 = vld [vmem:[%s8 + $0x268] sm:$0xff]
    %v895 = vld [vmem:[%s8 + $0x270] sm:$0xff]
    %v896 = vld [vmem:[%s8 + $0x278] sm:$0xff]
    %v897 = vld [vmem:[%s8 + $0x280] sm:$0xff]
    %v898 = vld [vmem:[%s8 + $0x288] sm:$0xff]
    %v899 = vld [vmem:[%s8 + $0x290] sm:$0xff]
    %v900 = vld [vmem:[%s8 + $0x298] sm:$0xff]
    %v901 = vld [vmem:[%s8 + $0x2a0] sm:$0xff]
    %v902 = vld [vmem:[%s8 + $0x2a8] sm:$0xff]
    %v903 = vld [vmem:[%s8 + $0x2b0] sm:$0xff]
    %v904 = vld [vmem:[%s8 + $0x2b8] sm:$0xff]
    %v905 = vld [vmem:[%s8 + $0x2c0] sm:$0xff]
    %v906 = vld [vmem:[%s8 + $0x2c8] sm:$0xff]
    %v907 = vld [vmem:[%s8 + $0x2d0] sm:$0xff]
    %v908 = vld [vmem:[%s8 + $0x2d8] sm:$0xff]
    %v909 = vld [vmem:[%s8 + $0x2e0] sm:$0xff]
    %v910 = vld [vmem:[%s8 + $0x2e8] sm:$0xff]
    %v911 = vld [vmem:[%s8 + $0x2f0] sm:$0xff]
    %v912 = vld [vmem:[%s8 + $0x2f8] sm:$0xff]
    %v913 = vld [vmem:[%s8 + $0x300] sm:$0xff]
    %v914 = vld [vmem:[%s8 + $0x308] sm:$0xff]
    %v915 = vld [vmem:[%s8 + $0x310] sm:$0xff]
    %v916 = vld [vmem:[%s8 + $0x318] sm:$0xff]
    %v917 = vld [vmem:[%s8 + $0x320] sm:$0xff]
    %v918 = vld [vmem:[%s8 + $0x328] sm:$0xff]
    %v919 = vld [vmem:[%s8 + $0x330] sm:$0xff]
    %v920 = vld [vmem:[%s8 + $0x338] sm:$0xff]
    %v921 = vld [vmem:[%s8 + $0x340] sm:$0xff]
    %v922 = vld [vmem:[%s8 + $0x348] sm:$0xff]
    %v923 = vld [vmem:[%s8 + $0x350] sm:$0xff]
    %v924 = vld [vmem:[%s8 + $0x358] sm:$0xff]
    %v925 = vld [vmem:[%s8 + $0x360] sm:$0xff]
    %v926 = vld [vmem:[%s8 + $0x368] sm:$0xff]
    %v927 = vld [vmem:[%s8 + $0x370] sm:$0xff]
    %v928 = vld [vmem:[%s8 + $0x378] sm:$0xff]
    %v929 = vld [vmem:[%s8 + $0x380] sm:$0xff]
    %v930 = vld [vmem:[%s8 + $0x388] sm:$0xff]
    %v931 = vld [vmem:[%s8 + $0x390] sm:$0xff]
    %v932 = vld [vmem:[%s8 + $0x398] sm:$0xff]
    %v933 = vld [vmem:[%s8 + $0x3a0] sm:$0xff]
    %v934 = vld [vmem:[%s8 + $0x3a8] sm:$0xff]
    %v935 = vld [vmem:[%s8 + $0x3b0] sm:$0xff]
    %v936 = vld [vmem:[%s8 + $0x3b8] sm:$0xff]
    %v937 = vld [vmem:[%s8 + $0x3c0] sm:$0xff]
    %v938 = vld [vmem:[%s8 + $0x3c8] sm:$0xff]
    %v939 = vld [vmem:[%s8 + $0x3d0] sm:$0xff]
    %v940 = vld [vmem:[%s8 + $0x3d8] sm:$0xff]
    %v941 = vld [vmem:[%s8 + $0x3e0] sm:$0xff]
    %v942 = vld [vmem:[%s8 + $0x3e8] sm:$0xff]
    %v943 = vld [vmem:[%s8 + $0x3f0] sm:$0xff]
    %v944 = vld [vmem:[%s8 + $0x3f8] sm:$0xff]
    %v945 = vld [vmem:[%s8 + $0x400] sm:$0xff]
    %v946 = vld [vmem:[%s8 + $0x408] sm:$0xff]
    %v947 = vld [vmem:[%s8 + $0x410] sm:$0xff]
    %v948 = vld [vmem:[%s8 + $0x418] sm:$0xff]
    %v949 = vld [vmem:[%s8 + $0x420] sm:$0xff]
    %v950 = vld [vmem:[%s8 + $0x428] sm:$0xff]
    %v951 = vld [vmem:[%s8 + $0x430] sm:$0xff]
    %v952 = vld [vmem:[%s8 + $0x438] sm:$0xff]
    %v953 = vld [vmem:[%s8 + $0x440] sm:$0xff]
    %v954 = vld [vmem:[%s8 + $0x448] sm:$0xff]
    %v955 = vld [vmem:[%s8 + $0x450] sm:$0xff]
    %v956 = vld [vmem:[%s8 + $0x458] sm:$0xff]
    %v957 = vld [vmem:[%s8 + $0x460] sm:$0xff]
    %v958 = vld [vmem:[%s8 + $0x468] sm:$0xff]
    %v959 = vld [vmem:[%s8 + $0x470] sm:$0xff]
    %v960 = vld [vmem:[%s8 + $0x478] sm:$0xff]
    %v961 = vld [vmem:[%s8 + $0x480] sm:$0xff]
    %v962 = vld [vmem:[%s8 + $0x488] sm:$0xff]
    %v963 = vld [vmem:[%s8 + $0x490] sm:$0xff]
    %v964 = vld [vmem:[%s8 + $0x498] sm:$0xff]
    %v965 = vld [vmem:[%s8 + $0x4a0] sm:$0xff]
    %v966 = vld [vmem:[%s8 + $0x4a8] sm:$0xff]
    %v967 = vld [vmem:[%s8 + $0x4b0] sm:$0xff]
    %v968 = vld [vmem:[%s8 + $0x4b8] sm:$0xff]
    %v969 = vld [vmem:[%s8 + $0x4c0] sm:$0xff]
    %v970 = vld [vmem:[%s8 + $0x4c8] sm:$0xff]
    %v971 = vld [vmem:[%s8 + $0x4d0] sm:$0xff]
    %v972 = vld [vmem:[%s8 + $0x4d8] sm:$0xff]
    %v973 = vld [vmem:[%s8 + $0x4e0] sm:$0xff]
    %v974 = vld [vmem:[%s8 + $0x4e8] sm:$0xff]
    %v975 = vld [vmem:[%s8 + $0x4f0] sm:$0xff]
    %v976 = vld [vmem:[%s8 + $0x4f8] sm:$0xff]
    %v977 = vld [vmem:[%s8 + $0x500] sm:$0xff]
    %v978 = vld [vmem:[%s8 + $0x508] sm:$0xff]
    %v979 = vld [vmem:[%s8 + $0x510] sm:$0xff]
    %v980 = vld [vmem:[%s8 + $0x518] sm:$0xff]
    %v981 = vld [vmem:[%s8 + $0x520] sm:$0xff]
    %v982 = vld [vmem:[%s8 + $0x528] sm:$0xff]
    %v983 = vld [vmem:[%s8 + $0x530] sm:$0xff]
    %v984 = vld [vmem:[%s8 + $0x538] sm:$0xff]
    %v985 = vld [vmem:[%s8 + $0x540] sm:$0xff]
    %v986 = vld [vmem:[%s8 + $0x548] sm:$0xff]
    %v987 = vld [vmem:[%s8 + $0x550] sm:$0xff]
    %v988 = vld [vmem:[%s8 + $0x558] sm:$0xff]
    %v989 = vld [vmem:[%s8 + $0x560] sm:$0xff]
    %v990 = vld [vmem:[%s8 + $0x568] sm:$0xff]
    %v991 = vld [vmem:[%s8 + $0x570] sm:$0xff]
    %v992 = vld [vmem:[%s8 + $0x578] sm:$0xff]
    %v993 = vld [vmem:[%s8 + $0x580] sm:$0xff]
    %v994 = vld [vmem:[%s8 + $0x588] sm:$0xff]
    %v995 = vld [vmem:[%s8 + $0x590] sm:$0xff]
    %v996 = vld [vmem:[%s8 + $0x598] sm:$0xff]
    %v997 = vld [vmem:[%s8 + $0x5a0] sm:$0xff]
    %v998 = vld [vmem:[%s8 + $0x5a8] sm:$0xff]
    %v999 = vld [vmem:[%s8 + $0x5b0] sm:$0xff]
    %v1000 = vld [vmem:[%s8 + $0x5b8] sm:$0xff]
    %v1001 = vld [vmem:[%s8 + $0x5c0] sm:$0xff]
    %v1002 = vld [vmem:[%s8 + $0x5c8] sm:$0xff]
    %v1003 = vld [vmem:[%s8 + $0x5d0] sm:$0xff]
    %v1004 = vld [vmem:[%s8 + $0x5d8] sm:$0xff]
    %v1005 = vld [vmem:[%s8 + $0x5e0] sm:$0xff]
    %v1006 = vld [vmem:[%s8 + $0x5e8] sm:$0xff]
    %v1007 = vld [vmem:[%s8 + $0x5f0] sm:$0xff]
    %v1008 = vld [vmem:[%s8 + $0x5f8] sm:$0xff]
    %v1009 = vld [vmem:[%s8 + $0x600] sm:$0xff]
    %v1010 = vld [vmem:[%s8 + $0x608] sm:$0xff]
    %v1011 = vld [vmem:[%s8 + $0x610] sm:$0xff]
    %v1012 = vld [vmem:[%s8 + $0x618] sm:$0xff]
    %v1013 = vld [vmem:[%s8 + $0x620] sm:$0xff]
    %v1014 = vld [vmem:[%s8 + $0x628] sm:$0xff]
    %v1015 = vld [vmem:[%s8 + $0x630] sm:$0xff]
    %v1016 = vld [vmem:[%s8 + $0x638] sm:$0xff]
    %v1017 = vld [vmem:[%s8 + $0x640] sm:$0xff]
    %v1018 = vld [vmem:[%s8 + $0x648] sm:$0xff]
    %v1019 = vld [vmem:[%s8 + $0x650] sm:$0xff]
    %v1020 = vld [vmem:[%s8 + $0x658] sm:$0xff]
    %v1021 = vld [vmem:[%s8 + $0x660] sm:$0xff]
    %v1022 = vld [vmem:[%s8 + $0x668] sm:$0xff]
    %v1023 = vld [vmem:[%s8 + $0x670] sm:$0xff]
    %v1024 = vld [vmem:[%s8 + $0x678] sm:$0xff]
    %v1025 = vld [vmem:[%s8 + $0x680] sm:$0xff]
    %v1026 = vld [vmem:[%s8 + $0x688] sm:$0xff]
    %v1027 = vld [vmem:[%s8 + $0x690] sm:$0xff]
    %v1028 = vld [vmem:[%s8 + $0x698] sm:$0xff]
    %v1029 = vld [vmem:[%s8 + $0x6a0] sm:$0xff]
    %v1030 = vld [vmem:[%s8 + $0x6a8] sm:$0xff]
    %v1031 = vld [vmem:[%s8 + $0x6b0] sm:$0xff]
    %v1032 = vld [vmem:[%s8 + $0x6b8] sm:$0xff]
    %v1033 = vld [vmem:[%s8 + $0x6c0] sm:$0xff]
    %v1034 = vld [vmem:[%s8 + $0x6c8] sm:$0xff]
    %v1035 = vld [vmem:[%s8 + $0x6d0] sm:$0xff]
    %v1036 = vld [vmem:[%s8 + $0x6d8] sm:$0xff]
    %v1037 = vld [vmem:[%s8 + $0x6e0] sm:$0xff]
    %v1038 = vld [vmem:[%s8 + $0x6e8] sm:$0xff]
    %v1039 = vld [vmem:[%s8 + $0x6f0] sm:$0xff]
    %v1040 = vld [vmem:[%s8 + $0x6f8] sm:$0xff]
    %v1041 = vld [vmem:[%s8 + $0x700] sm:$0xff]
    %v1042 = vld [vmem:[%s8 + $0x708] sm:$0xff]
    %v1043 = vld [vmem:[%s8 + $0x710] sm:$0xff]
    %v1044 = vld [vmem:[%s8 + $0x718] sm:$0xff]
    %v1045 = vld [vmem:[%s8 + $0x720] sm:$0xff]
    %v1046 = vld [vmem:[%s8 + $0x728] sm:$0xff]
    %v1047 = vld [vmem:[%s8 + $0x730] sm:$0xff]
    %v1048 = vld [vmem:[%s8 + $0x738] sm:$0xff]
    %v1049 = vld [vmem:[%s8 + $0x740] sm:$0xff]
    %v1050 = vld [vmem:[%s8 + $0x748] sm:$0xff]
    %v1051 = vld [vmem:[%s8 + $0x750] sm:$0xff]
    %v1052 = vld [vmem:[%s8 + $0x758] sm:$0xff]
    %v1053 = vld [vmem:[%s8 + $0x760] sm:$0xff]
    %v1054 = vld [vmem:[%s8 + $0x768] sm:$0xff]
    %v1055 = vld [vmem:[%s8 + $0x770] sm:$0xff]
    %v1056 = vld [vmem:[%s8 + $0x778] sm:$0xff]
    %v1057 = vld [vmem:[%s8 + $0x780] sm:$0xff]
    %v1058 = vld [vmem:[%s8 + $0x788] sm:$0xff]
    %v1059 = vld [vmem:[%s8 + $0x790] sm:$0xff]
    %v1060 = vld [vmem:[%s8 + $0x798] sm:$0xff]
    %v1061 = vld [vmem:[%s8 + $0x7a0] sm:$0xff]
    %v1062 = vld [vmem:[%s8 + $0x7a8] sm:$0xff]
    %v1063 = vld [vmem:[%s8 + $0x7b0] sm:$0xff]
    %v1064 = vld [vmem:[%s8 + $0x7b8] sm:$0xff]
    %v1065 = vld [vmem:[%s8 + $0x7c0] sm:$0xff]
    %v1066 = vld [vmem:[%s8 + $0x7c8] sm:$0xff]
    %v1067 = vld [vmem:[%s8 + $0x7d0] sm:$0xff]
    %v1068 = vld [vmem:[%s8 + $0x7d8] sm:$0xff]
    %v1069 = vld [vmem:[%s8 + $0x7e0] sm:$0xff]
    %v1070 = vld [vmem:[%s8 + $0x7e8] sm:$0xff]
    %v1071 = vld [vmem:[%s8 + $0x7f0] sm:$0xff]
    %v1072 = vld [vmem:[%s8 + $0x7f8] sm:$0xff]
    %v1073 = vld [vmem:[%s8 + $0x800] sm:$0xff]
    %v1074 = vld [vmem:[%s8 + $0x808] sm:$0xff]
    %v1075 = vld [vmem:[%s8 + $0x810] sm:$0xff]
    %v1076 = vld [vmem:[%s8 + $0x818] sm:$0xff]
    %v1077 = vld [vmem:[%s8 + $0x820] sm:$0xff]
    %v1078 = vld [vmem:[%s8 + $0x828] sm:$0xff]
    %v1079 = vld [vmem:[%s8 + $0x830] sm:$0xff]
    %v1080 = vld [vmem:[%s8 + $0x838] sm:$0xff]
    %v1081 = vld [vmem:[%s8 + $0x840] sm:$0xff]
    %v1082 = vld [vmem:[%s8 + $0x848] sm:$0xff]
    %v1083 = vld [vmem:[%s8 + $0x850] sm:$0xff]
    %v1084 = vld [vmem:[%s8 + $0x858] sm:$0xff]
    %v1085 = vld [vmem:[%s8 + $0x860] sm:$0xff]
    %v1086 = vld [vmem:[%s8 + $0x868] sm:$0xff]
    %v1087 = vld [vmem:[%s8 + $0x870] sm:$0xff]
    %v1088 = vld [vmem:[%s8 + $0x878] sm:$0xff]
    %v1089 = vld [vmem:[%s8 + $0x880] sm:$0xff]
    %v1090 = vld [vmem:[%s8 + $0x888] sm:$0xff]
    %v1091 = vld [vmem:[%s8 + $0x890] sm:$0xff]
    %v1092 = vld [vmem:[%s8 + $0x898] sm:$0xff]
    %v1093 = vld [vmem:[%s8 + $0x8a0] sm:$0xff]
    %v1094 = vld [vmem:[%s8 + $0x8a8] sm:$0xff]
    %v1095 = vld [vmem:[%s8 + $0x8b0] sm:$0xff]
    %v1096 = vld [vmem:[%s8 + $0x8b8] sm:$0xff]
    %v1097 = vld [vmem:[%s8 + $0x8c0] sm:$0xff]
    %v1098 = vld [vmem:[%s8 + $0x8c8] sm:$0xff]
    %v1099 = vld [vmem:[%s8 + $0x8d0] sm:$0xff]
    %v1100 = vld [vmem:[%s8 + $0x8d8] sm:$0xff]
    %v1101 = vld [vmem:[%s8 + $0x8e0] sm:$0xff]
    %v1102 = vld [vmem:[%s8 + $0x8e8] sm:$0xff]
    %v1103 = vld [vmem:[%s8 + $0x8f0] sm:$0xff]
    %v1104 = vld [vmem:[%s8 + $0x8f8] sm:$0xff]
    %v1105 = vld [vmem:[%s8 + $0x900] sm:$0xff]
    %v1106 = vld [vmem:[%s8 + $0x908] sm:$0xff]
    %v1107 = vld [vmem:[%s8 + $0x910] sm:$0xff]
    %v1108 = vld [vmem:[%s8 + $0x918] sm:$0xff]
    %v1109 = vld [vmem:[%s8 + $0x920] sm:$0xff]
    %v1110 = vld [vmem:[%s8 + $0x928] sm:$0xff]
    %v1111 = vld [vmem:[%s8 + $0x930] sm:$0xff]
    %v1112 = vld [vmem:[%s8 + $0x938] sm:$0xff]
    %v1113 = vld [vmem:[%s8 + $0x940] sm:$0xff]
    %v1114 = vld [vmem:[%s8 + $0x948] sm:$0xff]
    %v1115 = vld [vmem:[%s8 + $0x950] sm:$0xff]
    %v1116 = vld [vmem:[%s8 + $0x958] sm:$0xff]
    %v1117 = vld [vmem:[%s8 + $0x960] sm:$0xff]
    %v1118 = vld [vmem:[%s8 + $0x968] sm:$0xff]
    %v1119 = vld [vmem:[%s8 + $0x970] sm:$0xff]
    %v1120 = vld [vmem:[%s8 + $0x978] sm:$0xff]
    %v1121 = vld [vmem:[%s8 + $0x980] sm:$0xff]
    %v1122 = vld [vmem:[%s8 + $0x988] sm:$0xff]
    %v1123 = vld [vmem:[%s8 + $0x990] sm:$0xff]
    %v1124 = vld [vmem:[%s8 + $0x998] sm:$0xff]
    %v1125 = vld [vmem:[%s8 + $0x9a0] sm:$0xff]
    %v1126 = vld [vmem:[%s8 + $0x9a8] sm:$0xff]
    %v1127 = vld [vmem:[%s8 + $0x9b0] sm:$0xff]
    %v1128 = vld [vmem:[%s8 + $0x9b8] sm:$0xff]
    %v1129 = vld [vmem:[%s8 + $0x9c0] sm:$0xff]
    %v1130 = vld [vmem:[%s8 + $0x9c8] sm:$0xff]
    %v1131 = vld [vmem:[%s8 + $0x9d0] sm:$0xff]
    %v1132 = vld [vmem:[%s8 + $0x9d8] sm:$0xff]
    %v1133 = vld [vmem:[%s8 + $0x9e0] sm:$0xff]
    %v1134 = vld [vmem:[%s8 + $0x9e8] sm:$0xff]
    %v1135 = vld [vmem:[%s8 + $0x9f0] sm:$0xff]
    %v1136 = vld [vmem:[%s8 + $0x9f8] sm:$0xff]
    %v1137 = vpack.c.bf16 %v801, %v801
    %v1138 = vpack.c.bf16 %v802, %v802
    %v1139 = vpack.c.bf16 %v803, %v803
    %v1140 = vpack.c.bf16 %v804, %v804
    %v1141 = vpack.c.bf16 %v805, %v805
    %v1142 = vpack.c.bf16 %v806, %v806
    %v1143 = vld [vmem:[#allocation2] sm:$0xff]
    %v1144 = vld [vmem:[#allocation2 + $0x8] sm:$0xff]
    %v1145 = vld [vmem:[#allocation2 + $0x10] sm:$0xff]
    %v1146 = vld [vmem:[#allocation2 + $0x18] sm:$0xff]
    %v1147 = vld [vmem:[#allocation2 + $0x20] sm:$0xff]
    %v1148 = vld [vmem:[#allocation2 + $0x28] sm:$0xff]
    %v1149 = vld [vmem:[#allocation2 + $0x30] sm:$0xff]
    %v1150 = vld [vmem:[#allocation2 + $0x38] sm:$0xff]
    %v1151 = vld [vmem:[#allocation2 + $0x40] sm:$0xff]
    %v1152 = vld [vmem:[#allocation2 + $0x48] sm:$0xff]
    %v1153 = vld [vmem:[#allocation2 + $0x50] sm:$0xff]
    %v1154 = vld [vmem:[#allocation2 + $0x58] sm:$0xff]
    %v1155 = vld [vmem:[#allocation2 + $0x60] sm:$0xff]
    %v1156 = vld [vmem:[#allocation2 + $0x68] sm:$0xff]
    %v1157 = vld [vmem:[#allocation2 + $0x70] sm:$0xff]
    %v1158 = vld [vmem:[#allocation2 + $0x78] sm:$0xff]
    %v1159 = vld [vmem:[#allocation2 + $0x80] sm:$0xff]
    %v1160 = vld [vmem:[#allocation2 + $0x88] sm:$0xff]
    %v1161 = vld [vmem:[#allocation2 + $0x90] sm:$0xff]
    %v1162 = vld [vmem:[#allocation2 + $0x98] sm:$0xff]
    %v1163 = vld [vmem:[#allocation2 + $0xa0] sm:$0xff]
    %v1164 = vld [vmem:[#allocation2 + $0xa8] sm:$0xff]
    %v1165 = vld [vmem:[#allocation2 + $0xb0] sm:$0xff]
    %v1166 = vld [vmem:[#allocation2 + $0xb8] sm:$0xff]
    %v1167 = vld [vmem:[#allocation2 + $0xc0] sm:$0xff]
    %v1168 = vld [vmem:[#allocation2 + $0xc8] sm:$0xff]
    %v1169 = vld [vmem:[#allocation2 + $0xd0] sm:$0xff]
    %v1170 = vld [vmem:[#allocation2 + $0xd8] sm:$0xff]
    %v1171 = vld [vmem:[#allocation2 + $0xe0] sm:$0xff]
    %v1172 = vld [vmem:[#allocation2 + $0xe8] sm:$0xff]
    %v1173 = vld [vmem:[#allocation2 + $0xf0] sm:$0xff]
    %v1174 = vld [vmem:[#allocation2 + $0xf8] sm:$0xff]
    %v1175 = vld [vmem:[#allocation2 + $0x100] sm:$0xff]
    %v1176 = vld [vmem:[#allocation2 + $0x108] sm:$0xff]
    %v1177 = vld [vmem:[#allocation2 + $0x110] sm:$0xff]
    %v1178 = vld [vmem:[#allocation2 + $0x118] sm:$0xff]
    %v1179 = vld [vmem:[#allocation2 + $0x120] sm:$0xff]
    %v1180 = vld [vmem:[#allocation2 + $0x128] sm:$0xff]
    %v1181 = vld [vmem:[#allocation2 + $0x130] sm:$0xff]
    %v1182 = vld [vmem:[#allocation2 + $0x138] sm:$0xff]
    %v1183 = vld [vmem:[#allocation2 + $0x140] sm:$0xff]
    %v1184 = vld [vmem:[#allocation2 + $0x148] sm:$0xff]
    %v1185 = vld [vmem:[#allocation2 + $0x150] sm:$0xff]
    %v1186 = vld [vmem:[#allocation2 + $0x158] sm:$0xff]
    %v1187 = vld [vmem:[#allocation2 + $0x160] sm:$0xff]
    %v1188 = vld [vmem:[#allocation2 + $0x168] sm:$0xff]
    %v1189 = vld [vmem:[#allocation2 + $0x170] sm:$0xff]
    %v1190 = vld [vmem:[#allocation2 + $0x178] sm:$0xff]
    %v1191 = vld [vmem:[#allocation2 + $0x180] sm:$0xff]
    %v1192 = vld [vmem:[#allocation2 + $0x188] sm:$0xff]
    %v1193 = vld [vmem:[#allocation2 + $0x190] sm:$0xff]
    %v1194 = vld [vmem:[#allocation2 + $0x198] sm:$0xff]
    %v1195 = vld [vmem:[#allocation2 + $0x1a0] sm:$0xff]
    %v1196 = vld [vmem:[#allocation2 + $0x1a8] sm:$0xff]
    %v1197 = vld [vmem:[#allocation2 + $0x1b0] sm:$0xff]
    %v1198 = vld [vmem:[#allocation2 + $0x1b8] sm:$0xff]
    %v1199 = vld [vmem:[#allocation2 + $0x1c0] sm:$0xff]
    %v1200 = vld [vmem:[#allocation2 + $0x1c8] sm:$0xff]
    %v1201 = vld [vmem:[#allocation2 + $0x1d0] sm:$0xff]
    %v1202 = vld [vmem:[#allocation2 + $0x1d8] sm:$0xff]
    %v1203 = vld [vmem:[#allocation2 + $0x1e0] sm:$0xff]
    %v1204 = vld [vmem:[#allocation2 + $0x1e8] sm:$0xff]
    %v1205 = vld [vmem:[#allocation2 + $0x1f0] sm:$0xff]
    %v1206 = vld [vmem:[#allocation2 + $0x1f8] sm:$0xff]
    %v1207 = vld [vmem:[#allocation2 + $0x200] sm:$0xff]
    %v1208 = vld [vmem:[#allocation2 + $0x208] sm:$0xff]
    %v1209 = vld [vmem:[#allocation2 + $0x210] sm:$0xff]
    %v1210 = vld [vmem:[#allocation2 + $0x218] sm:$0xff]
    %v1211 = vld [vmem:[#allocation2 + $0x220] sm:$0xff]
    %v1212 = vld [vmem:[#allocation2 + $0x228] sm:$0xff]
    %v1213 = vld [vmem:[#allocation2 + $0x230] sm:$0xff]
    %v1214 = vld [vmem:[#allocation2 + $0x238] sm:$0xff]
    %v1215 = vld [vmem:[#allocation2 + $0x240] sm:$0xff]
    %v1216 = vld [vmem:[#allocation2 + $0x248] sm:$0xff]
    %v1217 = vld [vmem:[#allocation2 + $0x250] sm:$0xff]
    %v1218 = vld [vmem:[#allocation2 + $0x258] sm:$0xff]
    %v1219 = vld [vmem:[#allocation2 + $0x260] sm:$0xff]
    %v1220 = vld [vmem:[#allocation2 + $0x268] sm:$0xff]
    %v1221 = vld [vmem:[#allocation2 + $0x270] sm:$0xff]
    %v1222 = vld [vmem:[#allocation2 + $0x278] sm:$0xff]
    %v1223 = vld [vmem:[#allocation2 + $0x280] sm:$0xff]
    %v1224 = vld [vmem:[#allocation2 + $0x288] sm:$0xff]
    %v1225 = vld [vmem:[#allocation2 + $0x290] sm:$0xff]
    %v1226 = vld [vmem:[#allocation2 + $0x298] sm:$0xff]
    %v1227 = vld [vmem:[#allocation2 + $0x2a0] sm:$0xff]
    %v1228 = vld [vmem:[#allocation2 + $0x2a8] sm:$0xff]
    %v1229 = vld [vmem:[#allocation2 + $0x2b0] sm:$0xff]
    %v1230 = vld [vmem:[#allocation2 + $0x2b8] sm:$0xff]
    %v1231 = vld [vmem:[#allocation2 + $0x2c0] sm:$0xff]
    %v1232 = vld [vmem:[#allocation2 + $0x2c8] sm:$0xff]
    %v1233 = vld [vmem:[#allocation2 + $0x2d0] sm:$0xff]
    %v1234 = vld [vmem:[#allocation2 + $0x2d8] sm:$0xff]
    %v1235 = vld [vmem:[#allocation2 + $0x2e0] sm:$0xff]
    %v1236 = vld [vmem:[#allocation2 + $0x2e8] sm:$0xff]
    %v1237 = vld [vmem:[#allocation2 + $0x2f0] sm:$0xff]
    %v1238 = vld [vmem:[#allocation2 + $0x2f8] sm:$0xff]
    %v1239 = vld [vmem:[#allocation2 + $0x300] sm:$0xff]
    %v1240 = vld [vmem:[#allocation2 + $0x308] sm:$0xff]
    %v1241 = vld [vmem:[#allocation2 + $0x310] sm:$0xff]
    %v1242 = vld [vmem:[#allocation2 + $0x318] sm:$0xff]
    %v1243 = vld [vmem:[#allocation2 + $0x320] sm:$0xff]
    %v1244 = vld [vmem:[#allocation2 + $0x328] sm:$0xff]
    %v1245 = vld [vmem:[#allocation2 + $0x330] sm:$0xff]
    %v1246 = vld [vmem:[#allocation2 + $0x338] sm:$0xff]
    %v1247 = vld [vmem:[#allocation2 + $0x340] sm:$0xff]
    %v1248 = vld [vmem:[#allocation2 + $0x348] sm:$0xff]
    %v1249 = vld [vmem:[#allocation2 + $0x350] sm:$0xff]
    %v1250 = vld [vmem:[#allocation2 + $0x358] sm:$0xff]
    %v1251 = vld [vmem:[#allocation2 + $0x360] sm:$0xff]
    %v1252 = vld [vmem:[#allocation2 + $0x368] sm:$0xff]
    %v1253 = vld [vmem:[#allocation2 + $0x370] sm:$0xff]
    %v1254 = vld [vmem:[#allocation2 + $0x378] sm:$0xff]
    %v1255 = vld [vmem:[#allocation2 + $0x380] sm:$0xff]
    %v1256 = vld [vmem:[#allocation2 + $0x388] sm:$0xff]
    %v1257 = vld [vmem:[#allocation2 + $0x390] sm:$0xff]
    %v1258 = vld [vmem:[#allocation2 + $0x398] sm:$0xff]
    %v1259 = vld [vmem:[#allocation2 + $0x3a0] sm:$0xff]
    %v1260 = vld [vmem:[#allocation2 + $0x3a8] sm:$0xff]
    %v1261 = vld [vmem:[#allocation2 + $0x3b0] sm:$0xff]
    %v1262 = vld [vmem:[#allocation2 + $0x3b8] sm:$0xff]
    %v1263 = vld [vmem:[#allocation2 + $0x3c0] sm:$0xff]
    %v1264 = vld [vmem:[#allocation2 + $0x3c8] sm:$0xff]
    %v1265 = vld [vmem:[#allocation2 + $0x3d0] sm:$0xff]
    %v1266 = vld [vmem:[#allocation2 + $0x3d8] sm:$0xff]
    %v1267 = vld [vmem:[#allocation2 + $0x3e0] sm:$0xff]
    %v1268 = vld [vmem:[#allocation2 + $0x3e8] sm:$0xff]
    %v1269 = vld [vmem:[#allocation2 + $0x3f0] sm:$0xff]
    %v1270 = vld [vmem:[#allocation2 + $0x3f8] sm:$0xff]
    %v1271 = vld [vmem:[#allocation2 + $0x400] sm:$0xff]
    %v1272 = vld [vmem:[#allocation2 + $0x408] sm:$0xff]
    %v1273 = vld [vmem:[#allocation2 + $0x410] sm:$0xff]
    %v1274 = vld [vmem:[#allocation2 + $0x418] sm:$0xff]
    %v1275 = vld [vmem:[#allocation2 + $0x420] sm:$0xff]
    %v1276 = vld [vmem:[#allocation2 + $0x428] sm:$0xff]
    %v1277 = vld [vmem:[#allocation2 + $0x430] sm:$0xff]
    %v1278 = vld [vmem:[#allocation2 + $0x438] sm:$0xff]
    %v1279 = vld [vmem:[#allocation2 + $0x440] sm:$0xff]
    %v1280 = vld [vmem:[#allocation2 + $0x448] sm:$0xff]
    %v1281 = vld [vmem:[#allocation2 + $0x450] sm:$0xff]
    %v1282 = vld [vmem:[#allocation2 + $0x458] sm:$0xff]
    %v1283 = vld [vmem:[#allocation2 + $0x460] sm:$0xff]
    %v1284 = vld [vmem:[#allocation2 + $0x468] sm:$0xff]
    %v1285 = vld [vmem:[#allocation2 + $0x470] sm:$0xff]
    %v1286 = vld [vmem:[#allocation2 + $0x478] sm:$0xff]
    %v1287 = vld [vmem:[#allocation2 + $0x480] sm:$0xff]
    %v1288 = vld [vmem:[#allocation2 + $0x488] sm:$0xff]
    %v1289 = vld [vmem:[#allocation2 + $0x490] sm:$0xff]
    %v1290 = vld [vmem:[#allocation2 + $0x498] sm:$0xff]
    %v1291 = vld [vmem:[#allocation2 + $0x4a0] sm:$0xff]
    %v1292 = vld [vmem:[#allocation2 + $0x4a8] sm:$0xff]
    %v1293 = vld [vmem:[#allocation2 + $0x4b0] sm:$0xff]
    %v1294 = vld [vmem:[#allocation2 + $0x4b8] sm:$0xff]
    %v1295 = vld [vmem:[#allocation2 + $0x4c0] sm:$0xff]
    %v1296 = vld [vmem:[#allocation2 + $0x4c8] sm:$0xff]
    %v1297 = vld [vmem:[#allocation2 + $0x4d0] sm:$0xff]
    %v1298 = vld [vmem:[#allocation2 + $0x4d8] sm:$0xff]
    %v1299 = vld [vmem:[#allocation2 + $0x4e0] sm:$0xff]
    %v1300 = vld [vmem:[#allocation2 + $0x4e8] sm:$0xff]
    %v1301 = vld [vmem:[#allocation2 + $0x4f0] sm:$0xff]
    %v1302 = vld [vmem:[#allocation2 + $0x4f8] sm:$0xff]
    %v1303 = vld [vmem:[#allocation2 + $0x500] sm:$0xff]
    %v1304 = vld [vmem:[#allocation2 + $0x508] sm:$0xff]
    %v1305 = vld [vmem:[#allocation2 + $0x510] sm:$0xff]
    %v1306 = vld [vmem:[#allocation2 + $0x518] sm:$0xff]
    %v1307 = vld [vmem:[#allocation2 + $0x520] sm:$0xff]
    %v1308 = vld [vmem:[#allocation2 + $0x528] sm:$0xff]
    %v1309 = vld [vmem:[#allocation2 + $0x530] sm:$0xff]
    %v1310 = vld [vmem:[#allocation2 + $0x538] sm:$0xff]
    %v1311 = vld [vmem:[#allocation2 + $0x540] sm:$0xff]
    %v1312 = vld [vmem:[#allocation2 + $0x548] sm:$0xff]
    %v1313 = vld [vmem:[#allocation2 + $0x550] sm:$0xff]
    %v1314 = vld [vmem:[#allocation2 + $0x558] sm:$0xff]
    %v1315 = vld [vmem:[#allocation2 + $0x560] sm:$0xff]
    %v1316 = vld [vmem:[#allocation2 + $0x568] sm:$0xff]
    %v1317 = vld [vmem:[#allocation2 + $0x570] sm:$0xff]
    %v1318 = vld [vmem:[#allocation2 + $0x578] sm:$0xff]
    %v1319 = vld [vmem:[#allocation2 + $0x580] sm:$0xff]
    %v1320 = vld [vmem:[#allocation2 + $0x588] sm:$0xff]
    %v1321 = vld [vmem:[#allocation2 + $0x590] sm:$0xff]
    %v1322 = vld [vmem:[#allocation2 + $0x598] sm:$0xff]
    %v1323 = vld [vmem:[#allocation2 + $0x5a0] sm:$0xff]
    %v1324 = vld [vmem:[#allocation2 + $0x5a8] sm:$0xff]
    %v1325 = vld [vmem:[#allocation2 + $0x5b0] sm:$0xff]
    %v1326 = vld [vmem:[#allocation2 + $0x5b8] sm:$0xff]
    %v1327 = vld [vmem:[#allocation2 + $0x5c0] sm:$0xff]
    %v1328 = vld [vmem:[#allocation2 + $0x5c8] sm:$0xff]
    %v1329 = vld [vmem:[#allocation2 + $0x5d0] sm:$0xff]
    %v1330 = vld [vmem:[#allocation2 + $0x5d8] sm:$0xff]
    %v1331 = vld [vmem:[#allocation2 + $0x5e0] sm:$0xff]
    %v1332 = vld [vmem:[#allocation2 + $0x5e8] sm:$0xff]
    %v1333 = vld [vmem:[#allocation2 + $0x5f0] sm:$0xff]
    %v1334 = vld [vmem:[#allocation2 + $0x5f8] sm:$0xff]
    %v1527 = vunpack.c.l.b16 %v1143
    %v1528 = vunpack.c.h.b16 %v1143
    %v1529 = vunpack.c.l.b16 %v1144
    %v1530 = vunpack.c.h.b16 %v1144
    %v1531 = vunpack.c.l.b16 %v1145
    %v1532 = vunpack.c.h.b16 %v1145
    %v1533 = vunpack.c.l.b16 %v1146
    %v1534 = vunpack.c.h.b16 %v1146
    %v1535 = vunpack.c.l.b16 %v1147
    %v1536 = vunpack.c.h.b16 %v1147
    %v1537 = vunpack.c.l.b16 %v1148
    %v1538 = vunpack.c.h.b16 %v1148
    %v1539 = vunpack.c.l.b16 %v1149
    %v1540 = vunpack.c.h.b16 %v1149
    %v1541 = vunpack.c.l.b16 %v1150
    %v1542 = vunpack.c.h.b16 %v1150
    %v1543 = vunpack.c.l.b16 %v1151
    %v1544 = vunpack.c.h.b16 %v1151
    %v1545 = vunpack.c.l.b16 %v1152
    %v1546 = vunpack.c.h.b16 %v1152
    %v1547 = vunpack.c.l.b16 %v1153
    %v1548 = vunpack.c.h.b16 %v1153
    %v1549 = vunpack.c.l.b16 %v1154
    %v1550 = vunpack.c.h.b16 %v1154
    %v1551 = vunpack.c.l.b16 %v1155
    %v1552 = vunpack.c.h.b16 %v1155
    %v1553 = vunpack.c.l.b16 %v1156
    %v1554 = vunpack.c.h.b16 %v1156
    %v1555 = vunpack.c.l.b16 %v1157
    %v1556 = vunpack.c.h.b16 %v1157
    %v1557 = vunpack.c.l.b16 %v1158
    %v1558 = vunpack.c.h.b16 %v1158
    %v1559 = vunpack.c.l.b16 %v1159
    %v1560 = vunpack.c.h.b16 %v1159
    %v1561 = vunpack.c.l.b16 %v1160
    %v1562 = vunpack.c.h.b16 %v1160
    %v1563 = vunpack.c.l.b16 %v1161
    %v1564 = vunpack.c.h.b16 %v1161
    %v1565 = vunpack.c.l.b16 %v1162
    %v1566 = vunpack.c.h.b16 %v1162
    %v1567 = vunpack.c.l.b16 %v1163
    %v1568 = vunpack.c.h.b16 %v1163
    %v1569 = vunpack.c.l.b16 %v1164
    %v1570 = vunpack.c.h.b16 %v1164
    %v1571 = vunpack.c.l.b16 %v1165
    %v1572 = vunpack.c.h.b16 %v1165
    %v1573 = vunpack.c.l.b16 %v1166
    %v1574 = vunpack.c.h.b16 %v1166
    %v1575 = vunpack.c.l.b16 %v1167
    %v1576 = vunpack.c.h.b16 %v1167
    %v1577 = vunpack.c.l.b16 %v1168
    %v1578 = vunpack.c.h.b16 %v1168
    %v1579 = vunpack.c.l.b16 %v1169
    %v1580 = vunpack.c.h.b16 %v1169
    %v1581 = vunpack.c.l.b16 %v1170
    %v1582 = vunpack.c.h.b16 %v1170
    %v1583 = vunpack.c.l.b16 %v1171
    %v1584 = vunpack.c.h.b16 %v1171
    %v1585 = vunpack.c.l.b16 %v1172
    %v1586 = vunpack.c.h.b16 %v1172
    %v1587 = vunpack.c.l.b16 %v1173
    %v1588 = vunpack.c.h.b16 %v1173
    %v1589 = vunpack.c.l.b16 %v1174
    %v1590 = vunpack.c.h.b16 %v1174
    %v1591 = vunpack.c.l.b16 %v1175
    %v1592 = vunpack.c.h.b16 %v1175
    %v1593 = vunpack.c.l.b16 %v1176
    %v1594 = vunpack.c.h.b16 %v1176
    %v1595 = vunpack.c.l.b16 %v1177
    %v1596 = vunpack.c.h.b16 %v1177
    %v1597 = vunpack.c.l.b16 %v1178
    %v1598 = vunpack.c.h.b16 %v1178
    %v1599 = vunpack.c.l.b16 %v1179
    %v1600 = vunpack.c.h.b16 %v1179
    %v1601 = vunpack.c.l.b16 %v1180
    %v1602 = vunpack.c.h.b16 %v1180
    %v1603 = vunpack.c.l.b16 %v1181
    %v1604 = vunpack.c.h.b16 %v1181
    %v1605 = vunpack.c.l.b16 %v1182
    %v1606 = vunpack.c.h.b16 %v1182
    %v1607 = vunpack.c.l.b16 %v1183
    %v1608 = vunpack.c.h.b16 %v1183
    %v1609 = vunpack.c.l.b16 %v1184
    %v1610 = vunpack.c.h.b16 %v1184
    %v1611 = vunpack.c.l.b16 %v1185
    %v1612 = vunpack.c.h.b16 %v1185
    %v1613 = vunpack.c.l.b16 %v1186
    %v1614 = vunpack.c.h.b16 %v1186
    %v1615 = vunpack.c.l.b16 %v1187
    %v1616 = vunpack.c.h.b16 %v1187
    %v1617 = vunpack.c.l.b16 %v1188
    %v1618 = vunpack.c.h.b16 %v1188
    %v1619 = vunpack.c.l.b16 %v1189
    %v1620 = vunpack.c.h.b16 %v1189
    %v1621 = vunpack.c.l.b16 %v1190
    %v1622 = vunpack.c.h.b16 %v1190
    %v1623 = vunpack.c.l.b16 %v1191
    %v1624 = vunpack.c.h.b16 %v1191
    %v1625 = vunpack.c.l.b16 %v1192
    %v1626 = vunpack.c.h.b16 %v1192
    %v1627 = vunpack.c.l.b16 %v1193
    %v1628 = vunpack.c.h.b16 %v1193
    %v1629 = vunpack.c.l.b16 %v1194
    %v1630 = vunpack.c.h.b16 %v1194
    %v1631 = vunpack.c.l.b16 %v1195
    %v1632 = vunpack.c.h.b16 %v1195
    %v1633 = vunpack.c.l.b16 %v1196
    %v1634 = vunpack.c.h.b16 %v1196
    %v1635 = vunpack.c.l.b16 %v1197
    %v1636 = vunpack.c.h.b16 %v1197
    %v1637 = vunpack.c.l.b16 %v1198
    %v1638 = vunpack.c.h.b16 %v1198
    %v1639 = vunpack.c.l.b16 %v1199
    %v1640 = vunpack.c.h.b16 %v1199
    %v1641 = vunpack.c.l.b16 %v1200
    %v1642 = vunpack.c.h.b16 %v1200
    %v1643 = vunpack.c.l.b16 %v1201
    %v1644 = vunpack.c.h.b16 %v1201
    %v1645 = vunpack.c.l.b16 %v1202
    %v1646 = vunpack.c.h.b16 %v1202
    %v1647 = vunpack.c.l.b16 %v1203
    %v1648 = vunpack.c.h.b16 %v1203
    %v1649 = vunpack.c.l.b16 %v1204
    %v1650 = vunpack.c.h.b16 %v1204
    %v1651 = vunpack.c.l.b16 %v1205
    %v1652 = vunpack.c.h.b16 %v1205
    %v1653 = vunpack.c.l.b16 %v1206
    %v1654 = vunpack.c.h.b16 %v1206
    %v1655 = vunpack.c.l.b16 %v1207
    %v1656 = vunpack.c.h.b16 %v1207
    %v1657 = vunpack.c.l.b16 %v1208
    %v1658 = vunpack.c.h.b16 %v1208
    %v1659 = vunpack.c.l.b16 %v1209
    %v1660 = vunpack.c.h.b16 %v1209
    %v1661 = vunpack.c.l.b16 %v1210
    %v1662 = vunpack.c.h.b16 %v1210
    %v1663 = vunpack.c.l.b16 %v1211
    %v1664 = vunpack.c.h.b16 %v1211
    %v1665 = vunpack.c.l.b16 %v1212
    %v1666 = vunpack.c.h.b16 %v1212
    %v1667 = vunpack.c.l.b16 %v1213
    %v1668 = vunpack.c.h.b16 %v1213
    %v1669 = vunpack.c.l.b16 %v1214
    %v1670 = vunpack.c.h.b16 %v1214
    %v1671 = vunpack.c.l.b16 %v1215
    %v1672 = vunpack.c.h.b16 %v1215
    %v1673 = vunpack.c.l.b16 %v1216
    %v1674 = vunpack.c.h.b16 %v1216
    %v1675 = vunpack.c.l.b16 %v1217
    %v1676 = vunpack.c.h.b16 %v1217
    %v1677 = vunpack.c.l.b16 %v1218
    %v1678 = vunpack.c.h.b16 %v1218
    %v1679 = vunpack.c.l.b16 %v1219
    %v1680 = vunpack.c.h.b16 %v1219
    %v1681 = vunpack.c.l.b16 %v1220
    %v1682 = vunpack.c.h.b16 %v1220
    %v1683 = vunpack.c.l.b16 %v1221
    %v1684 = vunpack.c.h.b16 %v1221
    %v1685 = vunpack.c.l.b16 %v1222
    %v1686 = vunpack.c.h.b16 %v1222
    %v1687 = vunpack.c.l.b16 %v1223
    %v1688 = vunpack.c.h.b16 %v1223
    %v1689 = vunpack.c.l.b16 %v1224
    %v1690 = vunpack.c.h.b16 %v1224
    %v1691 = vunpack.c.l.b16 %v1225
    %v1692 = vunpack.c.h.b16 %v1225
    %v1693 = vunpack.c.l.b16 %v1226
    %v1694 = vunpack.c.h.b16 %v1226
    %v1695 = vunpack.c.l.b16 %v1227
    %v1696 = vunpack.c.h.b16 %v1227
    %v1697 = vunpack.c.l.b16 %v1228
    %v1698 = vunpack.c.h.b16 %v1228
    %v1699 = vunpack.c.l.b16 %v1229
    %v1700 = vunpack.c.h.b16 %v1229
    %v1701 = vunpack.c.l.b16 %v1230
    %v1702 = vunpack.c.h.b16 %v1230
    %v1703 = vunpack.c.l.b16 %v1231
    %v1704 = vunpack.c.h.b16 %v1231
    %v1705 = vunpack.c.l.b16 %v1232
    %v1706 = vunpack.c.h.b16 %v1232
    %v1707 = vunpack.c.l.b16 %v1233
    %v1708 = vunpack.c.h.b16 %v1233
    %v1709 = vunpack.c.l.b16 %v1234
    %v1710 = vunpack.c.h.b16 %v1234
    %v1711 = vunpack.c.l.b16 %v1235
    %v1712 = vunpack.c.h.b16 %v1235
    %v1713 = vunpack.c.l.b16 %v1236
    %v1714 = vunpack.c.h.b16 %v1236
    %v1715 = vunpack.c.l.b16 %v1237
    %v1716 = vunpack.c.h.b16 %v1237
    %v1717 = vunpack.c.l.b16 %v1238
    %v1718 = vunpack.c.h.b16 %v1238
    %v1719 = vunpack.c.l.b16 %v1239
    %v1720 = vunpack.c.h.b16 %v1239
    %v1721 = vunpack.c.l.b16 %v1240
    %v1722 = vunpack.c.h.b16 %v1240
    %v1723 = vunpack.c.l.b16 %v1241
    %v1724 = vunpack.c.h.b16 %v1241
    %v1725 = vunpack.c.l.b16 %v1242
    %v1726 = vunpack.c.h.b16 %v1242
    %v1727 = vunpack.c.l.b16 %v1243
    %v1728 = vunpack.c.h.b16 %v1243
    %v1729 = vunpack.c.l.b16 %v1244
    %v1730 = vunpack.c.h.b16 %v1244
    %v1731 = vunpack.c.l.b16 %v1245
    %v1732 = vunpack.c.h.b16 %v1245
    %v1733 = vunpack.c.l.b16 %v1246
    %v1734 = vunpack.c.h.b16 %v1246
    %v1735 = vunpack.c.l.b16 %v1247
    %v1736 = vunpack.c.h.b16 %v1247
    %v1737 = vunpack.c.l.b16 %v1248
    %v1738 = vunpack.c.h.b16 %v1248
    %v1739 = vunpack.c.l.b16 %v1249
    %v1740 = vunpack.c.h.b16 %v1249
    %v1741 = vunpack.c.l.b16 %v1250
    %v1742 = vunpack.c.h.b16 %v1250
    %v1743 = vunpack.c.l.b16 %v1251
    %v1744 = vunpack.c.h.b16 %v1251
    %v1745 = vunpack.c.l.b16 %v1252
    %v1746 = vunpack.c.h.b16 %v1252
    %v1747 = vunpack.c.l.b16 %v1253
    %v1748 = vunpack.c.h.b16 %v1253
    %v1749 = vunpack.c.l.b16 %v1254
    %v1750 = vunpack.c.h.b16 %v1254
    %v1751 = vunpack.c.l.b16 %v1255
    %v1752 = vunpack.c.h.b16 %v1255
    %v1753 = vunpack.c.l.b16 %v1256
    %v1754 = vunpack.c.h.b16 %v1256
    %v1755 = vunpack.c.l.b16 %v1257
    %v1756 = vunpack.c.h.b16 %v1257
    %v1757 = vunpack.c.l.b16 %v1258
    %v1758 = vunpack.c.h.b16 %v1258
    %v1759 = vunpack.c.l.b16 %v1259
    %v1760 = vunpack.c.h.b16 %v1259
    %v1761 = vunpack.c.l.b16 %v1260
    %v1762 = vunpack.c.h.b16 %v1260
    %v1763 = vunpack.c.l.b16 %v1261
    %v1764 = vunpack.c.h.b16 %v1261
    %v1765 = vunpack.c.l.b16 %v1262
    %v1766 = vunpack.c.h.b16 %v1262
    %v1767 = vunpack.c.l.b16 %v1263
    %v1768 = vunpack.c.h.b16 %v1263
    %v1769 = vunpack.c.l.b16 %v1264
    %v1770 = vunpack.c.h.b16 %v1264
    %v1771 = vunpack.c.l.b16 %v1265
    %v1772 = vunpack.c.h.b16 %v1265
    %v1773 = vunpack.c.l.b16 %v1266
    %v1774 = vunpack.c.h.b16 %v1266
    %v1775 = vunpack.c.l.b16 %v1267
    %v1776 = vunpack.c.h.b16 %v1267
    %v1777 = vunpack.c.l.b16 %v1268
    %v1778 = vunpack.c.h.b16 %v1268
    %v1779 = vunpack.c.l.b16 %v1269
    %v1780 = vunpack.c.h.b16 %v1269
    %v1781 = vunpack.c.l.b16 %v1270
    %v1782 = vunpack.c.h.b16 %v1270
    %v1783 = vunpack.c.l.b16 %v1271
    %v1784 = vunpack.c.h.b16 %v1271
    %v1785 = vunpack.c.l.b16 %v1272
    %v1786 = vunpack.c.h.b16 %v1272
    %v1787 = vunpack.c.l.b16 %v1273
    %v1788 = vunpack.c.h.b16 %v1273
    %v1789 = vunpack.c.l.b16 %v1274
    %v1790 = vunpack.c.h.b16 %v1274
    %v1791 = vunpack.c.l.b16 %v1275
    %v1792 = vunpack.c.h.b16 %v1275
    %v1793 = vunpack.c.l.b16 %v1276
    %v1794 = vunpack.c.h.b16 %v1276
    %v1795 = vunpack.c.l.b16 %v1277
    %v1796 = vunpack.c.h.b16 %v1277
    %v1797 = vunpack.c.l.b16 %v1278
    %v1798 = vunpack.c.h.b16 %v1278
    %v1799 = vunpack.c.l.b16 %v1279
    %v1800 = vunpack.c.h.b16 %v1279
    %v1801 = vunpack.c.l.b16 %v1280
    %v1802 = vunpack.c.h.b16 %v1280
    %v1803 = vunpack.c.l.b16 %v1281
    %v1804 = vunpack.c.h.b16 %v1281
    %v1805 = vunpack.c.l.b16 %v1282
    %v1806 = vunpack.c.h.b16 %v1282
    %v1807 = vunpack.c.l.b16 %v1283
    %v1808 = vunpack.c.h.b16 %v1283
    %v1809 = vunpack.c.l.b16 %v1284
    %v1810 = vunpack.c.h.b16 %v1284
    %v1811 = vunpack.c.l.b16 %v1285
    %v1812 = vunpack.c.h.b16 %v1285
    %v1813 = vunpack.c.l.b16 %v1286
    %v1814 = vunpack.c.h.b16 %v1286
    %v1815 = vunpack.c.l.b16 %v1287
    %v1816 = vunpack.c.h.b16 %v1287
    %v1817 = vunpack.c.l.b16 %v1288
    %v1818 = vunpack.c.h.b16 %v1288
    %v1819 = vunpack.c.l.b16 %v1289
    %v1820 = vunpack.c.h.b16 %v1289
    %v1821 = vunpack.c.l.b16 %v1290
    %v1822 = vunpack.c.h.b16 %v1290
    %v1823 = vunpack.c.l.b16 %v1291
    %v1824 = vunpack.c.h.b16 %v1291
    %v1825 = vunpack.c.l.b16 %v1292
    %v1826 = vunpack.c.h.b16 %v1292
    %v1827 = vunpack.c.l.b16 %v1293
    %v1828 = vunpack.c.h.b16 %v1293
    %v1829 = vunpack.c.l.b16 %v1294
    %v1830 = vunpack.c.h.b16 %v1294
    %v1831 = vunpack.c.l.b16 %v1295
    %v1832 = vunpack.c.h.b16 %v1295
    %v1833 = vunpack.c.l.b16 %v1296
    %v1834 = vunpack.c.h.b16 %v1296
    %v1835 = vunpack.c.l.b16 %v1297
    %v1836 = vunpack.c.h.b16 %v1297
    %v1837 = vunpack.c.l.b16 %v1298
    %v1838 = vunpack.c.h.b16 %v1298
    %v1839 = vunpack.c.l.b16 %v1299
    %v1840 = vunpack.c.h.b16 %v1299
    %v1841 = vunpack.c.l.b16 %v1300
    %v1842 = vunpack.c.h.b16 %v1300
    %v1843 = vunpack.c.l.b16 %v1301
    %v1844 = vunpack.c.h.b16 %v1301
    %v1845 = vunpack.c.l.b16 %v1302
    %v1846 = vunpack.c.h.b16 %v1302
    %v1847 = vunpack.c.l.b16 %v1303
    %v1848 = vunpack.c.h.b16 %v1303
    %v1849 = vunpack.c.l.b16 %v1304
    %v1850 = vunpack.c.h.b16 %v1304
    %v1851 = vunpack.c.l.b16 %v1305
    %v1852 = vunpack.c.h.b16 %v1305
    %v1853 = vunpack.c.l.b16 %v1306
    %v1854 = vunpack.c.h.b16 %v1306
    %v1855 = vunpack.c.l.b16 %v1307
    %v1856 = vunpack.c.h.b16 %v1307
    %v1857 = vunpack.c.l.b16 %v1308
    %v1858 = vunpack.c.h.b16 %v1308
    %v1859 = vunpack.c.l.b16 %v1309
    %v1860 = vunpack.c.h.b16 %v1309
    %v1861 = vunpack.c.l.b16 %v1310
    %v1862 = vunpack.c.h.b16 %v1310
    %v1863 = vunpack.c.l.b16 %v1311
    %v1864 = vunpack.c.h.b16 %v1311
    %v1865 = vunpack.c.l.b16 %v1312
    %v1866 = vunpack.c.h.b16 %v1312
    %v1867 = vunpack.c.l.b16 %v1313
    %v1868 = vunpack.c.h.b16 %v1313
    %v1869 = vunpack.c.l.b16 %v1314
    %v1870 = vunpack.c.h.b16 %v1314
    %v1871 = vunpack.c.l.b16 %v1315
    %v1872 = vunpack.c.h.b16 %v1315
    %v1873 = vunpack.c.l.b16 %v1316
    %v1874 = vunpack.c.h.b16 %v1316
    %v1875 = vunpack.c.l.b16 %v1317
    %v1876 = vunpack.c.h.b16 %v1317
    %v1877 = vunpack.c.l.b16 %v1318
    %v1878 = vunpack.c.h.b16 %v1318
    %v1879 = vunpack.c.l.b16 %v1319
    %v1880 = vunpack.c.h.b16 %v1319
    %v1881 = vunpack.c.l.b16 %v1320
    %v1882 = vunpack.c.h.b16 %v1320
    %v1883 = vunpack.c.l.b16 %v1321
    %v1884 = vunpack.c.h.b16 %v1321
    %v1885 = vunpack.c.l.b16 %v1322
    %v1886 = vunpack.c.h.b16 %v1322
    %v1887 = vunpack.c.l.b16 %v1323
    %v1888 = vunpack.c.h.b16 %v1323
    %v1889 = vunpack.c.l.b16 %v1324
    %v1890 = vunpack.c.h.b16 %v1324
    %v1891 = vunpack.c.l.b16 %v1325
    %v1892 = vunpack.c.h.b16 %v1325
    %v1893 = vunpack.c.l.b16 %v1326
    %v1894 = vunpack.c.h.b16 %v1326
    %v1895 = vunpack.c.l.b16 %v1327
    %v1896 = vunpack.c.h.b16 %v1327
    %v1897 = vunpack.c.l.b16 %v1328
    %v1898 = vunpack.c.h.b16 %v1328
    %v1899 = vunpack.c.l.b16 %v1329
    %v1900 = vunpack.c.h.b16 %v1329
    %v1901 = vunpack.c.l.b16 %v1330
    %v1902 = vunpack.c.h.b16 %v1330
    %v1903 = vunpack.c.l.b16 %v1331
    %v1904 = vunpack.c.h.b16 %v1331
    %v1905 = vunpack.c.l.b16 %v1332
    %v1906 = vunpack.c.h.b16 %v1332
    %v1907 = vunpack.c.l.b16 %v1333
    %v1908 = vunpack.c.h.b16 %v1333
    %v1909 = vunpack.c.l.b16 %v1334
    %v1910 = vunpack.c.h.b16 %v1334
    %v1911 = vpack.c.b16 %v1531, %v1527
    %v1912 = vpack.c.b16 %v1532, %v1528
    %v1913 = vpack.c.b16 %v1533, %v1529
    %v1914 = vpack.c.b16 %v1534, %v1530
    %v1915 = vpack.c.b16 %v1539, %v1535
    %v1916 = vpack.c.b16 %v1540, %v1536
    %v1917 = vpack.c.b16 %v1541, %v1537
    %v1918 = vpack.c.b16 %v1542, %v1538
    %v1919 = vpack.c.b16 %v1547, %v1543
    %v1920 = vpack.c.b16 %v1548, %v1544
    %v1921 = vpack.c.b16 %v1549, %v1545
    %v1922 = vpack.c.b16 %v1550, %v1546
    %v1923 = vpack.c.b16 %v1555, %v1551
    %v1924 = vpack.c.b16 %v1556, %v1552
    %v1925 = vpack.c.b16 %v1557, %v1553
    %v1926 = vpack.c.b16 %v1558, %v1554
    %v1927 = vpack.c.b16 %v1563, %v1559
    %v1928 = vpack.c.b16 %v1564, %v1560
    %v1929 = vpack.c.b16 %v1565, %v1561
    %v1930 = vpack.c.b16 %v1566, %v1562
    %v1931 = vpack.c.b16 %v1571, %v1567
    %v1932 = vpack.c.b16 %v1572, %v1568
    %v1933 = vpack.c.b16 %v1573, %v1569
    %v1934 = vpack.c.b16 %v1574, %v1570
    %v1935 = vpack.c.b16 %v1579, %v1575
    %v1936 = vpack.c.b16 %v1580, %v1576
    %v1937 = vpack.c.b16 %v1581, %v1577
    %v1938 = vpack.c.b16 %v1582, %v1578
    %v1939 = vpack.c.b16 %v1587, %v1583
    %v1940 = vpack.c.b16 %v1588, %v1584
    %v1941 = vpack.c.b16 %v1589, %v1585
    %v1942 = vpack.c.b16 %v1590, %v1586
    %v1943 = vpack.c.b16 %v1595, %v1591
    %v1944 = vpack.c.b16 %v1596, %v1592
    %v1945 = vpack.c.b16 %v1597, %v1593
    %v1946 = vpack.c.b16 %v1598, %v1594
    %v1947 = vpack.c.b16 %v1603, %v1599
    %v1948 = vpack.c.b16 %v1604, %v1600
    %v1949 = vpack.c.b16 %v1605, %v1601
    %v1950 = vpack.c.b16 %v1606, %v1602
    %v1951 = vpack.c.b16 %v1611, %v1607
    %v1952 = vpack.c.b16 %v1612, %v1608
    %v1953 = vpack.c.b16 %v1613, %v1609
    %v1954 = vpack.c.b16 %v1614, %v1610
    %v1955 = vpack.c.b16 %v1619, %v1615
    %v1956 = vpack.c.b16 %v1620, %v1616
    %v1957 = vpack.c.b16 %v1621, %v1617
    %v1958 = vpack.c.b16 %v1622, %v1618
    %v1959 = vpack.c.b16 %v1627, %v1623
    %v1960 = vpack.c.b16 %v1628, %v1624
    %v1961 = vpack.c.b16 %v1629, %v1625
    %v1962 = vpack.c.b16 %v1630, %v1626
    %v1963 = vpack.c.b16 %v1635, %v1631
    %v1964 = vpack.c.b16 %v1636, %v1632
    %v1965 = vpack.c.b16 %v1637, %v1633
    %v1966 = vpack.c.b16 %v1638, %v1634
    %v1967 = vpack.c.b16 %v1643, %v1639
    %v1968 = vpack.c.b16 %v1644, %v1640
    %v1969 = vpack.c.b16 %v1645, %v1641
    %v1970 = vpack.c.b16 %v1646, %v1642
    %v1971 = vpack.c.b16 %v1651, %v1647
    %v1972 = vpack.c.b16 %v1652, %v1648
    %v1973 = vpack.c.b16 %v1653, %v1649
    %v1974 = vpack.c.b16 %v1654, %v1650
    %v1975 = vpack.c.b16 %v1659, %v1655
    %v1976 = vpack.c.b16 %v1660, %v1656
    %v1977 = vpack.c.b16 %v1661, %v1657
    %v1978 = vpack.c.b16 %v1662, %v1658
    %v1979 = vpack.c.b16 %v1667, %v1663
    %v1980 = vpack.c.b16 %v1668, %v1664
    %v1981 = vpack.c.b16 %v1669, %v1665
    %v1982 = vpack.c.b16 %v1670, %v1666
    %v1983 = vpack.c.b16 %v1675, %v1671
    %v1984 = vpack.c.b16 %v1676, %v1672
    %v1985 = vpack.c.b16 %v1677, %v1673
    %v1986 = vpack.c.b16 %v1678, %v1674
    %v1987 = vpack.c.b16 %v1683, %v1679
    %v1988 = vpack.c.b16 %v1684, %v1680
    %v1989 = vpack.c.b16 %v1685, %v1681
    %v1990 = vpack.c.b16 %v1686, %v1682
    %v1991 = vpack.c.b16 %v1691, %v1687
    %v1992 = vpack.c.b16 %v1692, %v1688
    %v1993 = vpack.c.b16 %v1693, %v1689
    %v1994 = vpack.c.b16 %v1694, %v1690
    %v1995 = vpack.c.b16 %v1699, %v1695
    %v1996 = vpack.c.b16 %v1700, %v1696
    %v1997 = vpack.c.b16 %v1701, %v1697
    %v1998 = vpack.c.b16 %v1702, %v1698
    %v1999 = vpack.c.b16 %v1707, %v1703
    %v2000 = vpack.c.b16 %v1708, %v1704
    %v2001 = vpack.c.b16 %v1709, %v1705
    %v2002 = vpack.c.b16 %v1710, %v1706
    %v2003 = vpack.c.b16 %v1715, %v1711
    %v2004 = vpack.c.b16 %v1716, %v1712
    %v2005 = vpack.c.b16 %v1717, %v1713
    %v2006 = vpack.c.b16 %v1718, %v1714
    %v2007 = vpack.c.b16 %v1723, %v1719
    %v2008 = vpack.c.b16 %v1724, %v1720
    %v2009 = vpack.c.b16 %v1725, %v1721
    %v2010 = vpack.c.b16 %v1726, %v1722
    %v2011 = vpack.c.b16 %v1731, %v1727
    %v2012 = vpack.c.b16 %v1732, %v1728
    %v2013 = vpack.c.b16 %v1733, %v1729
    %v2014 = vpack.c.b16 %v1734, %v1730
    %v2015 = vpack.c.b16 %v1739, %v1735
    %v2016 = vpack.c.b16 %v1740, %v1736
    %v2017 = vpack.c.b16 %v1741, %v1737
    %v2018 = vpack.c.b16 %v1742, %v1738
    %v2019 = vpack.c.b16 %v1747, %v1743
    %v2020 = vpack.c.b16 %v1748, %v1744
    %v2021 = vpack.c.b16 %v1749, %v1745
    %v2022 = vpack.c.b16 %v1750, %v1746
    %v2023 = vpack.c.b16 %v1755, %v1751
    %v2024 = vpack.c.b16 %v1756, %v1752
    %v2025 = vpack.c.b16 %v1757, %v1753
    %v2026 = vpack.c.b16 %v1758, %v1754
    %v2027 = vpack.c.b16 %v1763, %v1759
    %v2028 = vpack.c.b16 %v1764, %v1760
    %v2029 = vpack.c.b16 %v1765, %v1761
    %v2030 = vpack.c.b16 %v1766, %v1762
    %v2031 = vpack.c.b16 %v1771, %v1767
    %v2032 = vpack.c.b16 %v1772, %v1768
    %v2033 = vpack.c.b16 %v1773, %v1769
    %v2034 = vpack.c.b16 %v1774, %v1770
    %v2035 = vpack.c.b16 %v1779, %v1775
    %v2036 = vpack.c.b16 %v1780, %v1776
    %v2037 = vpack.c.b16 %v1781, %v1777
    %v2038 = vpack.c.b16 %v1782, %v1778
    %v2039 = vpack.c.b16 %v1787, %v1783
    %v2040 = vpack.c.b16 %v1788, %v1784
    %v2041 = vpack.c.b16 %v1789, %v1785
    %v2042 = vpack.c.b16 %v1790, %v1786
    %v2043 = vpack.c.b16 %v1795, %v1791
    %v2044 = vpack.c.b16 %v1796, %v1792
    %v2045 = vpack.c.b16 %v1797, %v1793
    %v2046 = vpack.c.b16 %v1798, %v1794
    %v2047 = vpack.c.b16 %v1803, %v1799
    %v2048 = vpack.c.b16 %v1804, %v1800
    %v2049 = vpack.c.b16 %v1805, %v1801
    %v2050 = vpack.c.b16 %v1806, %v1802
    %v2051 = vpack.c.b16 %v1811, %v1807
    %v2052 = vpack.c.b16 %v1812, %v1808
    %v2053 = vpack.c.b16 %v1813, %v1809
    %v2054 = vpack.c.b16 %v1814, %v1810
    %v2055 = vpack.c.b16 %v1819, %v1815
    %v2056 = vpack.c.b16 %v1820, %v1816
    %v2057 = vpack.c.b16 %v1821, %v1817
    %v2058 = vpack.c.b16 %v1822, %v1818
    %v2059 = vpack.c.b16 %v1827, %v1823
    %v2060 = vpack.c.b16 %v1828, %v1824
    %v2061 = vpack.c.b16 %v1829, %v1825
    %v2062 = vpack.c.b16 %v1830, %v1826
    %v2063 = vpack.c.b16 %v1835, %v1831
    %v2064 = vpack.c.b16 %v1836, %v1832
    %v2065 = vpack.c.b16 %v1837, %v1833
    %v2066 = vpack.c.b16 %v1838, %v1834
    %v2067 = vpack.c.b16 %v1843, %v1839
    %v2068 = vpack.c.b16 %v1844, %v1840
    %v2069 = vpack.c.b16 %v1845, %v1841
    %v2070 = vpack.c.b16 %v1846, %v1842
    %v2071 = vpack.c.b16 %v1851, %v1847
    %v2072 = vpack.c.b16 %v1852, %v1848
    %v2073 = vpack.c.b16 %v1853, %v1849
    %v2074 = vpack.c.b16 %v1854, %v1850
    %v2075 = vpack.c.b16 %v1859, %v1855
    %v2076 = vpack.c.b16 %v1860, %v1856
    %v2077 = vpack.c.b16 %v1861, %v1857
    %v2078 = vpack.c.b16 %v1862, %v1858
    %v2079 = vpack.c.b16 %v1867, %v1863
    %v2080 = vpack.c.b16 %v1868, %v1864
    %v2081 = vpack.c.b16 %v1869, %v1865
    %v2082 = vpack.c.b16 %v1870, %v1866
    %v2083 = vpack.c.b16 %v1875, %v1871
    %v2084 = vpack.c.b16 %v1876, %v1872
    %v2085 = vpack.c.b16 %v1877, %v1873
    %v2086 = vpack.c.b16 %v1878, %v1874
    %v2087 = vpack.c.b16 %v1883, %v1879
    %v2088 = vpack.c.b16 %v1884, %v1880
    %v2089 = vpack.c.b16 %v1885, %v1881
    %v2090 = vpack.c.b16 %v1886, %v1882
    %v2091 = vpack.c.b16 %v1891, %v1887
    %v2092 = vpack.c.b16 %v1892, %v1888
    %v2093 = vpack.c.b16 %v1893, %v1889
    %v2094 = vpack.c.b16 %v1894, %v1890
    %v2095 = vpack.c.b16 %v1899, %v1895
    %v2096 = vpack.c.b16 %v1900, %v1896
    %v2097 = vpack.c.b16 %v1901, %v1897
    %v2098 = vpack.c.b16 %v1902, %v1898
    %v2099 = vpack.c.b16 %v1907, %v1903
    %v2100 = vpack.c.b16 %v1908, %v1904
    %v2101 = vpack.c.b16 %v1909, %v1905
    %v2102 = vpack.c.b16 %v1910, %v1906
    %2295 = vmatpush.bf16.msra.mxu0 %v1939
    %2296 = vmatpush.bf16.msra.mxu0 %v1935
    %2297 = vmatpush.bf16.msra.mxu0 %v1931
    %2298 = vmatpush.bf16.msra.mxu0 %v1927
    %2299 = vmatpush.bf16.msra.mxu0 %v1923
    %2300 = vmatpush.bf16.msra.mxu0 %v1919
    %2301 = vmatpush.bf16.msra.mxu0 %v1915
    %2302 = vmatpush.bf16.msra.mxu0 %v1911
    %2303 = vmatmul.bf16.gmra.mxu0 %v1137
    %v2304 = vpop.f32.mrf.mxu0
    %v2305 = vadd.f32 0.0, %v2304
    %v2306 = vpop.f32.mrf.mxu0
    %2307 = vdwg.mxu0
    %2308 = vmatpush.bf16.msra.mxu0 %v1971
    %2309 = vmatpush.bf16.msra.mxu0 %v1967
    %2310 = vmatpush.bf16.msra.mxu0 %v1963
    %2311 = vmatpush.bf16.msra.mxu0 %v1959
    %2312 = vmatpush.bf16.msra.mxu0 %v1955
    %2313 = vmatpush.bf16.msra.mxu0 %v1951
    %2314 = vmatpush.bf16.msra.mxu0 %v1947
    %2315 = vmatpush.bf16.msra.mxu0 %v1943
    %2316 = vmatmul.bf16.gmra.mxu0 %v1138
    %v2317 = vpop.f32.mrf.mxu0
    %v2318 = vadd.f32 %v2305, %v2317
    %v2319 = vpop.f32.mrf.mxu0
    %2320 = vdwg.mxu0
    %2321 = vmatpush.bf16.msra.mxu0 %v2003
    %2322 = vmatpush.bf16.msra.mxu0 %v1999
    %2323 = vmatpush.bf16.msra.mxu0 %v1995
    %2324 = vmatpush.bf16.msra.mxu0 %v1991
    %2325 = vmatpush.bf16.msra.mxu0 %v1987
    %2326 = vmatpush.bf16.msra.mxu0 %v1983
    %2327 = vmatpush.bf16.msra.mxu0 %v1979
    %2328 = vmatpush.bf16.msra.mxu0 %v1975
    %2329 = vmatmul.bf16.gmra.mxu0 %v1139
    %v2330 = vpop.f32.mrf.mxu0
    %v2331 = vadd.f32 %v2318, %v2330
    %v2332 = vpop.f32.mrf.mxu0
    %2333 = vdwg.mxu0
    %2334 = vmatpush.bf16.msra.mxu0 %v2035
    %2335 = vmatpush.bf16.msra.mxu0 %v2031
    %2336 = vmatpush.bf16.msra.mxu0 %v2027
    %2337 = vmatpush.bf16.msra.mxu0 %v2023
    %2338 = vmatpush.bf16.msra.mxu0 %v2019
    %2339 = vmatpush.bf16.msra.mxu0 %v2015
    %2340 = vmatpush.bf16.msra.mxu0 %v2011
    %2341 = vmatpush.bf16.msra.mxu0 %v2007
    %2342 = vmatmul.bf16.gmra.mxu0 %v1140
    %v2343 = vpop.f32.mrf.mxu0
    %v2344 = vadd.f32 %v2331, %v2343
    %v2345 = vpop.f32.mrf.mxu0
    %2346 = vdwg.mxu0
    %2347 = vmatpush.bf16.msra.mxu0 %v2067
    %2348 = vmatpush.bf16.msra.mxu0 %v2063
    %2349 = vmatpush.bf16.msra.mxu0 %v2059
    %2350 = vmatpush.bf16.msra.mxu0 %v2055
    %2351 = vmatpush.bf16.msra.mxu0 %v2051
    %2352 = vmatpush.bf16.msra.mxu0 %v2047
    %2353 = vmatpush.bf16.msra.mxu0 %v2043
    %2354 = vmatpush.bf16.msra.mxu0 %v2039
    %2355 = vmatmul.bf16.gmra.mxu0 %v1141
    %v2356 = vpop.f32.mrf.mxu0
    %v2357 = vadd.f32 %v2344, %v2356
    %v2358 = vpop.f32.mrf.mxu0
    %2359 = vdwg.mxu0
    %2360 = vmatpush.bf16.msra.mxu0 %v2099
    %2361 = vmatpush.bf16.msra.mxu0 %v2095
    %2362 = vmatpush.bf16.msra.mxu0 %v2091
    %2363 = vmatpush.bf16.msra.mxu0 %v2087
    %2364 = vmatpush.bf16.msra.mxu0 %v2083
    %2365 = vmatpush.bf16.msra.mxu0 %v2079
    %2366 = vmatpush.bf16.msra.mxu0 %v2075
    %2367 = vmatpush.bf16.msra.mxu0 %v2071
    %2368 = vmatmul.bf16.gmra.mxu0 %v1142
    %v2369 = vpop.f32.mrf.mxu0
    %v2370 = vadd.f32 %v2357, %v2369
    %v2371 = vpop.f32.mrf.mxu0
    %2372 = vdwg.mxu0
    %2373 = vmatpush.bf16.msra.mxu0 %v1940
    %2374 = vmatpush.bf16.msra.mxu0 %v1936
    %2375 = vmatpush.bf16.msra.mxu0 %v1932
    %2376 = vmatpush.bf16.msra.mxu0 %v1928
    %2377 = vmatpush.bf16.msra.mxu0 %v1924
    %2378 = vmatpush.bf16.msra.mxu0 %v1920
    %2379 = vmatpush.bf16.msra.mxu0 %v1916
    %2380 = vmatpush.bf16.msra.mxu0 %v1912
    %2381 = vmatmul.bf16.gmra.mxu0 %v1137
    %v2382 = vpop.f32.mrf.mxu0
    %v2383 = vadd.f32 0.0, %v2382
    %v2384 = vpop.f32.mrf.mxu0
    %2385 = vdwg.mxu0
    %2386 = vmatpush.bf16.msra.mxu0 %v1972
    %2387 = vmatpush.bf16.msra.mxu0 %v1968
    %2388 = vmatpush.bf16.msra.mxu0 %v1964
    %2389 = vmatpush.bf16.msra.mxu0 %v1960
    %2390 = vmatpush.bf16.msra.mxu0 %v1956
    %2391 = vmatpush.bf16.msra.mxu0 %v1952
    %2392 = vmatpush.bf16.msra.mxu0 %v1948
    %2393 = vmatpush.bf16.msra.mxu0 %v1944
    %2394 = vmatmul.bf16.gmra.mxu0 %v1138
    %v2395 = vpop.f32.mrf.mxu0
    %v2396 = vadd.f32 %v2383, %v2395
    %v2397 = vpop.f32.mrf.mxu0
    %2398 = vdwg.mxu0
    %2399 = vmatpush.bf16.msra.mxu0 %v2004
    %2400 = vmatpush.bf16.msra.mxu0 %v2000
    %2401 = vmatpush.bf16.msra.mxu0 %v1996
    %2402 = vmatpush.bf16.msra.mxu0 %v1992
    %2403 = vmatpush.bf16.msra.mxu0 %v1988
    %2404 = vmatpush.bf16.msra.mxu0 %v1984
    %2405 = vmatpush.bf16.msra.mxu0 %v1980
    %2406 = vmatpush.bf16.msra.mxu0 %v1976
    %2407 = vmatmul.bf16.gmra.mxu0 %v1139
    %v2408 = vpop.f32.mrf.mxu0
    %v2409 = vadd.f32 %v2396, %v2408
    %v2410 = vpop.f32.mrf.mxu0
    %2411 = vdwg.mxu0
    %2412 = vmatpush.bf16.msra.mxu0 %v2036
    %2413 = vmatpush.bf16.msra.mxu0 %v2032
    %2414 = vmatpush.bf16.msra.mxu0 %v2028
    %2415 = vmatpush.bf16.msra.mxu0 %v2024
    %2416 = vmatpush.bf16.msra.mxu0 %v2020
    %2417 = vmatpush.bf16.msra.mxu0 %v2016
    %2418 = vmatpush.bf16.msra.mxu0 %v2012
    %2419 = vmatpush.bf16.msra.mxu0 %v2008
    %2420 = vmatmul.bf16.gmra.mxu0 %v1140
    %v2421 = vpop.f32.mrf.mxu0
    %v2422 = vadd.f32 %v2409, %v2421
    %v2423 = vpop.f32.mrf.mxu0
    %2424 = vdwg.mxu0
    %2425 = vmatpush.bf16.msra.mxu0 %v2068
    %2426 = vmatpush.bf16.msra.mxu0 %v2064
    %2427 = vmatpush.bf16.msra.mxu0 %v2060
    %2428 = vmatpush.bf16.msra.mxu0 %v2056
    %2429 = vmatpush.bf16.msra.mxu0 %v2052
    %2430 = vmatpush.bf16.msra.mxu0 %v2048
    %2431 = vmatpush.bf16.msra.mxu0 %v2044
    %2432 = vmatpush.bf16.msra.mxu0 %v2040
    %2433 = vmatmul.bf16.gmra.mxu0 %v1141
    %v2434 = vpop.f32.mrf.mxu0
    %v2435 = vadd.f32 %v2422, %v2434
    %v2436 = vpop.f32.mrf.mxu0
    %2437 = vdwg.mxu0
    %2438 = vmatpush.bf16.msra.mxu0 %v2100
    %2439 = vmatpush.bf16.msra.mxu0 %v2096
    %2440 = vmatpush.bf16.msra.mxu0 %v2092
    %2441 = vmatpush.bf16.msra.mxu0 %v2088
    %2442 = vmatpush.bf16.msra.mxu0 %v2084
    %2443 = vmatpush.bf16.msra.mxu0 %v2080
    %2444 = vmatpush.bf16.msra.mxu0 %v2076
    %2445 = vmatpush.bf16.msra.mxu0 %v2072
    %2446 = vmatmul.bf16.gmra.mxu0 %v1142
    %v2447 = vpop.f32.mrf.mxu0
    %v2448 = vadd.f32 %v2435, %v2447
    %v2449 = vpop.f32.mrf.mxu0
    %2450 = vdwg.mxu0
    %2451 = vmatpush.bf16.msra.mxu0 %v1941
    %2452 = vmatpush.bf16.msra.mxu0 %v1937
    %2453 = vmatpush.bf16.msra.mxu0 %v1933
    %2454 = vmatpush.bf16.msra.mxu0 %v1929
    %2455 = vmatpush.bf16.msra.mxu0 %v1925
    %2456 = vmatpush.bf16.msra.mxu0 %v1921
    %2457 = vmatpush.bf16.msra.mxu0 %v1917
    %2458 = vmatpush.bf16.msra.mxu0 %v1913
    %2459 = vmatmul.bf16.gmra.mxu0 %v1137
    %v2460 = vpop.f32.mrf.mxu0
    %v2461 = vadd.f32 0.0, %v2460
    %v2462 = vpop.f32.mrf.mxu0
    %2463 = vdwg.mxu0
    %2464 = vmatpush.bf16.msra.mxu0 %v1973
    %2465 = vmatpush.bf16.msra.mxu0 %v1969
    %2466 = vmatpush.bf16.msra.mxu0 %v1965
    %2467 = vmatpush.bf16.msra.mxu0 %v1961
    %2468 = vmatpush.bf16.msra.mxu0 %v1957
    %2469 = vmatpush.bf16.msra.mxu0 %v1953
    %2470 = vmatpush.bf16.msra.mxu0 %v1949
    %2471 = vmatpush.bf16.msra.mxu0 %v1945
    %2472 = vmatmul.bf16.gmra.mxu0 %v1138
    %v2473 = vpop.f32.mrf.mxu0
    %v2474 = vadd.f32 %v2461, %v2473
    %v2475 = vpop.f32.mrf.mxu0
    %2476 = vdwg.mxu0
    %2477 = vmatpush.bf16.msra.mxu0 %v2005
    %2478 = vmatpush.bf16.msra.mxu0 %v2001
    %2479 = vmatpush.bf16.msra.mxu0 %v1997
    %2480 = vmatpush.bf16.msra.mxu0 %v1993
    %2481 = vmatpush.bf16.msra.mxu0 %v1989
    %2482 = vmatpush.bf16.msra.mxu0 %v1985
    %2483 = vmatpush.bf16.msra.mxu0 %v1981
    %2484 = vmatpush.bf16.msra.mxu0 %v1977
    %2485 = vmatmul.bf16.gmra.mxu0 %v1139
    %v2486 = vpop.f32.mrf.mxu0
    %v2487 = vadd.f32 %v2474, %v2486
    %v2488 = vpop.f32.mrf.mxu0
    %2489 = vdwg.mxu0
    %2490 = vmatpush.bf16.msra.mxu0 %v2037
    %2491 = vmatpush.bf16.msra.mxu0 %v2033
    %2492 = vmatpush.bf16.msra.mxu0 %v2029
    %2493 = vmatpush.bf16.msra.mxu0 %v2025
    %2494 = vmatpush.bf16.msra.mxu0 %v2021
    %2495 = vmatpush.bf16.msra.mxu0 %v2017
    %2496 = vmatpush.bf16.msra.mxu0 %v2013
    %2497 = vmatpush.bf16.msra.mxu0 %v2009
    %2498 = vmatmul.bf16.gmra.mxu0 %v1140
    %v2499 = vpop.f32.mrf.mxu0
    %v2500 = vadd.f32 %v2487, %v2499
    %v2501 = vpop.f32.mrf.mxu0
    %2502 = vdwg.mxu0
    %2503 = vmatpush.bf16.msra.mxu0 %v2069
    %2504 = vmatpush.bf16.msra.mxu0 %v2065
    %2505 = vmatpush.bf16.msra.mxu0 %v2061
    %2506 = vmatpush.bf16.msra.mxu0 %v2057
    %2507 = vmatpush.bf16.msra.mxu0 %v2053
    %2508 = vmatpush.bf16.msra.mxu0 %v2049
    %2509 = vmatpush.bf16.msra.mxu0 %v2045
    %2510 = vmatpush.bf16.msra.mxu0 %v2041
    %2511 = vmatmul.bf16.gmra.mxu0 %v1141
    %v2512 = vpop.f32.mrf.mxu0
    %v2513 = vadd.f32 %v2500, %v2512
    %v2514 = vpop.f32.mrf.mxu0
    %2515 = vdwg.mxu0
    %2516 = vmatpush.bf16.msra.mxu0 %v2101
    %2517 = vmatpush.bf16.msra.mxu0 %v2097
    %2518 = vmatpush.bf16.msra.mxu0 %v2093
    %2519 = vmatpush.bf16.msra.mxu0 %v2089
    %2520 = vmatpush.bf16.msra.mxu0 %v2085
    %2521 = vmatpush.bf16.msra.mxu0 %v2081
    %2522 = vmatpush.bf16.msra.mxu0 %v2077
    %2523 = vmatpush.bf16.msra.mxu0 %v2073
    %2524 = vmatmul.bf16.gmra.mxu0 %v1142
    %v2525 = vpop.f32.mrf.mxu0
    %v2526 = vadd.f32 %v2513, %v2525
    %v2527 = vpop.f32.mrf.mxu0
    %2528 = vdwg.mxu0
    %2529 = vmatpush.bf16.msra.mxu0 %v1942
    %2530 = vmatpush.bf16.msra.mxu0 %v1938
    %2531 = vmatpush.bf16.msra.mxu0 %v1934
    %2532 = vmatpush.bf16.msra.mxu0 %v1930
    %2533 = vmatpush.bf16.msra.mxu0 %v1926
    %2534 = vmatpush.bf16.msra.mxu0 %v1922
    %2535 = vmatpush.bf16.msra.mxu0 %v1918
    %2536 = vmatpush.bf16.msra.mxu0 %v1914
    %2537 = vmatmul.bf16.gmra.mxu0 %v1137
    %v2538 = vpop.f32.mrf.mxu0
    %v2539 = vadd.f32 0.0, %v2538
    %v2540 = vpop.f32.mrf.mxu0
    %2541 = vdwg.mxu0
    %2542 = vmatpush.bf16.msra.mxu0 %v1974
    %2543 = vmatpush.bf16.msra.mxu0 %v1970
    %2544 = vmatpush.bf16.msra.mxu0 %v1966
    %2545 = vmatpush.bf16.msra.mxu0 %v1962
    %2546 = vmatpush.bf16.msra.mxu0 %v1958
    %2547 = vmatpush.bf16.msra.mxu0 %v1954
    %2548 = vmatpush.bf16.msra.mxu0 %v1950
    %2549 = vmatpush.bf16.msra.mxu0 %v1946
    %2550 = vmatmul.bf16.gmra.mxu0 %v1138
    %v2551 = vpop.f32.mrf.mxu0
    %v2552 = vadd.f32 %v2539, %v2551
    %v2553 = vpop.f32.mrf.mxu0
    %2554 = vdwg.mxu0
    %2555 = vmatpush.bf16.msra.mxu0 %v2006
    %2556 = vmatpush.bf16.msra.mxu0 %v2002
    %2557 = vmatpush.bf16.msra.mxu0 %v1998
    %2558 = vmatpush.bf16.msra.mxu0 %v1994
    %2559 = vmatpush.bf16.msra.mxu0 %v1990
    %2560 = vmatpush.bf16.msra.mxu0 %v1986
    %2561 = vmatpush.bf16.msra.mxu0 %v1982
    %2562 = vmatpush.bf16.msra.mxu0 %v1978
    %2563 = vmatmul.bf16.gmra.mxu0 %v1139
    %v2564 = vpop.f32.mrf.mxu0
    %v2565 = vadd.f32 %v2552, %v2564
    %v2566 = vpop.f32.mrf.mxu0
    %2567 = vdwg.mxu0
    %2568 = vmatpush.bf16.msra.mxu0 %v2038
    %2569 = vmatpush.bf16.msra.mxu0 %v2034
    %2570 = vmatpush.bf16.msra.mxu0 %v2030
    %2571 = vmatpush.bf16.msra.mxu0 %v2026
    %2572 = vmatpush.bf16.msra.mxu0 %v2022
    %2573 = vmatpush.bf16.msra.mxu0 %v2018
    %2574 = vmatpush.bf16.msra.mxu0 %v2014
    %2575 = vmatpush.bf16.msra.mxu0 %v2010
    %2576 = vmatmul.bf16.gmra.mxu0 %v1140
    %v2577 = vpop.f32.mrf.mxu0
    %v2578 = vadd.f32 %v2565, %v2577
    %v2579 = vpop.f32.mrf.mxu0
    %2580 = vdwg.mxu0
    %2581 = vmatpush.bf16.msra.mxu0 %v2070
    %2582 = vmatpush.bf16.msra.mxu0 %v2066
    %2583 = vmatpush.bf16.msra.mxu0 %v2062
    %2584 = vmatpush.bf16.msra.mxu0 %v2058
    %2585 = vmatpush.bf16.msra.mxu0 %v2054
    %2586 = vmatpush.bf16.msra.mxu0 %v2050
    %2587 = vmatpush.bf16.msra.mxu0 %v2046
    %2588 = vmatpush.bf16.msra.mxu0 %v2042
    %2589 = vmatmul.bf16.gmra.mxu0 %v1141
    %v2590 = vpop.f32.mrf.mxu0
    %v2591 = vadd.f32 %v2578, %v2590
    %v2592 = vpop.f32.mrf.mxu0
    %2593 = vdwg.mxu0
    %2594 = vmatpush.bf16.msra.mxu0 %v2102
    %2595 = vmatpush.bf16.msra.mxu0 %v2098
    %2596 = vmatpush.bf16.msra.mxu0 %v2094
    %2597 = vmatpush.bf16.msra.mxu0 %v2090
    %2598 = vmatpush.bf16.msra.mxu0 %v2086
    %2599 = vmatpush.bf16.msra.mxu0 %v2082
    %2600 = vmatpush.bf16.msra.mxu0 %v2078
    %2601 = vmatpush.bf16.msra.mxu0 %v2074
    %2602 = vmatmul.bf16.gmra.mxu0 %v1142
    %v2603 = vpop.f32.mrf.mxu0
    %v2604 = vadd.f32 %v2591, %v2603
    %v2605 = vpop.f32.mrf.mxu0
    %2606 = vdwg.mxu0
    %v2927 = vunpack.c.l.b16 %v817
    %v2928 = vunpack.c.h.b16 %v817
    %v2929 = vunpack.c.l.b16 %v818
    %v2930 = vunpack.c.h.b16 %v818
    %v2931 = vunpack.c.l.b16 %v819
    %v2932 = vunpack.c.h.b16 %v819
    %v2933 = vunpack.c.l.b16 %v820
    %v2934 = vunpack.c.h.b16 %v820
    %v2935 = vunpack.c.l.b16 %v821
    %v2936 = vunpack.c.h.b16 %v821
    %v2937 = vunpack.c.l.b16 %v822
    %v2938 = vunpack.c.h.b16 %v822
    %v2939 = vunpack.c.l.b16 %v823
    %v2940 = vunpack.c.h.b16 %v823
    %v2941 = vunpack.c.l.b16 %v824
    %v2942 = vunpack.c.h.b16 %v824
    %v2943 = vunpack.c.l.b16 %v825
    %v2944 = vunpack.c.h.b16 %v825
    %v2945 = vunpack.c.l.b16 %v826
    %v2946 = vunpack.c.h.b16 %v826
    %v2947 = vunpack.c.l.b16 %v827
    %v2948 = vunpack.c.h.b16 %v827
    %v2949 = vunpack.c.l.b16 %v828
    %v2950 = vunpack.c.h.b16 %v828
    %v2951 = vunpack.c.l.b16 %v829
    %v2952 = vunpack.c.h.b16 %v829
    %v2953 = vunpack.c.l.b16 %v830
    %v2954 = vunpack.c.h.b16 %v830
    %v2955 = vunpack.c.l.b16 %v831
    %v2956 = vunpack.c.h.b16 %v831
    %v2957 = vunpack.c.l.b16 %v832
    %v2958 = vunpack.c.h.b16 %v832
    %v2959 = vunpack.c.l.b16 %v833
    %v2960 = vunpack.c.h.b16 %v833
    %v2961 = vunpack.c.l.b16 %v834
    %v2962 = vunpack.c.h.b16 %v834
    %v2963 = vunpack.c.l.b16 %v835
    %v2964 = vunpack.c.h.b16 %v835
    %v2965 = vunpack.c.l.b16 %v836
    %v2966 = vunpack.c.h.b16 %v836
    %v2967 = vunpack.c.l.b16 %v837
    %v2968 = vunpack.c.h.b16 %v837
    %v2969 = vunpack.c.l.b16 %v838
    %v2970 = vunpack.c.h.b16 %v838
    %v2971 = vunpack.c.l.b16 %v839
    %v2972 = vunpack.c.h.b16 %v839
    %v2973 = vunpack.c.l.b16 %v840
    %v2974 = vunpack.c.h.b16 %v840
    %v2975 = vunpack.c.l.b16 %v841
    %v2976 = vunpack.c.h.b16 %v841
    %v2977 = vunpack.c.l.b16 %v842
    %v2978 = vunpack.c.h.b16 %v842
    %v2979 = vunpack.c.l.b16 %v843
    %v2980 = vunpack.c.h.b16 %v843
    %v2981 = vunpack.c.l.b16 %v844
    %v2982 = vunpack.c.h.b16 %v844
    %v2983 = vunpack.c.l.b16 %v845
    %v2984 = vunpack.c.h.b16 %v845
    %v2985 = vunpack.c.l.b16 %v846
    %v2986 = vunpack.c.h.b16 %v846
    %v2987 = vunpack.c.l.b16 %v847
    %v2988 = vunpack.c.h.b16 %v847
    %v2989 = vunpack.c.l.b16 %v848
    %v2990 = vunpack.c.h.b16 %v848
    %v2991 = vunpack.c.l.b16 %v849
    %v2992 = vunpack.c.h.b16 %v849
    %v2993 = vunpack.c.l.b16 %v850
    %v2994 = vunpack.c.h.b16 %v850
    %v2995 = vunpack.c.l.b16 %v851
    %v2996 = vunpack.c.h.b16 %v851
    %v2997 = vunpack.c.l.b16 %v852
    %v2998 = vunpack.c.h.b16 %v852
    %v2999 = vunpack.c.l.b16 %v853
    %v3000 = vunpack.c.h.b16 %v853
    %v3001 = vunpack.c.l.b16 %v854
    %v3002 = vunpack.c.h.b16 %v854
    %v3003 = vunpack.c.l.b16 %v855
    %v3004 = vunpack.c.h.b16 %v855
    %v3005 = vunpack.c.l.b16 %v856
    %v3006 = vunpack.c.h.b16 %v856
    %v3007 = vunpack.c.l.b16 %v857
    %v3008 = vunpack.c.h.b16 %v857
    %v3009 = vunpack.c.l.b16 %v858
    %v3010 = vunpack.c.h.b16 %v858
    %v3011 = vunpack.c.l.b16 %v859
    %v3012 = vunpack.c.h.b16 %v859
    %v3013 = vunpack.c.l.b16 %v860
    %v3014 = vunpack.c.h.b16 %v860
    %v3015 = vunpack.c.l.b16 %v861
    %v3016 = vunpack.c.h.b16 %v861
    %v3017 = vunpack.c.l.b16 %v862
    %v3018 = vunpack.c.h.b16 %v862
    %v3019 = vunpack.c.l.b16 %v863
    %v3020 = vunpack.c.h.b16 %v863
    %v3021 = vunpack.c.l.b16 %v864
    %v3022 = vunpack.c.h.b16 %v864
    %v3023 = vunpack.c.l.b16 %v865
    %v3024 = vunpack.c.h.b16 %v865
    %v3025 = vunpack.c.l.b16 %v866
    %v3026 = vunpack.c.h.b16 %v866
    %v3027 = vunpack.c.l.b16 %v867
    %v3028 = vunpack.c.h.b16 %v867
    %v3029 = vunpack.c.l.b16 %v868
    %v3030 = vunpack.c.h.b16 %v868
    %v3031 = vunpack.c.l.b16 %v869
    %v3032 = vunpack.c.h.b16 %v869
    %v3033 = vunpack.c.l.b16 %v870
    %v3034 = vunpack.c.h.b16 %v870
    %v3035 = vunpack.c.l.b16 %v871
    %v3036 = vunpack.c.h.b16 %v871
    %v3037 = vunpack.c.l.b16 %v872
    %v3038 = vunpack.c.h.b16 %v872
    %v3039 = vunpack.c.l.b16 %v873
    %v3040 = vunpack.c.h.b16 %v873
    %v3041 = vunpack.c.l.b16 %v874
    %v3042 = vunpack.c.h.b16 %v874
    %v3043 = vunpack.c.l.b16 %v875
    %v3044 = vunpack.c.h.b16 %v875
    %v3045 = vunpack.c.l.b16 %v876
    %v3046 = vunpack.c.h.b16 %v876
    %v3047 = vunpack.c.l.b16 %v877
    %v3048 = vunpack.c.h.b16 %v877
    %v3049 = vunpack.c.l.b16 %v878
    %v3050 = vunpack.c.h.b16 %v878
    %v3051 = vunpack.c.l.b16 %v879
    %v3052 = vunpack.c.h.b16 %v879
    %v3053 = vunpack.c.l.b16 %v880
    %v3054 = vunpack.c.h.b16 %v880
    %v3055 = vunpack.c.l.b16 %v881
    %v3056 = vunpack.c.h.b16 %v881
    %v3057 = vunpack.c.l.b16 %v882
    %v3058 = vunpack.c.h.b16 %v882
    %v3059 = vunpack.c.l.b16 %v883
    %v3060 = vunpack.c.h.b16 %v883
    %v3061 = vunpack.c.l.b16 %v884
    %v3062 = vunpack.c.h.b16 %v884
    %v3063 = vunpack.c.l.b16 %v885
    %v3064 = vunpack.c.h.b16 %v885
    %v3065 = vunpack.c.l.b16 %v886
    %v3066 = vunpack.c.h.b16 %v886
    %v3067 = vunpack.c.l.b16 %v887
    %v3068 = vunpack.c.h.b16 %v887
    %v3069 = vunpack.c.l.b16 %v888
    %v3070 = vunpack.c.h.b16 %v888
    %v3071 = vunpack.c.l.b16 %v889
    %v3072 = vunpack.c.h.b16 %v889
    %v3073 = vunpack.c.l.b16 %v890
    %v3074 = vunpack.c.h.b16 %v890
    %v3075 = vunpack.c.l.b16 %v891
    %v3076 = vunpack.c.h.b16 %v891
    %v3077 = vunpack.c.l.b16 %v892
    %v3078 = vunpack.c.h.b16 %v892
    %v3079 = vunpack.c.l.b16 %v893
    %v3080 = vunpack.c.h.b16 %v893
    %v3081 = vunpack.c.l.b16 %v894
    %v3082 = vunpack.c.h.b16 %v894
    %v3083 = vunpack.c.l.b16 %v895
    %v3084 = vunpack.c.h.b16 %v895
    %v3085 = vunpack.c.l.b16 %v896
    %v3086 = vunpack.c.h.b16 %v896
    %v3087 = vunpack.c.l.b16 %v897
    %v3088 = vunpack.c.h.b16 %v897
    %v3089 = vunpack.c.l.b16 %v898
    %v3090 = vunpack.c.h.b16 %v898
    %v3091 = vunpack.c.l.b16 %v899
    %v3092 = vunpack.c.h.b16 %v899
    %v3093 = vunpack.c.l.b16 %v900
    %v3094 = vunpack.c.h.b16 %v900
    %v3095 = vunpack.c.l.b16 %v901
    %v3096 = vunpack.c.h.b16 %v901
    %v3097 = vunpack.c.l.b16 %v902
    %v3098 = vunpack.c.h.b16 %v902
    %v3099 = vunpack.c.l.b16 %v903
    %v3100 = vunpack.c.h.b16 %v903
    %v3101 = vunpack.c.l.b16 %v904
    %v3102 = vunpack.c.h.b16 %v904
    %v3103 = vunpack.c.l.b16 %v905
    %v3104 = vunpack.c.h.b16 %v905
    %v3105 = vunpack.c.l.b16 %v906
    %v3106 = vunpack.c.h.b16 %v906
    %v3107 = vunpack.c.l.b16 %v907
    %v3108 = vunpack.c.h.b16 %v907
    %v3109 = vunpack.c.l.b16 %v908
    %v3110 = vunpack.c.h.b16 %v908
    %v3111 = vunpack.c.l.b16 %v909
    %v3112 = vunpack.c.h.b16 %v909
    %v3113 = vunpack.c.l.b16 %v910
    %v3114 = vunpack.c.h.b16 %v910
    %v3115 = vunpack.c.l.b16 %v911
    %v3116 = vunpack.c.h.b16 %v911
    %v3117 = vunpack.c.l.b16 %v912
    %v3118 = vunpack.c.h.b16 %v912
    %v3119 = vunpack.c.l.b16 %v913
    %v3120 = vunpack.c.h.b16 %v913
    %v3121 = vunpack.c.l.b16 %v914
    %v3122 = vunpack.c.h.b16 %v914
    %v3123 = vunpack.c.l.b16 %v915
    %v3124 = vunpack.c.h.b16 %v915
    %v3125 = vunpack.c.l.b16 %v916
    %v3126 = vunpack.c.h.b16 %v916
    %v3127 = vunpack.c.l.b16 %v917
    %v3128 = vunpack.c.h.b16 %v917
    %v3129 = vunpack.c.l.b16 %v918
    %v3130 = vunpack.c.h.b16 %v918
    %v3131 = vunpack.c.l.b16 %v919
    %v3132 = vunpack.c.h.b16 %v919
    %v3133 = vunpack.c.l.b16 %v920
    %v3134 = vunpack.c.h.b16 %v920
    %v3135 = vunpack.c.l.b16 %v921
    %v3136 = vunpack.c.h.b16 %v921
    %v3137 = vunpack.c.l.b16 %v922
    %v3138 = vunpack.c.h.b16 %v922
    %v3139 = vunpack.c.l.b16 %v923
    %v3140 = vunpack.c.h.b16 %v923
    %v3141 = vunpack.c.l.b16 %v924
    %v3142 = vunpack.c.h.b16 %v924
    %v3143 = vunpack.c.l.b16 %v925
    %v3144 = vunpack.c.h.b16 %v925
    %v3145 = vunpack.c.l.b16 %v926
    %v3146 = vunpack.c.h.b16 %v926
    %v3147 = vunpack.c.l.b16 %v927
    %v3148 = vunpack.c.h.b16 %v927
    %v3149 = vunpack.c.l.b16 %v928
    %v3150 = vunpack.c.h.b16 %v928
    %v3151 = vunpack.c.l.b16 %v929
    %v3152 = vunpack.c.h.b16 %v929
    %v3153 = vunpack.c.l.b16 %v930
    %v3154 = vunpack.c.h.b16 %v930
    %v3155 = vunpack.c.l.b16 %v931
    %v3156 = vunpack.c.h.b16 %v931
    %v3157 = vunpack.c.l.b16 %v932
    %v3158 = vunpack.c.h.b16 %v932
    %v3159 = vunpack.c.l.b16 %v933
    %v3160 = vunpack.c.h.b16 %v933
    %v3161 = vunpack.c.l.b16 %v934
    %v3162 = vunpack.c.h.b16 %v934
    %v3163 = vunpack.c.l.b16 %v935
    %v3164 = vunpack.c.h.b16 %v935
    %v3165 = vunpack.c.l.b16 %v936
    %v3166 = vunpack.c.h.b16 %v936
    %v3167 = vunpack.c.l.b16 %v937
    %v3168 = vunpack.c.h.b16 %v937
    %v3169 = vunpack.c.l.b16 %v938
    %v3170 = vunpack.c.h.b16 %v938
    %v3171 = vunpack.c.l.b16 %v939
    %v3172 = vunpack.c.h.b16 %v939
    %v3173 = vunpack.c.l.b16 %v940
    %v3174 = vunpack.c.h.b16 %v940
    %v3175 = vunpack.c.l.b16 %v941
    %v3176 = vunpack.c.h.b16 %v941
    %v3177 = vunpack.c.l.b16 %v942
    %v3178 = vunpack.c.h.b16 %v942
    %v3179 = vunpack.c.l.b16 %v943
    %v3180 = vunpack.c.h.b16 %v943
    %v3181 = vunpack.c.l.b16 %v944
    %v3182 = vunpack.c.h.b16 %v944
    %v3183 = vunpack.c.l.b16 %v945
    %v3184 = vunpack.c.h.b16 %v945
    %v3185 = vunpack.c.l.b16 %v946
    %v3186 = vunpack.c.h.b16 %v946
    %v3187 = vunpack.c.l.b16 %v947
    %v3188 = vunpack.c.h.b16 %v947
    %v3189 = vunpack.c.l.b16 %v948
    %v3190 = vunpack.c.h.b16 %v948
    %v3191 = vunpack.c.l.b16 %v949
    %v3192 = vunpack.c.h.b16 %v949
    %v3193 = vunpack.c.l.b16 %v950
    %v3194 = vunpack.c.h.b16 %v950
    %v3195 = vunpack.c.l.b16 %v951
    %v3196 = vunpack.c.h.b16 %v951
    %v3197 = vunpack.c.l.b16 %v952
    %v3198 = vunpack.c.h.b16 %v952
    %v3199 = vunpack.c.l.b16 %v953
    %v3200 = vunpack.c.h.b16 %v953
    %v3201 = vunpack.c.l.b16 %v954
    %v3202 = vunpack.c.h.b16 %v954
    %v3203 = vunpack.c.l.b16 %v955
    %v3204 = vunpack.c.h.b16 %v955
    %v3205 = vunpack.c.l.b16 %v956
    %v3206 = vunpack.c.h.b16 %v956
    %v3207 = vunpack.c.l.b16 %v957
    %v3208 = vunpack.c.h.b16 %v957
    %v3209 = vunpack.c.l.b16 %v958
    %v3210 = vunpack.c.h.b16 %v958
    %v3211 = vunpack.c.l.b16 %v959
    %v3212 = vunpack.c.h.b16 %v959
    %v3213 = vunpack.c.l.b16 %v960
    %v3214 = vunpack.c.h.b16 %v960
    %v3215 = vunpack.c.l.b16 %v961
    %v3216 = vunpack.c.h.b16 %v961
    %v3217 = vunpack.c.l.b16 %v962
    %v3218 = vunpack.c.h.b16 %v962
    %v3219 = vunpack.c.l.b16 %v963
    %v3220 = vunpack.c.h.b16 %v963
    %v3221 = vunpack.c.l.b16 %v964
    %v3222 = vunpack.c.h.b16 %v964
    %v3223 = vunpack.c.l.b16 %v965
    %v3224 = vunpack.c.h.b16 %v965
    %v3225 = vunpack.c.l.b16 %v966
    %v3226 = vunpack.c.h.b16 %v966
    %v3227 = vunpack.c.l.b16 %v967
    %v3228 = vunpack.c.h.b16 %v967
    %v3229 = vunpack.c.l.b16 %v968
    %v3230 = vunpack.c.h.b16 %v968
    %v3231 = vunpack.c.l.b16 %v969
    %v3232 = vunpack.c.h.b16 %v969
    %v3233 = vunpack.c.l.b16 %v970
    %v3234 = vunpack.c.h.b16 %v970
    %v3235 = vunpack.c.l.b16 %v971
    %v3236 = vunpack.c.h.b16 %v971
    %v3237 = vunpack.c.l.b16 %v972
    %v3238 = vunpack.c.h.b16 %v972
    %v3239 = vunpack.c.l.b16 %v973
    %v3240 = vunpack.c.h.b16 %v973
    %v3241 = vunpack.c.l.b16 %v974
    %v3242 = vunpack.c.h.b16 %v974
    %v3243 = vunpack.c.l.b16 %v975
    %v3244 = vunpack.c.h.b16 %v975
    %v3245 = vunpack.c.l.b16 %v976
    %v3246 = vunpack.c.h.b16 %v976
    %v3247 = vunpack.c.l.b16 %v977
    %v3248 = vunpack.c.h.b16 %v977
    %v3249 = vunpack.c.l.b16 %v978
    %v3250 = vunpack.c.h.b16 %v978
    %v3251 = vunpack.c.l.b16 %v979
    %v3252 = vunpack.c.h.b16 %v979
    %v3253 = vunpack.c.l.b16 %v980
    %v3254 = vunpack.c.h.b16 %v980
    %v3255 = vunpack.c.l.b16 %v981
    %v3256 = vunpack.c.h.b16 %v981
    %v3257 = vunpack.c.l.b16 %v982
    %v3258 = vunpack.c.h.b16 %v982
    %v3259 = vunpack.c.l.b16 %v983
    %v3260 = vunpack.c.h.b16 %v983
    %v3261 = vunpack.c.l.b16 %v984
    %v3262 = vunpack.c.h.b16 %v984
    %v3263 = vunpack.c.l.b16 %v985
    %v3264 = vunpack.c.h.b16 %v985
    %v3265 = vunpack.c.l.b16 %v986
    %v3266 = vunpack.c.h.b16 %v986
    %v3267 = vunpack.c.l.b16 %v987
    %v3268 = vunpack.c.h.b16 %v987
    %v3269 = vunpack.c.l.b16 %v988
    %v3270 = vunpack.c.h.b16 %v988
    %v3271 = vunpack.c.l.b16 %v989
    %v3272 = vunpack.c.h.b16 %v989
    %v3273 = vunpack.c.l.b16 %v990
    %v3274 = vunpack.c.h.b16 %v990
    %v3275 = vunpack.c.l.b16 %v991
    %v3276 = vunpack.c.h.b16 %v991
    %v3277 = vunpack.c.l.b16 %v992
    %v3278 = vunpack.c.h.b16 %v992
    %v3279 = vunpack.c.l.b16 %v993
    %v3280 = vunpack.c.h.b16 %v993
    %v3281 = vunpack.c.l.b16 %v994
    %v3282 = vunpack.c.h.b16 %v994
    %v3283 = vunpack.c.l.b16 %v995
    %v3284 = vunpack.c.h.b16 %v995
    %v3285 = vunpack.c.l.b16 %v996
    %v3286 = vunpack.c.h.b16 %v996
    %v3287 = vunpack.c.l.b16 %v997
    %v3288 = vunpack.c.h.b16 %v997
    %v3289 = vunpack.c.l.b16 %v998
    %v3290 = vunpack.c.h.b16 %v998
    %v3291 = vunpack.c.l.b16 %v999
    %v3292 = vunpack.c.h.b16 %v999
    %v3293 = vunpack.c.l.b16 %v1000
    %v3294 = vunpack.c.h.b16 %v1000
    %v3295 = vunpack.c.l.b16 %v1001
    %v3296 = vunpack.c.h.b16 %v1001
    %v3297 = vunpack.c.l.b16 %v1002
    %v3298 = vunpack.c.h.b16 %v1002
    %v3299 = vunpack.c.l.b16 %v1003
    %v3300 = vunpack.c.h.b16 %v1003
    %v3301 = vunpack.c.l.b16 %v1004
    %v3302 = vunpack.c.h.b16 %v1004
    %v3303 = vunpack.c.l.b16 %v1005
    %v3304 = vunpack.c.h.b16 %v1005
    %v3305 = vunpack.c.l.b16 %v1006
    %v3306 = vunpack.c.h.b16 %v1006
    %v3307 = vunpack.c.l.b16 %v1007
    %v3308 = vunpack.c.h.b16 %v1007
    %v3309 = vunpack.c.l.b16 %v1008
    %v3310 = vunpack.c.h.b16 %v1008
    %v3311 = vunpack.c.l.b16 %v1009
    %v3312 = vunpack.c.h.b16 %v1009
    %v3313 = vunpack.c.l.b16 %v1010
    %v3314 = vunpack.c.h.b16 %v1010
    %v3315 = vunpack.c.l.b16 %v1011
    %v3316 = vunpack.c.h.b16 %v1011
    %v3317 = vunpack.c.l.b16 %v1012
    %v3318 = vunpack.c.h.b16 %v1012
    %v3319 = vunpack.c.l.b16 %v1013
    %v3320 = vunpack.c.h.b16 %v1013
    %v3321 = vunpack.c.l.b16 %v1014
    %v3322 = vunpack.c.h.b16 %v1014
    %v3323 = vunpack.c.l.b16 %v1015
    %v3324 = vunpack.c.h.b16 %v1015
    %v3325 = vunpack.c.l.b16 %v1016
    %v3326 = vunpack.c.h.b16 %v1016
    %v3327 = vunpack.c.l.b16 %v1017
    %v3328 = vunpack.c.h.b16 %v1017
    %v3329 = vunpack.c.l.b16 %v1018
    %v3330 = vunpack.c.h.b16 %v1018
    %v3331 = vunpack.c.l.b16 %v1019
    %v3332 = vunpack.c.h.b16 %v1019
    %v3333 = vunpack.c.l.b16 %v1020
    %v3334 = vunpack.c.h.b16 %v1020
    %v3335 = vunpack.c.l.b16 %v1021
    %v3336 = vunpack.c.h.b16 %v1021
    %v3337 = vunpack.c.l.b16 %v1022
    %v3338 = vunpack.c.h.b16 %v1022
    %v3339 = vunpack.c.l.b16 %v1023
    %v3340 = vunpack.c.h.b16 %v1023
    %v3341 = vunpack.c.l.b16 %v1024
    %v3342 = vunpack.c.h.b16 %v1024
    %v3343 = vunpack.c.l.b16 %v1025
    %v3344 = vunpack.c.h.b16 %v1025
    %v3345 = vunpack.c.l.b16 %v1026
    %v3346 = vunpack.c.h.b16 %v1026
    %v3347 = vunpack.c.l.b16 %v1027
    %v3348 = vunpack.c.h.b16 %v1027
    %v3349 = vunpack.c.l.b16 %v1028
    %v3350 = vunpack.c.h.b16 %v1028
    %v3351 = vunpack.c.l.b16 %v1029
    %v3352 = vunpack.c.h.b16 %v1029
    %v3353 = vunpack.c.l.b16 %v1030
    %v3354 = vunpack.c.h.b16 %v1030
    %v3355 = vunpack.c.l.b16 %v1031
    %v3356 = vunpack.c.h.b16 %v1031
    %v3357 = vunpack.c.l.b16 %v1032
    %v3358 = vunpack.c.h.b16 %v1032
    %v3359 = vunpack.c.l.b16 %v1033
    %v3360 = vunpack.c.h.b16 %v1033
    %v3361 = vunpack.c.l.b16 %v1034
    %v3362 = vunpack.c.h.b16 %v1034
    %v3363 = vunpack.c.l.b16 %v1035
    %v3364 = vunpack.c.h.b16 %v1035
    %v3365 = vunpack.c.l.b16 %v1036
    %v3366 = vunpack.c.h.b16 %v1036
    %v3367 = vunpack.c.l.b16 %v1037
    %v3368 = vunpack.c.h.b16 %v1037
    %v3369 = vunpack.c.l.b16 %v1038
    %v3370 = vunpack.c.h.b16 %v1038
    %v3371 = vunpack.c.l.b16 %v1039
    %v3372 = vunpack.c.h.b16 %v1039
    %v3373 = vunpack.c.l.b16 %v1040
    %v3374 = vunpack.c.h.b16 %v1040
    %v3375 = vunpack.c.l.b16 %v1041
    %v3376 = vunpack.c.h.b16 %v1041
    %v3377 = vunpack.c.l.b16 %v1042
    %v3378 = vunpack.c.h.b16 %v1042
    %v3379 = vunpack.c.l.b16 %v1043
    %v3380 = vunpack.c.h.b16 %v1043
    %v3381 = vunpack.c.l.b16 %v1044
    %v3382 = vunpack.c.h.b16 %v1044
    %v3383 = vunpack.c.l.b16 %v1045
    %v3384 = vunpack.c.h.b16 %v1045
    %v3385 = vunpack.c.l.b16 %v1046
    %v3386 = vunpack.c.h.b16 %v1046
    %v3387 = vunpack.c.l.b16 %v1047
    %v3388 = vunpack.c.h.b16 %v1047
    %v3389 = vunpack.c.l.b16 %v1048
    %v3390 = vunpack.c.h.b16 %v1048
    %v3391 = vunpack.c.l.b16 %v1049
    %v3392 = vunpack.c.h.b16 %v1049
    %v3393 = vunpack.c.l.b16 %v1050
    %v3394 = vunpack.c.h.b16 %v1050
    %v3395 = vunpack.c.l.b16 %v1051
    %v3396 = vunpack.c.h.b16 %v1051
    %v3397 = vunpack.c.l.b16 %v1052
    %v3398 = vunpack.c.h.b16 %v1052
    %v3399 = vunpack.c.l.b16 %v1053
    %v3400 = vunpack.c.h.b16 %v1053
    %v3401 = vunpack.c.l.b16 %v1054
    %v3402 = vunpack.c.h.b16 %v1054
    %v3403 = vunpack.c.l.b16 %v1055
    %v3404 = vunpack.c.h.b16 %v1055
    %v3405 = vunpack.c.l.b16 %v1056
    %v3406 = vunpack.c.h.b16 %v1056
    %v3407 = vunpack.c.l.b16 %v1057
    %v3408 = vunpack.c.h.b16 %v1057
    %v3409 = vunpack.c.l.b16 %v1058
    %v3410 = vunpack.c.h.b16 %v1058
    %v3411 = vunpack.c.l.b16 %v1059
    %v3412 = vunpack.c.h.b16 %v1059
    %v3413 = vunpack.c.l.b16 %v1060
    %v3414 = vunpack.c.h.b16 %v1060
    %v3415 = vunpack.c.l.b16 %v1061
    %v3416 = vunpack.c.h.b16 %v1061
    %v3417 = vunpack.c.l.b16 %v1062
    %v3418 = vunpack.c.h.b16 %v1062
    %v3419 = vunpack.c.l.b16 %v1063
    %v3420 = vunpack.c.h.b16 %v1063
    %v3421 = vunpack.c.l.b16 %v1064
    %v3422 = vunpack.c.h.b16 %v1064
    %v3423 = vunpack.c.l.b16 %v1065
    %v3424 = vunpack.c.h.b16 %v1065
    %v3425 = vunpack.c.l.b16 %v1066
    %v3426 = vunpack.c.h.b16 %v1066
    %v3427 = vunpack.c.l.b16 %v1067
    %v3428 = vunpack.c.h.b16 %v1067
    %v3429 = vunpack.c.l.b16 %v1068
    %v3430 = vunpack.c.h.b16 %v1068
    %v3431 = vunpack.c.l.b16 %v1069
    %v3432 = vunpack.c.h.b16 %v1069
    %v3433 = vunpack.c.l.b16 %v1070
    %v3434 = vunpack.c.h.b16 %v1070
    %v3435 = vunpack.c.l.b16 %v1071
    %v3436 = vunpack.c.h.b16 %v1071
    %v3437 = vunpack.c.l.b16 %v1072
    %v3438 = vunpack.c.h.b16 %v1072
    %v3439 = vunpack.c.l.b16 %v1073
    %v3440 = vunpack.c.h.b16 %v1073
    %v3441 = vunpack.c.l.b16 %v1074
    %v3442 = vunpack.c.h.b16 %v1074
    %v3443 = vunpack.c.l.b16 %v1075
    %v3444 = vunpack.c.h.b16 %v1075
    %v3445 = vunpack.c.l.b16 %v1076
    %v3446 = vunpack.c.h.b16 %v1076
    %v3447 = vunpack.c.l.b16 %v1077
    %v3448 = vunpack.c.h.b16 %v1077
    %v3449 = vunpack.c.l.b16 %v1078
    %v3450 = vunpack.c.h.b16 %v1078
    %v3451 = vunpack.c.l.b16 %v1079
    %v3452 = vunpack.c.h.b16 %v1079
    %v3453 = vunpack.c.l.b16 %v1080
    %v3454 = vunpack.c.h.b16 %v1080
    %v3455 = vunpack.c.l.b16 %v1081
    %v3456 = vunpack.c.h.b16 %v1081
    %v3457 = vunpack.c.l.b16 %v1082
    %v3458 = vunpack.c.h.b16 %v1082
    %v3459 = vunpack.c.l.b16 %v1083
    %v3460 = vunpack.c.h.b16 %v1083
    %v3461 = vunpack.c.l.b16 %v1084
    %v3462 = vunpack.c.h.b16 %v1084
    %v3463 = vunpack.c.l.b16 %v1085
    %v3464 = vunpack.c.h.b16 %v1085
    %v3465 = vunpack.c.l.b16 %v1086
    %v3466 = vunpack.c.h.b16 %v1086
    %v3467 = vunpack.c.l.b16 %v1087
    %v3468 = vunpack.c.h.b16 %v1087
    %v3469 = vunpack.c.l.b16 %v1088
    %v3470 = vunpack.c.h.b16 %v1088
    %v3471 = vunpack.c.l.b16 %v1089
    %v3472 = vunpack.c.h.b16 %v1089
    %v3473 = vunpack.c.l.b16 %v1090
    %v3474 = vunpack.c.h.b16 %v1090
    %v3475 = vunpack.c.l.b16 %v1091
    %v3476 = vunpack.c.h.b16 %v1091
    %v3477 = vunpack.c.l.b16 %v1092
    %v3478 = vunpack.c.h.b16 %v1092
    %v3479 = vunpack.c.l.b16 %v1093
    %v3480 = vunpack.c.h.b16 %v1093
    %v3481 = vunpack.c.l.b16 %v1094
    %v3482 = vunpack.c.h.b16 %v1094
    %v3483 = vunpack.c.l.b16 %v1095
    %v3484 = vunpack.c.h.b16 %v1095
    %v3485 = vunpack.c.l.b16 %v1096
    %v3486 = vunpack.c.h.b16 %v1096
    %v3487 = vunpack.c.l.b16 %v1097
    %v3488 = vunpack.c.h.b16 %v1097
    %v3489 = vunpack.c.l.b16 %v1098
    %v3490 = vunpack.c.h.b16 %v1098
    %v3491 = vunpack.c.l.b16 %v1099
    %v3492 = vunpack.c.h.b16 %v1099
    %v3493 = vunpack.c.l.b16 %v1100
    %v3494 = vunpack.c.h.b16 %v1100
    %v3495 = vunpack.c.l.b16 %v1101
    %v3496 = vunpack.c.h.b16 %v1101
    %v3497 = vunpack.c.l.b16 %v1102
    %v3498 = vunpack.c.h.b16 %v1102
    %v3499 = vunpack.c.l.b16 %v1103
    %v3500 = vunpack.c.h.b16 %v1103
    %v3501 = vunpack.c.l.b16 %v1104
    %v3502 = vunpack.c.h.b16 %v1104
    %v3503 = vunpack.c.l.b16 %v1105
    %v3504 = vunpack.c.h.b16 %v1105
    %v3505 = vunpack.c.l.b16 %v1106
    %v3506 = vunpack.c.h.b16 %v1106
    %v3507 = vunpack.c.l.b16 %v1107
    %v3508 = vunpack.c.h.b16 %v1107
    %v3509 = vunpack.c.l.b16 %v1108
    %v3510 = vunpack.c.h.b16 %v1108
    %v3511 = vunpack.c.l.b16 %v1109
    %v3512 = vunpack.c.h.b16 %v1109
    %v3513 = vunpack.c.l.b16 %v1110
    %v3514 = vunpack.c.h.b16 %v1110
    %v3515 = vunpack.c.l.b16 %v1111
    %v3516 = vunpack.c.h.b16 %v1111
    %v3517 = vunpack.c.l.b16 %v1112
    %v3518 = vunpack.c.h.b16 %v1112
    %v3519 = vunpack.c.l.b16 %v1113
    %v3520 = vunpack.c.h.b16 %v1113
    %v3521 = vunpack.c.l.b16 %v1114
    %v3522 = vunpack.c.h.b16 %v1114
    %v3523 = vunpack.c.l.b16 %v1115
    %v3524 = vunpack.c.h.b16 %v1115
    %v3525 = vunpack.c.l.b16 %v1116
    %v3526 = vunpack.c.h.b16 %v1116
    %v3527 = vunpack.c.l.b16 %v1117
    %v3528 = vunpack.c.h.b16 %v1117
    %v3529 = vunpack.c.l.b16 %v1118
    %v3530 = vunpack.c.h.b16 %v1118
    %v3531 = vunpack.c.l.b16 %v1119
    %v3532 = vunpack.c.h.b16 %v1119
    %v3533 = vunpack.c.l.b16 %v1120
    %v3534 = vunpack.c.h.b16 %v1120
    %v3535 = vunpack.c.l.b16 %v1121
    %v3536 = vunpack.c.h.b16 %v1121
    %v3537 = vunpack.c.l.b16 %v1122
    %v3538 = vunpack.c.h.b16 %v1122
    %v3539 = vunpack.c.l.b16 %v1123
    %v3540 = vunpack.c.h.b16 %v1123
    %v3541 = vunpack.c.l.b16 %v1124
    %v3542 = vunpack.c.h.b16 %v1124
    %v3543 = vunpack.c.l.b16 %v1125
    %v3544 = vunpack.c.h.b16 %v1125
    %v3545 = vunpack.c.l.b16 %v1126
    %v3546 = vunpack.c.h.b16 %v1126
    %v3547 = vunpack.c.l.b16 %v1127
    %v3548 = vunpack.c.h.b16 %v1127
    %v3549 = vunpack.c.l.b16 %v1128
    %v3550 = vunpack.c.h.b16 %v1128
    %v3551 = vunpack.c.l.b16 %v1129
    %v3552 = vunpack.c.h.b16 %v1129
    %v3553 = vunpack.c.l.b16 %v1130
    %v3554 = vunpack.c.h.b16 %v1130
    %v3555 = vunpack.c.l.b16 %v1131
    %v3556 = vunpack.c.h.b16 %v1131
    %v3557 = vunpack.c.l.b16 %v1132
    %v3558 = vunpack.c.h.b16 %v1132
    %v3559 = vunpack.c.l.b16 %v1133
    %v3560 = vunpack.c.h.b16 %v1133
    %v3561 = vunpack.c.l.b16 %v1134
    %v3562 = vunpack.c.h.b16 %v1134
    %v3563 = vunpack.c.l.b16 %v1135
    %v3564 = vunpack.c.h.b16 %v1135
    %v3565 = vunpack.c.l.b16 %v1136
    %v3566 = vunpack.c.h.b16 %v1136
    %v3567 = vpack.c.b16 %v2931, %v2927
    %v3568 = vpack.c.b16 %v2932, %v2928
    %v3569 = vpack.c.b16 %v2933, %v2929
    %v3570 = vpack.c.b16 %v2934, %v2930
    %v3571 = vpack.c.b16 %v2939, %v2935
    %v3572 = vpack.c.b16 %v2940, %v2936
    %v3573 = vpack.c.b16 %v2941, %v2937
    %v3574 = vpack.c.b16 %v2942, %v2938
    %v3575 = vpack.c.b16 %v2947, %v2943
    %v3576 = vpack.c.b16 %v2948, %v2944
    %v3577 = vpack.c.b16 %v2949, %v2945
    %v3578 = vpack.c.b16 %v2950, %v2946
    %v3579 = vpack.c.b16 %v2955, %v2951
    %v3580 = vpack.c.b16 %v2956, %v2952
    %v3581 = vpack.c.b16 %v2957, %v2953
    %v3582 = vpack.c.b16 %v2958, %v2954
    %v3583 = vpack.c.b16 %v2963, %v2959
    %v3584 = vpack.c.b16 %v2964, %v2960
    %v3585 = vpack.c.b16 %v2965, %v2961
    %v3586 = vpack.c.b16 %v2966, %v2962
    %v3587 = vpack.c.b16 %v2971, %v2967
    %v3588 = vpack.c.b16 %v2972, %v2968
    %v3589 = vpack.c.b16 %v2973, %v2969
    %v3590 = vpack.c.b16 %v2974, %v2970
    %v3591 = vpack.c.b16 %v2979, %v2975
    %v3592 = vpack.c.b16 %v2980, %v2976
    %v3593 = vpack.c.b16 %v2981, %v2977
    %v3594 = vpack.c.b16 %v2982, %v2978
    %v3595 = vpack.c.b16 %v2987, %v2983
    %v3596 = vpack.c.b16 %v2988, %v2984
    %v3597 = vpack.c.b16 %v2989, %v2985
    %v3598 = vpack.c.b16 %v2990, %v2986
    %v3599 = vpack.c.b16 %v2995, %v2991
    %v3600 = vpack.c.b16 %v2996, %v2992
    %v3601 = vpack.c.b16 %v2997, %v2993
    %v3602 = vpack.c.b16 %v2998, %v2994
    %v3603 = vpack.c.b16 %v3003, %v2999
    %v3604 = vpack.c.b16 %v3004, %v3000
    %v3605 = vpack.c.b16 %v3005, %v3001
    %v3606 = vpack.c.b16 %v3006, %v3002
    %v3607 = vpack.c.b16 %v3011, %v3007
    %v3608 = vpack.c.b16 %v3012, %v3008
    %v3609 = vpack.c.b16 %v3013, %v3009
    %v3610 = vpack.c.b16 %v3014, %v3010
    %v3611 = vpack.c.b16 %v3019, %v3015
    %v3612 = vpack.c.b16 %v3020, %v3016
    %v3613 = vpack.c.b16 %v3021, %v3017
    %v3614 = vpack.c.b16 %v3022, %v3018
    %v3615 = vpack.c.b16 %v3027, %v3023
    %v3616 = vpack.c.b16 %v3028, %v3024
    %v3617 = vpack.c.b16 %v3029, %v3025
    %v3618 = vpack.c.b16 %v3030, %v3026
    %v3619 = vpack.c.b16 %v3035, %v3031
    %v3620 = vpack.c.b16 %v3036, %v3032
    %v3621 = vpack.c.b16 %v3037, %v3033
    %v3622 = vpack.c.b16 %v3038, %v3034
    %v3623 = vpack.c.b16 %v3043, %v3039
    %v3624 = vpack.c.b16 %v3044, %v3040
    %v3625 = vpack.c.b16 %v3045, %v3041
    %v3626 = vpack.c.b16 %v3046, %v3042
    %v3627 = vpack.c.b16 %v3051, %v3047
    %v3628 = vpack.c.b16 %v3052, %v3048
    %v3629 = vpack.c.b16 %v3053, %v3049
    %v3630 = vpack.c.b16 %v3054, %v3050
    %v3631 = vpack.c.b16 %v3059, %v3055
    %v3632 = vpack.c.b16 %v3060, %v3056
    %v3633 = vpack.c.b16 %v3061, %v3057
    %v3634 = vpack.c.b16 %v3062, %v3058
    %v3635 = vpack.c.b16 %v3067, %v3063
    %v3636 = vpack.c.b16 %v3068, %v3064
    %v3637 = vpack.c.b16 %v3069, %v3065
    %v3638 = vpack.c.b16 %v3070, %v3066
    %v3639 = vpack.c.b16 %v3075, %v3071
    %v3640 = vpack.c.b16 %v3076, %v3072
    %v3641 = vpack.c.b16 %v3077, %v3073
    %v3642 = vpack.c.b16 %v3078, %v3074
    %v3643 = vpack.c.b16 %v3083, %v3079
    %v3644 = vpack.c.b16 %v3084, %v3080
    %v3645 = vpack.c.b16 %v3085, %v3081
    %v3646 = vpack.c.b16 %v3086, %v3082
    %v3647 = vpack.c.b16 %v3091, %v3087
    %v3648 = vpack.c.b16 %v3092, %v3088
    %v3649 = vpack.c.b16 %v3093, %v3089
    %v3650 = vpack.c.b16 %v3094, %v3090
    %v3651 = vpack.c.b16 %v3099, %v3095
    %v3652 = vpack.c.b16 %v3100, %v3096
    %v3653 = vpack.c.b16 %v3101, %v3097
    %v3654 = vpack.c.b16 %v3102, %v3098
    %v3655 = vpack.c.b16 %v3107, %v3103
    %v3656 = vpack.c.b16 %v3108, %v3104
    %v3657 = vpack.c.b16 %v3109, %v3105
    %v3658 = vpack.c.b16 %v3110, %v3106
    %v3659 = vpack.c.b16 %v3115, %v3111
    %v3660 = vpack.c.b16 %v3116, %v3112
    %v3661 = vpack.c.b16 %v3117, %v3113
    %v3662 = vpack.c.b16 %v3118, %v3114
    %v3663 = vpack.c.b16 %v3123, %v3119
    %v3664 = vpack.c.b16 %v3124, %v3120
    %v3665 = vpack.c.b16 %v3125, %v3121
    %v3666 = vpack.c.b16 %v3126, %v3122
    %v3667 = vpack.c.b16 %v3131, %v3127
    %v3668 = vpack.c.b16 %v3132, %v3128
    %v3669 = vpack.c.b16 %v3133, %v3129
    %v3670 = vpack.c.b16 %v3134, %v3130
    %v3671 = vpack.c.b16 %v3139, %v3135
    %v3672 = vpack.c.b16 %v3140, %v3136
    %v3673 = vpack.c.b16 %v3141, %v3137
    %v3674 = vpack.c.b16 %v3142, %v3138
    %v3675 = vpack.c.b16 %v3147, %v3143
    %v3676 = vpack.c.b16 %v3148, %v3144
    %v3677 = vpack.c.b16 %v3149, %v3145
    %v3678 = vpack.c.b16 %v3150, %v3146
    %v3679 = vpack.c.b16 %v3155, %v3151
    %v3680 = vpack.c.b16 %v3156, %v3152
    %v3681 = vpack.c.b16 %v3157, %v3153
    %v3682 = vpack.c.b16 %v3158, %v3154
    %v3683 = vpack.c.b16 %v3163, %v3159
    %v3684 = vpack.c.b16 %v3164, %v3160
    %v3685 = vpack.c.b16 %v3165, %v3161
    %v3686 = vpack.c.b16 %v3166, %v3162
    %v3687 = vpack.c.b16 %v3171, %v3167
    %v3688 = vpack.c.b16 %v3172, %v3168
    %v3689 = vpack.c.b16 %v3173, %v3169
    %v3690 = vpack.c.b16 %v3174, %v3170
    %v3691 = vpack.c.b16 %v3179, %v3175
    %v3692 = vpack.c.b16 %v3180, %v3176
    %v3693 = vpack.c.b16 %v3181, %v3177
    %v3694 = vpack.c.b16 %v3182, %v3178
    %v3695 = vpack.c.b16 %v3187, %v3183
    %v3696 = vpack.c.b16 %v3188, %v3184
    %v3697 = vpack.c.b16 %v3189, %v3185
    %v3698 = vpack.c.b16 %v3190, %v3186
    %v3699 = vpack.c.b16 %v3195, %v3191
    %v3700 = vpack.c.b16 %v3196, %v3192
    %v3701 = vpack.c.b16 %v3197, %v3193
    %v3702 = vpack.c.b16 %v3198, %v3194
    %v3703 = vpack.c.b16 %v3203, %v3199
    %v3704 = vpack.c.b16 %v3204, %v3200
    %v3705 = vpack.c.b16 %v3205, %v3201
    %v3706 = vpack.c.b16 %v3206, %v3202
    %v3707 = vpack.c.b16 %v3211, %v3207
    %v3708 = vpack.c.b16 %v3212, %v3208
    %v3709 = vpack.c.b16 %v3213, %v3209
    %v3710 = vpack.c.b16 %v3214, %v3210
    %v3711 = vpack.c.b16 %v3219, %v3215
    %v3712 = vpack.c.b16 %v3220, %v3216
    %v3713 = vpack.c.b16 %v3221, %v3217
    %v3714 = vpack.c.b16 %v3222, %v3218
    %v3715 = vpack.c.b16 %v3227, %v3223
    %v3716 = vpack.c.b16 %v3228, %v3224
    %v3717 = vpack.c.b16 %v3229, %v3225
    %v3718 = vpack.c.b16 %v3230, %v3226
    %v3719 = vpack.c.b16 %v3235, %v3231
    %v3720 = vpack.c.b16 %v3236, %v3232
    %v3721 = vpack.c.b16 %v3237, %v3233
    %v3722 = vpack.c.b16 %v3238, %v3234
    %v3723 = vpack.c.b16 %v3243, %v3239
    %v3724 = vpack.c.b16 %v3244, %v3240
    %v3725 = vpack.c.b16 %v3245, %v3241
    %v3726 = vpack.c.b16 %v3246, %v3242
    %v3727 = vpack.c.b16 %v3251, %v3247
    %v3728 = vpack.c.b16 %v3252, %v3248
    %v3729 = vpack.c.b16 %v3253, %v3249
    %v3730 = vpack.c.b16 %v3254, %v3250
    %v3731 = vpack.c.b16 %v3259, %v3255
    %v3732 = vpack.c.b16 %v3260, %v3256
    %v3733 = vpack.c.b16 %v3261, %v3257
    %v3734 = vpack.c.b16 %v3262, %v3258
    %v3735 = vpack.c.b16 %v3267, %v3263
    %v3736 = vpack.c.b16 %v3268, %v3264
    %v3737 = vpack.c.b16 %v3269, %v3265
    %v3738 = vpack.c.b16 %v3270, %v3266
    %v3739 = vpack.c.b16 %v3275, %v3271
    %v3740 = vpack.c.b16 %v3276, %v3272
    %v3741 = vpack.c.b16 %v3277, %v3273
    %v3742 = vpack.c.b16 %v3278, %v3274
    %v3743 = vpack.c.b16 %v3283, %v3279
    %v3744 = vpack.c.b16 %v3284, %v3280
    %v3745 = vpack.c.b16 %v3285, %v3281
    %v3746 = vpack.c.b16 %v3286, %v3282
    %v3747 = vpack.c.b16 %v3291, %v3287
    %v3748 = vpack.c.b16 %v3292, %v3288
    %v3749 = vpack.c.b16 %v3293, %v3289
    %v3750 = vpack.c.b16 %v3294, %v3290
    %v3751 = vpack.c.b16 %v3299, %v3295
    %v3752 = vpack.c.b16 %v3300, %v3296
    %v3753 = vpack.c.b16 %v3301, %v3297
    %v3754 = vpack.c.b16 %v3302, %v3298
    %v3755 = vpack.c.b16 %v3307, %v3303
    %v3756 = vpack.c.b16 %v3308, %v3304
    %v3757 = vpack.c.b16 %v3309, %v3305
    %v3758 = vpack.c.b16 %v3310, %v3306
    %v3759 = vpack.c.b16 %v3315, %v3311
    %v3760 = vpack.c.b16 %v3316, %v3312
    %v3761 = vpack.c.b16 %v3317, %v3313
    %v3762 = vpack.c.b16 %v3318, %v3314
    %v3763 = vpack.c.b16 %v3323, %v3319
    %v3764 = vpack.c.b16 %v3324, %v3320
    %v3765 = vpack.c.b16 %v3325, %v3321
    %v3766 = vpack.c.b16 %v3326, %v3322
    %v3767 = vpack.c.b16 %v3331, %v3327
    %v3768 = vpack.c.b16 %v3332, %v3328
    %v3769 = vpack.c.b16 %v3333, %v3329
    %v3770 = vpack.c.b16 %v3334, %v3330
    %v3771 = vpack.c.b16 %v3339, %v3335
    %v3772 = vpack.c.b16 %v3340, %v3336
    %v3773 = vpack.c.b16 %v3341, %v3337
    %v3774 = vpack.c.b16 %v3342, %v3338
    %v3775 = vpack.c.b16 %v3347, %v3343
    %v3776 = vpack.c.b16 %v3348, %v3344
    %v3777 = vpack.c.b16 %v3349, %v3345
    %v3778 = vpack.c.b16 %v3350, %v3346
    %v3779 = vpack.c.b16 %v3355, %v3351
    %v3780 = vpack.c.b16 %v3356, %v3352
    %v3781 = vpack.c.b16 %v3357, %v3353
    %v3782 = vpack.c.b16 %v3358, %v3354
    %v3783 = vpack.c.b16 %v3363, %v3359
    %v3784 = vpack.c.b16 %v3364, %v3360
    %v3785 = vpack.c.b16 %v3365, %v3361
    %v3786 = vpack.c.b16 %v3366, %v3362
    %v3787 = vpack.c.b16 %v3371, %v3367
    %v3788 = vpack.c.b16 %v3372, %v3368
    %v3789 = vpack.c.b16 %v3373, %v3369
    %v3790 = vpack.c.b16 %v3374, %v3370
    %v3791 = vpack.c.b16 %v3379, %v3375
    %v3792 = vpack.c.b16 %v3380, %v3376
    %v3793 = vpack.c.b16 %v3381, %v3377
    %v3794 = vpack.c.b16 %v3382, %v3378
    %v3795 = vpack.c.b16 %v3387, %v3383
    %v3796 = vpack.c.b16 %v3388, %v3384
    %v3797 = vpack.c.b16 %v3389, %v3385
    %v3798 = vpack.c.b16 %v3390, %v3386
    %v3799 = vpack.c.b16 %v3395, %v3391
    %v3800 = vpack.c.b16 %v3396, %v3392
    %v3801 = vpack.c.b16 %v3397, %v3393
    %v3802 = vpack.c.b16 %v3398, %v3394
    %v3803 = vpack.c.b16 %v3403, %v3399
    %v3804 = vpack.c.b16 %v3404, %v3400
    %v3805 = vpack.c.b16 %v3405, %v3401
    %v3806 = vpack.c.b16 %v3406, %v3402
    %v3807 = vpack.c.b16 %v3411, %v3407
    %v3808 = vpack.c.b16 %v3412, %v3408
    %v3809 = vpack.c.b16 %v3413, %v3409
    %v3810 = vpack.c.b16 %v3414, %v3410
    %v3811 = vpack.c.b16 %v3419, %v3415
    %v3812 = vpack.c.b16 %v3420, %v3416
    %v3813 = vpack.c.b16 %v3421, %v3417
    %v3814 = vpack.c.b16 %v3422, %v3418
    %v3815 = vpack.c.b16 %v3427, %v3423
    %v3816 = vpack.c.b16 %v3428, %v3424
    %v3817 = vpack.c.b16 %v3429, %v3425
    %v3818 = vpack.c.b16 %v3430, %v3426
    %v3819 = vpack.c.b16 %v3435, %v3431
    %v3820 = vpack.c.b16 %v3436, %v3432
    %v3821 = vpack.c.b16 %v3437, %v3433
    %v3822 = vpack.c.b16 %v3438, %v3434
    %v3823 = vpack.c.b16 %v3443, %v3439
    %v3824 = vpack.c.b16 %v3444, %v3440
    %v3825 = vpack.c.b16 %v3445, %v3441
    %v3826 = vpack.c.b16 %v3446, %v3442
    %v3827 = vpack.c.b16 %v3451, %v3447
    %v3828 = vpack.c.b16 %v3452, %v3448
    %v3829 = vpack.c.b16 %v3453, %v3449
    %v3830 = vpack.c.b16 %v3454, %v3450
    %v3831 = vpack.c.b16 %v3459, %v3455
    %v3832 = vpack.c.b16 %v3460, %v3456
    %v3833 = vpack.c.b16 %v3461, %v3457
    %v3834 = vpack.c.b16 %v3462, %v3458
    %v3835 = vpack.c.b16 %v3467, %v3463
    %v3836 = vpack.c.b16 %v3468, %v3464
    %v3837 = vpack.c.b16 %v3469, %v3465
    %v3838 = vpack.c.b16 %v3470, %v3466
    %v3839 = vpack.c.b16 %v3475, %v3471
    %v3840 = vpack.c.b16 %v3476, %v3472
    %v3841 = vpack.c.b16 %v3477, %v3473
    %v3842 = vpack.c.b16 %v3478, %v3474
    %v3843 = vpack.c.b16 %v3483, %v3479
    %v3844 = vpack.c.b16 %v3484, %v3480
    %v3845 = vpack.c.b16 %v3485, %v3481
    %v3846 = vpack.c.b16 %v3486, %v3482
    %v3847 = vpack.c.b16 %v3491, %v3487
    %v3848 = vpack.c.b16 %v3492, %v3488
    %v3849 = vpack.c.b16 %v3493, %v3489
    %v3850 = vpack.c.b16 %v3494, %v3490
    %v3851 = vpack.c.b16 %v3499, %v3495
    %v3852 = vpack.c.b16 %v3500, %v3496
    %v3853 = vpack.c.b16 %v3501, %v3497
    %v3854 = vpack.c.b16 %v3502, %v3498
    %v3855 = vpack.c.b16 %v3507, %v3503
    %v3856 = vpack.c.b16 %v3508, %v3504
    %v3857 = vpack.c.b16 %v3509, %v3505
    %v3858 = vpack.c.b16 %v3510, %v3506
    %v3859 = vpack.c.b16 %v3515, %v3511
    %v3860 = vpack.c.b16 %v3516, %v3512
    %v3861 = vpack.c.b16 %v3517, %v3513
    %v3862 = vpack.c.b16 %v3518, %v3514
    %v3863 = vpack.c.b16 %v3523, %v3519
    %v3864 = vpack.c.b16 %v3524, %v3520
    %v3865 = vpack.c.b16 %v3525, %v3521
    %v3866 = vpack.c.b16 %v3526, %v3522
    %v3867 = vpack.c.b16 %v3531, %v3527
    %v3868 = vpack.c.b16 %v3532, %v3528
    %v3869 = vpack.c.b16 %v3533, %v3529
    %v3870 = vpack.c.b16 %v3534, %v3530
    %v3871 = vpack.c.b16 %v3539, %v3535
    %v3872 = vpack.c.b16 %v3540, %v3536
    %v3873 = vpack.c.b16 %v3541, %v3537
    %v3874 = vpack.c.b16 %v3542, %v3538
    %v3875 = vpack.c.b16 %v3547, %v3543
    %v3876 = vpack.c.b16 %v3548, %v3544
    %v3877 = vpack.c.b16 %v3549, %v3545
    %v3878 = vpack.c.b16 %v3550, %v3546
    %v3879 = vpack.c.b16 %v3555, %v3551
    %v3880 = vpack.c.b16 %v3556, %v3552
    %v3881 = vpack.c.b16 %v3557, %v3553
    %v3882 = vpack.c.b16 %v3558, %v3554
    %v3883 = vpack.c.b16 %v3563, %v3559
    %v3884 = vpack.c.b16 %v3564, %v3560
    %v3885 = vpack.c.b16 %v3565, %v3561
    %v3886 = vpack.c.b16 %v3566, %v3562
    %4207 = vmatpush.bf16.msra.mxu0 %v3595
    %4208 = vmatpush.bf16.msra.mxu0 %v3591
    %4209 = vmatpush.bf16.msra.mxu0 %v3587
    %4210 = vmatpush.bf16.msra.mxu0 %v3583
    %4211 = vmatpush.bf16.msra.mxu0 %v3579
    %4212 = vmatpush.bf16.msra.mxu0 %v3575
    %4213 = vmatpush.bf16.msra.mxu0 %v3571
    %4214 = vmatpush.bf16.msra.mxu0 %v3567
    %4215 = vmatmul.bf16.gmra.mxu0 %v807
    %v4216 = vpop.f32.mrf.mxu0
    %v4217 = vadd.f32 %v2370, %v4216
    %v4218 = vpop.f32.mrf.mxu0
    %4219 = vdwg.mxu0
    %4220 = vmatpush.bf16.msra.mxu0 %v3627
    %4221 = vmatpush.bf16.msra.mxu0 %v3623
    %4222 = vmatpush.bf16.msra.mxu0 %v3619
    %4223 = vmatpush.bf16.msra.mxu0 %v3615
    %4224 = vmatpush.bf16.msra.mxu0 %v3611
    %4225 = vmatpush.bf16.msra.mxu0 %v3607
    %4226 = vmatpush.bf16.msra.mxu0 %v3603
    %4227 = vmatpush.bf16.msra.mxu0 %v3599
    %4228 = vmatmul.bf16.gmra.mxu0 %v808
    %v4229 = vpop.f32.mrf.mxu0
    %v4230 = vadd.f32 %v4217, %v4229
    %v4231 = vpop.f32.mrf.mxu0
    %4232 = vdwg.mxu0
    %4233 = vmatpush.bf16.msra.mxu0 %v3659
    %4234 = vmatpush.bf16.msra.mxu0 %v3655
    %4235 = vmatpush.bf16.msra.mxu0 %v3651
    %4236 = vmatpush.bf16.msra.mxu0 %v3647
    %4237 = vmatpush.bf16.msra.mxu0 %v3643
    %4238 = vmatpush.bf16.msra.mxu0 %v3639
    %4239 = vmatpush.bf16.msra.mxu0 %v3635
    %4240 = vmatpush.bf16.msra.mxu0 %v3631
    %4241 = vmatmul.bf16.gmra.mxu0 %v809
    %v4242 = vpop.f32.mrf.mxu0
    %v4243 = vadd.f32 %v4230, %v4242
    %v4244 = vpop.f32.mrf.mxu0
    %4245 = vdwg.mxu0
    %4246 = vmatpush.bf16.msra.mxu0 %v3691
    %4247 = vmatpush.bf16.msra.mxu0 %v3687
    %4248 = vmatpush.bf16.msra.mxu0 %v3683
    %4249 = vmatpush.bf16.msra.mxu0 %v3679
    %4250 = vmatpush.bf16.msra.mxu0 %v3675
    %4251 = vmatpush.bf16.msra.mxu0 %v3671
    %4252 = vmatpush.bf16.msra.mxu0 %v3667
    %4253 = vmatpush.bf16.msra.mxu0 %v3663
    %4254 = vmatmul.bf16.gmra.mxu0 %v810
    %v4255 = vpop.f32.mrf.mxu0
    %v4256 = vadd.f32 %v4243, %v4255
    %v4257 = vpop.f32.mrf.mxu0
    %4258 = vdwg.mxu0
    %4259 = vmatpush.bf16.msra.mxu0 %v3723
    %4260 = vmatpush.bf16.msra.mxu0 %v3719
    %4261 = vmatpush.bf16.msra.mxu0 %v3715
    %4262 = vmatpush.bf16.msra.mxu0 %v3711
    %4263 = vmatpush.bf16.msra.mxu0 %v3707
    %4264 = vmatpush.bf16.msra.mxu0 %v3703
    %4265 = vmatpush.bf16.msra.mxu0 %v3699
    %4266 = vmatpush.bf16.msra.mxu0 %v3695
    %4267 = vmatmul.bf16.gmra.mxu0 %v811
    %v4268 = vpop.f32.mrf.mxu0
    %v4269 = vadd.f32 %v4256, %v4268
    %v4270 = vpop.f32.mrf.mxu0
    %4271 = vdwg.mxu0
    %4272 = vmatpush.bf16.msra.mxu0 %v3755
    %4273 = vmatpush.bf16.msra.mxu0 %v3751
    %4274 = vmatpush.bf16.msra.mxu0 %v3747
    %4275 = vmatpush.bf16.msra.mxu0 %v3743
    %4276 = vmatpush.bf16.msra.mxu0 %v3739
    %4277 = vmatpush.bf16.msra.mxu0 %v3735
    %4278 = vmatpush.bf16.msra.mxu0 %v3731
    %4279 = vmatpush.bf16.msra.mxu0 %v3727
    %4280 = vmatmul.bf16.gmra.mxu0 %v812
    %v4281 = vpop.f32.mrf.mxu0
    %v4282 = vadd.f32 %v4269, %v4281
    %v4283 = vpop.f32.mrf.mxu0
    %4284 = vdwg.mxu0
    %4285 = vmatpush.bf16.msra.mxu0 %v3787
    %4286 = vmatpush.bf16.msra.mxu0 %v3783
    %4287 = vmatpush.bf16.msra.mxu0 %v3779
    %4288 = vmatpush.bf16.msra.mxu0 %v3775
    %4289 = vmatpush.bf16.msra.mxu0 %v3771
    %4290 = vmatpush.bf16.msra.mxu0 %v3767
    %4291 = vmatpush.bf16.msra.mxu0 %v3763
    %4292 = vmatpush.bf16.msra.mxu0 %v3759
    %4293 = vmatmul.bf16.gmra.mxu0 %v813
    %v4294 = vpop.f32.mrf.mxu0
    %v4295 = vadd.f32 %v4282, %v4294
    %v4296 = vpop.f32.mrf.mxu0
    %4297 = vdwg.mxu0
    %4298 = vmatpush.bf16.msra.mxu0 %v3819
    %4299 = vmatpush.bf16.msra.mxu0 %v3815
    %4300 = vmatpush.bf16.msra.mxu0 %v3811
    %4301 = vmatpush.bf16.msra.mxu0 %v3807
    %4302 = vmatpush.bf16.msra.mxu0 %v3803
    %4303 = vmatpush.bf16.msra.mxu0 %v3799
    %4304 = vmatpush.bf16.msra.mxu0 %v3795
    %4305 = vmatpush.bf16.msra.mxu0 %v3791
    %4306 = vmatmul.bf16.gmra.mxu0 %v814
    %v4307 = vpop.f32.mrf.mxu0
    %v4308 = vadd.f32 %v4295, %v4307
    %v4309 = vpop.f32.mrf.mxu0
    %4310 = vdwg.mxu0
    %4311 = vmatpush.bf16.msra.mxu0 %v3851
    %4312 = vmatpush.bf16.msra.mxu0 %v3847
    %4313 = vmatpush.bf16.msra.mxu0 %v3843
    %4314 = vmatpush.bf16.msra.mxu0 %v3839
    %4315 = vmatpush.bf16.msra.mxu0 %v3835
    %4316 = vmatpush.bf16.msra.mxu0 %v3831
    %4317 = vmatpush.bf16.msra.mxu0 %v3827
    %4318 = vmatpush.bf16.msra.mxu0 %v3823
    %4319 = vmatmul.bf16.gmra.mxu0 %v815
    %v4320 = vpop.f32.mrf.mxu0
    %v4321 = vadd.f32 %v4308, %v4320
    %v4322 = vpop.f32.mrf.mxu0
    %4323 = vdwg.mxu0
    %4324 = vmatpush.bf16.msra.mxu0 %v3883
    %4325 = vmatpush.bf16.msra.mxu0 %v3879
    %4326 = vmatpush.bf16.msra.mxu0 %v3875
    %4327 = vmatpush.bf16.msra.mxu0 %v3871
    %4328 = vmatpush.bf16.msra.mxu0 %v3867
    %4329 = vmatpush.bf16.msra.mxu0 %v3863
    %4330 = vmatpush.bf16.msra.mxu0 %v3859
    %4331 = vmatpush.bf16.msra.mxu0 %v3855
    %4332 = vmatmul.bf16.gmra.mxu0 %v816
    %v4333 = vpop.f32.mrf.mxu0
    %v4334 = vadd.f32 %v4321, %v4333
    %v4335 = vpop.f32.mrf.mxu0
    %4336 = vdwg.mxu0
    %4337 = vmatpush.bf16.msra.mxu0 %v3596
    %4338 = vmatpush.bf16.msra.mxu0 %v3592
    %4339 = vmatpush.bf16.msra.mxu0 %v3588
    %4340 = vmatpush.bf16.msra.mxu0 %v3584
    %4341 = vmatpush.bf16.msra.mxu0 %v3580
    %4342 = vmatpush.bf16.msra.mxu0 %v3576
    %4343 = vmatpush.bf16.msra.mxu0 %v3572
    %4344 = vmatpush.bf16.msra.mxu0 %v3568
    %4345 = vmatmul.bf16.gmra.mxu0 %v807
    %v4346 = vpop.f32.mrf.mxu0
    %v4347 = vadd.f32 %v2448, %v4346
    %v4348 = vpop.f32.mrf.mxu0
    %4349 = vdwg.mxu0
    %4350 = vmatpush.bf16.msra.mxu0 %v3628
    %4351 = vmatpush.bf16.msra.mxu0 %v3624
    %4352 = vmatpush.bf16.msra.mxu0 %v3620
    %4353 = vmatpush.bf16.msra.mxu0 %v3616
    %4354 = vmatpush.bf16.msra.mxu0 %v3612
    %4355 = vmatpush.bf16.msra.mxu0 %v3608
    %4356 = vmatpush.bf16.msra.mxu0 %v3604
    %4357 = vmatpush.bf16.msra.mxu0 %v3600
    %4358 = vmatmul.bf16.gmra.mxu0 %v808
    %v4359 = vpop.f32.mrf.mxu0
    %v4360 = vadd.f32 %v4347, %v4359
    %v4361 = vpop.f32.mrf.mxu0
    %4362 = vdwg.mxu0
    %4363 = vmatpush.bf16.msra.mxu0 %v3660
    %4364 = vmatpush.bf16.msra.mxu0 %v3656
    %4365 = vmatpush.bf16.msra.mxu0 %v3652
    %4366 = vmatpush.bf16.msra.mxu0 %v3648
    %4367 = vmatpush.bf16.msra.mxu0 %v3644
    %4368 = vmatpush.bf16.msra.mxu0 %v3640
    %4369 = vmatpush.bf16.msra.mxu0 %v3636
    %4370 = vmatpush.bf16.msra.mxu0 %v3632
    %4371 = vmatmul.bf16.gmra.mxu0 %v809
    %v4372 = vpop.f32.mrf.mxu0
    %v4373 = vadd.f32 %v4360, %v4372
    %v4374 = vpop.f32.mrf.mxu0
    %4375 = vdwg.mxu0
    %4376 = vmatpush.bf16.msra.mxu0 %v3692
    %4377 = vmatpush.bf16.msra.mxu0 %v3688
    %4378 = vmatpush.bf16.msra.mxu0 %v3684
    %4379 = vmatpush.bf16.msra.mxu0 %v3680
    %4380 = vmatpush.bf16.msra.mxu0 %v3676
    %4381 = vmatpush.bf16.msra.mxu0 %v3672
    %4382 = vmatpush.bf16.msra.mxu0 %v3668
    %4383 = vmatpush.bf16.msra.mxu0 %v3664
    %4384 = vmatmul.bf16.gmra.mxu0 %v810
    %v4385 = vpop.f32.mrf.mxu0
    %v4386 = vadd.f32 %v4373, %v4385
    %v4387 = vpop.f32.mrf.mxu0
    %4388 = vdwg.mxu0
    %4389 = vmatpush.bf16.msra.mxu0 %v3724
    %4390 = vmatpush.bf16.msra.mxu0 %v3720
    %4391 = vmatpush.bf16.msra.mxu0 %v3716
    %4392 = vmatpush.bf16.msra.mxu0 %v3712
    %4393 = vmatpush.bf16.msra.mxu0 %v3708
    %4394 = vmatpush.bf16.msra.mxu0 %v3704
    %4395 = vmatpush.bf16.msra.mxu0 %v3700
    %4396 = vmatpush.bf16.msra.mxu0 %v3696
    %4397 = vmatmul.bf16.gmra.mxu0 %v811
    %v4398 = vpop.f32.mrf.mxu0
    %v4399 = vadd.f32 %v4386, %v4398
    %v4400 = vpop.f32.mrf.mxu0
    %4401 = vdwg.mxu0
    %4402 = vmatpush.bf16.msra.mxu0 %v3756
    %4403 = vmatpush.bf16.msra.mxu0 %v3752
    %4404 = vmatpush.bf16.msra.mxu0 %v3748
    %4405 = vmatpush.bf16.msra.mxu0 %v3744
    %4406 = vmatpush.bf16.msra.mxu0 %v3740
    %4407 = vmatpush.bf16.msra.mxu0 %v3736
    %4408 = vmatpush.bf16.msra.mxu0 %v3732
    %4409 = vmatpush.bf16.msra.mxu0 %v3728
    %4410 = vmatmul.bf16.gmra.mxu0 %v812
    %v4411 = vpop.f32.mrf.mxu0
    %v4412 = vadd.f32 %v4399, %v4411
    %v4413 = vpop.f32.mrf.mxu0
    %4414 = vdwg.mxu0
    %4415 = vmatpush.bf16.msra.mxu0 %v3788
    %4416 = vmatpush.bf16.msra.mxu0 %v3784
    %4417 = vmatpush.bf16.msra.mxu0 %v3780
    %4418 = vmatpush.bf16.msra.mxu0 %v3776
    %4419 = vmatpush.bf16.msra.mxu0 %v3772
    %4420 = vmatpush.bf16.msra.mxu0 %v3768
    %4421 = vmatpush.bf16.msra.mxu0 %v3764
    %4422 = vmatpush.bf16.msra.mxu0 %v3760
    %4423 = vmatmul.bf16.gmra.mxu0 %v813
    %v4424 = vpop.f32.mrf.mxu0
    %v4425 = vadd.f32 %v4412, %v4424
    %v4426 = vpop.f32.mrf.mxu0
    %4427 = vdwg.mxu0
    %4428 = vmatpush.bf16.msra.mxu0 %v3820
    %4429 = vmatpush.bf16.msra.mxu0 %v3816
    %4430 = vmatpush.bf16.msra.mxu0 %v3812
    %4431 = vmatpush.bf16.msra.mxu0 %v3808
    %4432 = vmatpush.bf16.msra.mxu0 %v3804
    %4433 = vmatpush.bf16.msra.mxu0 %v3800
    %4434 = vmatpush.bf16.msra.mxu0 %v3796
    %4435 = vmatpush.bf16.msra.mxu0 %v3792
    %4436 = vmatmul.bf16.gmra.mxu0 %v814
    %v4437 = vpop.f32.mrf.mxu0
    %v4438 = vadd.f32 %v4425, %v4437
    %v4439 = vpop.f32.mrf.mxu0
    %4440 = vdwg.mxu0
    %4441 = vmatpush.bf16.msra.mxu0 %v3852
    %4442 = vmatpush.bf16.msra.mxu0 %v3848
    %4443 = vmatpush.bf16.msra.mxu0 %v3844
    %4444 = vmatpush.bf16.msra.mxu0 %v3840
    %4445 = vmatpush.bf16.msra.mxu0 %v3836
    %4446 = vmatpush.bf16.msra.mxu0 %v3832
    %4447 = vmatpush.bf16.msra.mxu0 %v3828
    %4448 = vmatpush.bf16.msra.mxu0 %v3824
    %4449 = vmatmul.bf16.gmra.mxu0 %v815
    %v4450 = vpop.f32.mrf.mxu0
    %v4451 = vadd.f32 %v4438, %v4450
    %v4452 = vpop.f32.mrf.mxu0
    %4453 = vdwg.mxu0
    %4454 = vmatpush.bf16.msra.mxu0 %v3884
    %4455 = vmatpush.bf16.msra.mxu0 %v3880
    %4456 = vmatpush.bf16.msra.mxu0 %v3876
    %4457 = vmatpush.bf16.msra.mxu0 %v3872
    %4458 = vmatpush.bf16.msra.mxu0 %v3868
    %4459 = vmatpush.bf16.msra.mxu0 %v3864
    %4460 = vmatpush.bf16.msra.mxu0 %v3860
    %4461 = vmatpush.bf16.msra.mxu0 %v3856
    %4462 = vmatmul.bf16.gmra.mxu0 %v816
    %v4463 = vpop.f32.mrf.mxu0
    %v4464 = vadd.f32 %v4451, %v4463
    %v4465 = vpop.f32.mrf.mxu0
    %4466 = vdwg.mxu0
    %4467 = vmatpush.bf16.msra.mxu0 %v3597
    %4468 = vmatpush.bf16.msra.mxu0 %v3593
    %4469 = vmatpush.bf16.msra.mxu0 %v3589
    %4470 = vmatpush.bf16.msra.mxu0 %v3585
    %4471 = vmatpush.bf16.msra.mxu0 %v3581
    %4472 = vmatpush.bf16.msra.mxu0 %v3577
    %4473 = vmatpush.bf16.msra.mxu0 %v3573
    %4474 = vmatpush.bf16.msra.mxu0 %v3569
    %4475 = vmatmul.bf16.gmra.mxu0 %v807
    %v4476 = vpop.f32.mrf.mxu0
    %v4477 = vadd.f32 %v2526, %v4476
    %v4478 = vpop.f32.mrf.mxu0
    %4479 = vdwg.mxu0
    %4480 = vmatpush.bf16.msra.mxu0 %v3629
    %4481 = vmatpush.bf16.msra.mxu0 %v3625
    %4482 = vmatpush.bf16.msra.mxu0 %v3621
    %4483 = vmatpush.bf16.msra.mxu0 %v3617
    %4484 = vmatpush.bf16.msra.mxu0 %v3613
    %4485 = vmatpush.bf16.msra.mxu0 %v3609
    %4486 = vmatpush.bf16.msra.mxu0 %v3605
    %4487 = vmatpush.bf16.msra.mxu0 %v3601
    %4488 = vmatmul.bf16.gmra.mxu0 %v808
    %v4489 = vpop.f32.mrf.mxu0
    %v4490 = vadd.f32 %v4477, %v4489
    %v4491 = vpop.f32.mrf.mxu0
    %4492 = vdwg.mxu0
    %4493 = vmatpush.bf16.msra.mxu0 %v3661
    %4494 = vmatpush.bf16.msra.mxu0 %v3657
    %4495 = vmatpush.bf16.msra.mxu0 %v3653
    %4496 = vmatpush.bf16.msra.mxu0 %v3649
    %4497 = vmatpush.bf16.msra.mxu0 %v3645
    %4498 = vmatpush.bf16.msra.mxu0 %v3641
    %4499 = vmatpush.bf16.msra.mxu0 %v3637
    %4500 = vmatpush.bf16.msra.mxu0 %v3633
    %4501 = vmatmul.bf16.gmra.mxu0 %v809
    %v4502 = vpop.f32.mrf.mxu0
    %v4503 = vadd.f32 %v4490, %v4502
    %v4504 = vpop.f32.mrf.mxu0
    %4505 = vdwg.mxu0
    %4506 = vmatpush.bf16.msra.mxu0 %v3693
    %4507 = vmatpush.bf16.msra.mxu0 %v3689
    %4508 = vmatpush.bf16.msra.mxu0 %v3685
    %4509 = vmatpush.bf16.msra.mxu0 %v3681
    %4510 = vmatpush.bf16.msra.mxu0 %v3677
    %4511 = vmatpush.bf16.msra.mxu0 %v3673
    %4512 = vmatpush.bf16.msra.mxu0 %v3669
    %4513 = vmatpush.bf16.msra.mxu0 %v3665
    %4514 = vmatmul.bf16.gmra.mxu0 %v810
    %v4515 = vpop.f32.mrf.mxu0
    %v4516 = vadd.f32 %v4503, %v4515
    %v4517 = vpop.f32.mrf.mxu0
    %4518 = vdwg.mxu0
    %4519 = vmatpush.bf16.msra.mxu0 %v3725
    %4520 = vmatpush.bf16.msra.mxu0 %v3721
    %4521 = vmatpush.bf16.msra.mxu0 %v3717
    %4522 = vmatpush.bf16.msra.mxu0 %v3713
    %4523 = vmatpush.bf16.msra.mxu0 %v3709
    %4524 = vmatpush.bf16.msra.mxu0 %v3705
    %4525 = vmatpush.bf16.msra.mxu0 %v3701
    %4526 = vmatpush.bf16.msra.mxu0 %v3697
    %4527 = vmatmul.bf16.gmra.mxu0 %v811
    %v4528 = vpop.f32.mrf.mxu0
    %v4529 = vadd.f32 %v4516, %v4528
    %v4530 = vpop.f32.mrf.mxu0
    %4531 = vdwg.mxu0
    %4532 = vmatpush.bf16.msra.mxu0 %v3757
    %4533 = vmatpush.bf16.msra.mxu0 %v3753
    %4534 = vmatpush.bf16.msra.mxu0 %v3749
    %4535 = vmatpush.bf16.msra.mxu0 %v3745
    %4536 = vmatpush.bf16.msra.mxu0 %v3741
    %4537 = vmatpush.bf16.msra.mxu0 %v3737
    %4538 = vmatpush.bf16.msra.mxu0 %v3733
    %4539 = vmatpush.bf16.msra.mxu0 %v3729
    %4540 = vmatmul.bf16.gmra.mxu0 %v812
    %v4541 = vpop.f32.mrf.mxu0
    %v4542 = vadd.f32 %v4529, %v4541
    %v4543 = vpop.f32.mrf.mxu0
    %4544 = vdwg.mxu0
    %4545 = vmatpush.bf16.msra.mxu0 %v3789
    %4546 = vmatpush.bf16.msra.mxu0 %v3785
    %4547 = vmatpush.bf16.msra.mxu0 %v3781
    %4548 = vmatpush.bf16.msra.mxu0 %v3777
    %4549 = vmatpush.bf16.msra.mxu0 %v3773
    %4550 = vmatpush.bf16.msra.mxu0 %v3769
    %4551 = vmatpush.bf16.msra.mxu0 %v3765
    %4552 = vmatpush.bf16.msra.mxu0 %v3761
    %4553 = vmatmul.bf16.gmra.mxu0 %v813
    %v4554 = vpop.f32.mrf.mxu0
    %v4555 = vadd.f32 %v4542, %v4554
    %v4556 = vpop.f32.mrf.mxu0
    %4557 = vdwg.mxu0
    %4558 = vmatpush.bf16.msra.mxu0 %v3821
    %4559 = vmatpush.bf16.msra.mxu0 %v3817
    %4560 = vmatpush.bf16.msra.mxu0 %v3813
    %4561 = vmatpush.bf16.msra.mxu0 %v3809
    %4562 = vmatpush.bf16.msra.mxu0 %v3805
    %4563 = vmatpush.bf16.msra.mxu0 %v3801
    %4564 = vmatpush.bf16.msra.mxu0 %v3797
    %4565 = vmatpush.bf16.msra.mxu0 %v3793
    %4566 = vmatmul.bf16.gmra.mxu0 %v814
    %v4567 = vpop.f32.mrf.mxu0
    %v4568 = vadd.f32 %v4555, %v4567
    %v4569 = vpop.f32.mrf.mxu0
    %4570 = vdwg.mxu0
    %4571 = vmatpush.bf16.msra.mxu0 %v3853
    %4572 = vmatpush.bf16.msra.mxu0 %v3849
    %4573 = vmatpush.bf16.msra.mxu0 %v3845
    %4574 = vmatpush.bf16.msra.mxu0 %v3841
    %4575 = vmatpush.bf16.msra.mxu0 %v3837
    %4576 = vmatpush.bf16.msra.mxu0 %v3833
    %4577 = vmatpush.bf16.msra.mxu0 %v3829
    %4578 = vmatpush.bf16.msra.mxu0 %v3825
    %4579 = vmatmul.bf16.gmra.mxu0 %v815
    %v4580 = vpop.f32.mrf.mxu0
    %v4581 = vadd.f32 %v4568, %v4580
    %v4582 = vpop.f32.mrf.mxu0
    %4583 = vdwg.mxu0
    %4584 = vmatpush.bf16.msra.mxu0 %v3885
    %4585 = vmatpush.bf16.msra.mxu0 %v3881
    %4586 = vmatpush.bf16.msra.mxu0 %v3877
    %4587 = vmatpush.bf16.msra.mxu0 %v3873
    %4588 = vmatpush.bf16.msra.mxu0 %v3869
    %4589 = vmatpush.bf16.msra.mxu0 %v3865
    %4590 = vmatpush.bf16.msra.mxu0 %v3861
    %4591 = vmatpush.bf16.msra.mxu0 %v3857
    %4592 = vmatmul.bf16.gmra.mxu0 %v816
    %v4593 = vpop.f32.mrf.mxu0
    %v4594 = vadd.f32 %v4581, %v4593
    %v4595 = vpop.f32.mrf.mxu0
    %4596 = vdwg.mxu0
    %4597 = vmatpush.bf16.msra.mxu0 %v3598
    %4598 = vmatpush.bf16.msra.mxu0 %v3594
    %4599 = vmatpush.bf16.msra.mxu0 %v3590
    %4600 = vmatpush.bf16.msra.mxu0 %v3586
    %4601 = vmatpush.bf16.msra.mxu0 %v3582
    %4602 = vmatpush.bf16.msra.mxu0 %v3578
    %4603 = vmatpush.bf16.msra.mxu0 %v3574
    %4604 = vmatpush.bf16.msra.mxu0 %v3570
    %4605 = vmatmul.bf16.gmra.mxu0 %v807
    %v4606 = vpop.f32.mrf.mxu0
    %v4607 = vadd.f32 %v2604, %v4606
    %v4608 = vpop.f32.mrf.mxu0
    %4609 = vdwg.mxu0
    %4610 = vmatpush.bf16.msra.mxu0 %v3630
    %4611 = vmatpush.bf16.msra.mxu0 %v3626
    %4612 = vmatpush.bf16.msra.mxu0 %v3622
    %4613 = vmatpush.bf16.msra.mxu0 %v3618
    %4614 = vmatpush.bf16.msra.mxu0 %v3614
    %4615 = vmatpush.bf16.msra.mxu0 %v3610
    %4616 = vmatpush.bf16.msra.mxu0 %v3606
    %4617 = vmatpush.bf16.msra.mxu0 %v3602
    %4618 = vmatmul.bf16.gmra.mxu0 %v808
    %v4619 = vpop.f32.mrf.mxu0
    %v4620 = vadd.f32 %v4607, %v4619
    %v4621 = vpop.f32.mrf.mxu0
    %4622 = vdwg.mxu0
    %4623 = vmatpush.bf16.msra.mxu0 %v3662
    %4624 = vmatpush.bf16.msra.mxu0 %v3658
    %4625 = vmatpush.bf16.msra.mxu0 %v3654
    %4626 = vmatpush.bf16.msra.mxu0 %v3650
    %4627 = vmatpush.bf16.msra.mxu0 %v3646
    %4628 = vmatpush.bf16.msra.mxu0 %v3642
    %4629 = vmatpush.bf16.msra.mxu0 %v3638
    %4630 = vmatpush.bf16.msra.mxu0 %v3634
    %4631 = vmatmul.bf16.gmra.mxu0 %v809
    %v4632 = vpop.f32.mrf.mxu0
    %v4633 = vadd.f32 %v4620, %v4632
    %v4634 = vpop.f32.mrf.mxu0
    %4635 = vdwg.mxu0
    %4636 = vmatpush.bf16.msra.mxu0 %v3694
    %4637 = vmatpush.bf16.msra.mxu0 %v3690
    %4638 = vmatpush.bf16.msra.mxu0 %v3686
    %4639 = vmatpush.bf16.msra.mxu0 %v3682
    %4640 = vmatpush.bf16.msra.mxu0 %v3678
    %4641 = vmatpush.bf16.msra.mxu0 %v3674
    %4642 = vmatpush.bf16.msra.mxu0 %v3670
    %4643 = vmatpush.bf16.msra.mxu0 %v3666
    %4644 = vmatmul.bf16.gmra.mxu0 %v810
    %v4645 = vpop.f32.mrf.mxu0
    %v4646 = vadd.f32 %v4633, %v4645
    %v4647 = vpop.f32.mrf.mxu0
    %4648 = vdwg.mxu0
    %4649 = vmatpush.bf16.msra.mxu0 %v3726
    %4650 = vmatpush.bf16.msra.mxu0 %v3722
    %4651 = vmatpush.bf16.msra.mxu0 %v3718
    %4652 = vmatpush.bf16.msra.mxu0 %v3714
    %4653 = vmatpush.bf16.msra.mxu0 %v3710
    %4654 = vmatpush.bf16.msra.mxu0 %v3706
    %4655 = vmatpush.bf16.msra.mxu0 %v3702
    %4656 = vmatpush.bf16.msra.mxu0 %v3698
    %4657 = vmatmul.bf16.gmra.mxu0 %v811
    %v4658 = vpop.f32.mrf.mxu0
    %v4659 = vadd.f32 %v4646, %v4658
    %v4660 = vpop.f32.mrf.mxu0
    %4661 = vdwg.mxu0
    %4662 = vmatpush.bf16.msra.mxu0 %v3758
    %4663 = vmatpush.bf16.msra.mxu0 %v3754
    %4664 = vmatpush.bf16.msra.mxu0 %v3750
    %4665 = vmatpush.bf16.msra.mxu0 %v3746
    %4666 = vmatpush.bf16.msra.mxu0 %v3742
    %4667 = vmatpush.bf16.msra.mxu0 %v3738
    %4668 = vmatpush.bf16.msra.mxu0 %v3734
    %4669 = vmatpush.bf16.msra.mxu0 %v3730
    %4670 = vmatmul.bf16.gmra.mxu0 %v812
    %v4671 = vpop.f32.mrf.mxu0
    %v4672 = vadd.f32 %v4659, %v4671
    %v4673 = vpop.f32.mrf.mxu0
    %4674 = vdwg.mxu0
    %4675 = vmatpush.bf16.msra.mxu0 %v3790
    %4676 = vmatpush.bf16.msra.mxu0 %v3786
    %4677 = vmatpush.bf16.msra.mxu0 %v3782
    %4678 = vmatpush.bf16.msra.mxu0 %v3778
    %4679 = vmatpush.bf16.msra.mxu0 %v3774
    %4680 = vmatpush.bf16.msra.mxu0 %v3770
    %4681 = vmatpush.bf16.msra.mxu0 %v3766
    %4682 = vmatpush.bf16.msra.mxu0 %v3762
    %4683 = vmatmul.bf16.gmra.mxu0 %v813
    %v4684 = vpop.f32.mrf.mxu0
    %v4685 = vadd.f32 %v4672, %v4684
    %v4686 = vpop.f32.mrf.mxu0
    %4687 = vdwg.mxu0
    %4688 = vmatpush.bf16.msra.mxu0 %v3822
    %4689 = vmatpush.bf16.msra.mxu0 %v3818
    %4690 = vmatpush.bf16.msra.mxu0 %v3814
    %4691 = vmatpush.bf16.msra.mxu0 %v3810
    %4692 = vmatpush.bf16.msra.mxu0 %v3806
    %4693 = vmatpush.bf16.msra.mxu0 %v3802
    %4694 = vmatpush.bf16.msra.mxu0 %v3798
    %4695 = vmatpush.bf16.msra.mxu0 %v3794
    %4696 = vmatmul.bf16.gmra.mxu0 %v814
    %v4697 = vpop.f32.mrf.mxu0
    %v4698 = vadd.f32 %v4685, %v4697
    %v4699 = vpop.f32.mrf.mxu0
    %4700 = vdwg.mxu0
    %4701 = vmatpush.bf16.msra.mxu0 %v3854
    %4702 = vmatpush.bf16.msra.mxu0 %v3850
    %4703 = vmatpush.bf16.msra.mxu0 %v3846
    %4704 = vmatpush.bf16.msra.mxu0 %v3842
    %4705 = vmatpush.bf16.msra.mxu0 %v3838
    %4706 = vmatpush.bf16.msra.mxu0 %v3834
    %4707 = vmatpush.bf16.msra.mxu0 %v3830
    %4708 = vmatpush.bf16.msra.mxu0 %v3826
    %4709 = vmatmul.bf16.gmra.mxu0 %v815
    %v4710 = vpop.f32.mrf.mxu0
    %v4711 = vadd.f32 %v4698, %v4710
    %v4712 = vpop.f32.mrf.mxu0
    %4713 = vdwg.mxu0
    %4714 = vmatpush.bf16.msra.mxu0 %v3886
    %4715 = vmatpush.bf16.msra.mxu0 %v3882
    %4716 = vmatpush.bf16.msra.mxu0 %v3878
    %4717 = vmatpush.bf16.msra.mxu0 %v3874
    %4718 = vmatpush.bf16.msra.mxu0 %v3870
    %4719 = vmatpush.bf16.msra.mxu0 %v3866
    %4720 = vmatpush.bf16.msra.mxu0 %v3862
    %4721 = vmatpush.bf16.msra.mxu0 %v3858
    %4722 = vmatmul.bf16.gmra.mxu0 %v816
    %v4723 = vpop.f32.mrf.mxu0
    %v4724 = vadd.f32 %v4711, %v4723
    %v4725 = vpop.f32.mrf.mxu0
    %4726 = vdwg.mxu0
    %v4727 = vld [vmem:[%s10] sm:$0xf]
    %v4729 = vperm.slane %v4727, 0
    %v4730 = vperm.slane %v4727, 1
    %v4731 = vperm.slane %v4727, 2
    %v4732 = vperm.slane %v4727, 3
    %v4737 = vadd.f32 %v4334, %v4729
    %v4738 = vadd.f32 %v4464, %v4730
    %v4739 = vadd.f32 %v4594, %v4731
    %v4740 = vadd.f32 %v4724, %v4732
    %v4741 = vmin.f32 %v4737, 20.0
    %v4742 = vmin.f32 %v4738, 20.0
    %v4743 = vmin.f32 %v4739, 20.0
    %v4744 = vmin.f32 %v4740, 20.0
    %v4745 = vmul.f32 %v4741, 1.442695
    %v4746 = vpow.pop %v4745
    %v4747 = vmul.f32 %v4742, 1.442695
    %v4748 = vpow.pop %v4747
    %v4749 = vmul.f32 %v4743, 1.442695
    %v4750 = vpow.pop %v4749
    %v4751 = vmul.f32 %v4744, 1.442695
    %v4752 = vpow.pop %v4751
    %v4753 = vadd.f32 %v4746, 2.0
    %v4754 = vadd.f32 %v4748, 2.0
    %v4755 = vadd.f32 %v4750, 2.0
    %v4756 = vadd.f32 %v4752, 2.0
    %v4757 = vmul.f32 %v4746, %v4753
    %v4758 = vmul.f32 %v4748, %v4754
    %v4759 = vmul.f32 %v4750, %v4755
    %v4760 = vmul.f32 %v4752, %v4756
    %vm4761 = vcmp.gt.f32.partialorder %v4737, 20.0
    %vm4762 = vcmp.gt.f32.partialorder %v4738, 20.0
    %vm4763 = vcmp.gt.f32.partialorder %v4739, 20.0
    %vm4764 = vcmp.gt.f32.partialorder %v4740, 20.0
    %v4765 = vadd.f32 %v4757, 2.0
    %v4766 = vadd.f32 %v4758, 2.0
    %v4767 = vadd.f32 %v4759, 2.0
    %v4768 = vadd.f32 %v4760, 2.0
    %v4769 = vrcp.pop %v4765
    %v4770 = vrcp.pop %v4766
    %v4771 = vrcp.pop %v4767
    %v4772 = vrcp.pop %v4768
    %v4773 = vmul.f32 %v4757, %v4769
    %v4774 = vmul.f32 %v4758, %v4770
    %v4775 = vmul.f32 %v4759, %v4771
    %v4776 = vmul.f32 %v4760, %v4772
    %v4777 = vsel %vm4761, 1.0, %v4773
    %v4778 = vsel %vm4762, 1.0, %v4774
    %v4779 = vsel %vm4763, 1.0, %v4775
    %v4780 = vsel %vm4764, 1.0, %v4776
    %v4781 = vmul.f32 %v4737, %v4777
    %v4782 = vmul.f32 %v4738, %v4778
    %v4783 = vmul.f32 %v4739, %v4779
    %v4784 = vmul.f32 %v4740, %v4780
    %v4785 = vpack.c.bf16 %v4781, %v4781
    %v4786 = vpack.c.bf16 %v4782, %v4782
    %v4787 = vpack.c.bf16 %v4783, %v4783
    %v4788 = vpack.c.bf16 %v4784, %v4784
    %v4789 = vld [vmem:[%s11] sm:$0xf]
    %v4790 = vld [vmem:[%s11 + $0x4] sm:$0xf]
    %v4791 = vld [vmem:[%s11 + $0x8] sm:$0xf]
    %v4792 = vld [vmem:[%s11 + $0xc] sm:$0xf]
    %v4793 = vld [vmem:[%s11 + $0x10] sm:$0xf]
    %v4794 = vld [vmem:[%s11 + $0x14] sm:$0xf]
    %v4795 = vld [vmem:[%s11 + $0x18] sm:$0xf]
    %v4796 = vld [vmem:[%s11 + $0x1c] sm:$0xf]
    %v4797 = vld [vmem:[%s11 + $0x20] sm:$0xf]
    %v4798 = vld [vmem:[%s11 + $0x24] sm:$0xf]
    %v4799 = vld [vmem:[%s11 + $0x28] sm:$0xf]
    %v4800 = vld [vmem:[%s11 + $0x2c] sm:$0xf]
    %v4801 = vld [vmem:[%s11 + $0x30] sm:$0xf]
    %v4802 = vld [vmem:[%s11 + $0x34] sm:$0xf]
    %v4803 = vld [vmem:[%s11 + $0x38] sm:$0xf]
    %v4804 = vld [vmem:[%s11 + $0x3c] sm:$0xf]
    %v4805 = vld [vmem:[%s11 + $0x40] sm:$0xf]
    %v4806 = vld [vmem:[%s11 + $0x44] sm:$0xf]
    %v4807 = vld [vmem:[%s11 + $0x48] sm:$0xf]
    %v4808 = vld [vmem:[%s11 + $0x4c] sm:$0xf]
    %v4809 = vld [vmem:[%s11 + $0x50] sm:$0xf]
    %v4810 = vld [vmem:[%s11 + $0x54] sm:$0xf]
    %v4811 = vld [vmem:[%s11 + $0x58] sm:$0xf]
    %v4812 = vld [vmem:[%s11 + $0x5c] sm:$0xf]
    %v4813 = vld [vmem:[%s11 + $0x60] sm:$0xf]
    %v4814 = vld [vmem:[%s11 + $0x64] sm:$0xf]
    %v4815 = vld [vmem:[%s11 + $0x68] sm:$0xf]
    %v4816 = vld [vmem:[%s11 + $0x6c] sm:$0xf]
    %v4817 = vld [vmem:[%s11 + $0x70] sm:$0xf]
    %v4818 = vld [vmem:[%s11 + $0x74] sm:$0xf]
    %v4819 = vld [vmem:[%s11 + $0x78] sm:$0xf]
    %v4820 = vld [vmem:[%s11 + $0x7c] sm:$0xf]
    %v4821 = vld [vmem:[%s11 + $0x80] sm:$0xf]
    %v4822 = vld [vmem:[%s11 + $0x84] sm:$0xf]
    %v4823 = vld [vmem:[%s11 + $0x88] sm:$0xf]
    %v4824 = vld [vmem:[%s11 + $0x8c] sm:$0xf]
    %v4825 = vld [vmem:[%s11 + $0x90] sm:$0xf]
    %v4826 = vld [vmem:[%s11 + $0x94] sm:$0xf]
    %v4827 = vld [vmem:[%s11 + $0x98] sm:$0xf]
    %v4828 = vld [vmem:[%s11 + $0x9c] sm:$0xf]
    %v4829 = vld [vmem:[%s11 + $0xa0] sm:$0xf]
    %v4830 = vld [vmem:[%s11 + $0xa4] sm:$0xf]
    %v4831 = vld [vmem:[%s11 + $0xa8] sm:$0xf]
    %v4832 = vld [vmem:[%s11 + $0xac] sm:$0xf]
    %v4833 = vld [vmem:[%s11 + $0xb0] sm:$0xf]
    %v4834 = vld [vmem:[%s11 + $0xb4] sm:$0xf]
    %v4835 = vld [vmem:[%s11 + $0xb8] sm:$0xf]
    %v4836 = vld [vmem:[%s11 + $0xbc] sm:$0xf]
    %v4837 = vld [vmem:[%s11 + $0xc0] sm:$0xf]
    %v4838 = vld [vmem:[%s11 + $0xc4] sm:$0xf]
    %v4839 = vld [vmem:[%s11 + $0xc8] sm:$0xf]
    %v4840 = vld [vmem:[%s11 + $0xcc] sm:$0xf]
    %v4841 = vld [vmem:[%s11 + $0xd0] sm:$0xf]
    %v4842 = vld [vmem:[%s11 + $0xd4] sm:$0xf]
    %v4843 = vld [vmem:[%s11 + $0xd8] sm:$0xf]
    %v4844 = vld [vmem:[%s11 + $0xdc] sm:$0xf]
    %v4845 = vld [vmem:[%s11 + $0xe0] sm:$0xf]
    %v4846 = vld [vmem:[%s11 + $0xe4] sm:$0xf]
    %v4847 = vld [vmem:[%s11 + $0xe8] sm:$0xf]
    %v4848 = vld [vmem:[%s11 + $0xec] sm:$0xf]
    %v4849 = vld [vmem:[%s11 + $0xf0] sm:$0xf]
    %v4850 = vld [vmem:[%s11 + $0xf4] sm:$0xf]
    %v4851 = vld [vmem:[%s11 + $0xf8] sm:$0xf]
    %v4852 = vld [vmem:[%s11 + $0xfc] sm:$0xf]
    %v4853 = vld [vmem:[%s12] sm:$0x1]
    %v4855 = vperm.slane %v4853, 0
    %v4921 = vunpack.c.l.b16 %v4789
    %v4922 = vunpack.c.l.b16 %v4790
    %v4923 = vunpack.c.l.b16 %v4791
    %v4924 = vunpack.c.l.b16 %v4792
    %v4925 = vunpack.c.l.b16 %v4793
    %v4926 = vunpack.c.l.b16 %v4794
    %v4927 = vunpack.c.l.b16 %v4795
    %v4928 = vunpack.c.l.b16 %v4796
    %v4929 = vunpack.c.l.b16 %v4797
    %v4930 = vunpack.c.l.b16 %v4798
    %v4931 = vunpack.c.l.b16 %v4799
    %v4932 = vunpack.c.l.b16 %v4800
    %v4933 = vunpack.c.l.b16 %v4801
    %v4934 = vunpack.c.l.b16 %v4802
    %v4935 = vunpack.c.l.b16 %v4803
    %v4936 = vunpack.c.l.b16 %v4804
    %v4937 = vunpack.c.l.b16 %v4805
    %v4938 = vunpack.c.l.b16 %v4806
    %v4939 = vunpack.c.l.b16 %v4807
    %v4940 = vunpack.c.l.b16 %v4808
    %v4941 = vunpack.c.l.b16 %v4809
    %v4942 = vunpack.c.l.b16 %v4810
    %v4943 = vunpack.c.l.b16 %v4811
    %v4944 = vunpack.c.l.b16 %v4812
    %v4945 = vunpack.c.l.b16 %v4813
    %v4946 = vunpack.c.l.b16 %v4814
    %v4947 = vunpack.c.l.b16 %v4815
    %v4948 = vunpack.c.l.b16 %v4816
    %v4949 = vunpack.c.l.b16 %v4817
    %v4950 = vunpack.c.l.b16 %v4818
    %v4951 = vunpack.c.l.b16 %v4819
    %v4952 = vunpack.c.l.b16 %v4820
    %v4953 = vunpack.c.l.b16 %v4821
    %v4954 = vunpack.c.l.b16 %v4822
    %v4955 = vunpack.c.l.b16 %v4823
    %v4956 = vunpack.c.l.b16 %v4824
    %v4957 = vunpack.c.l.b16 %v4825
    %v4958 = vunpack.c.l.b16 %v4826
    %v4959 = vunpack.c.l.b16 %v4827
    %v4960 = vunpack.c.l.b16 %v4828
    %v4961 = vunpack.c.l.b16 %v4829
    %v4962 = vunpack.c.l.b16 %v4830
    %v4963 = vunpack.c.l.b16 %v4831
    %v4964 = vunpack.c.l.b16 %v4832
    %v4965 = vunpack.c.l.b16 %v4833
    %v4966 = vunpack.c.l.b16 %v4834
    %v4967 = vunpack.c.l.b16 %v4835
    %v4968 = vunpack.c.l.b16 %v4836
    %v4969 = vunpack.c.l.b16 %v4837
    %v4970 = vunpack.c.l.b16 %v4838
    %v4971 = vunpack.c.l.b16 %v4839
    %v4972 = vunpack.c.l.b16 %v4840
    %v4973 = vunpack.c.l.b16 %v4841
    %v4974 = vunpack.c.l.b16 %v4842
    %v4975 = vunpack.c.l.b16 %v4843
    %v4976 = vunpack.c.l.b16 %v4844
    %v4977 = vunpack.c.l.b16 %v4845
    %v4978 = vunpack.c.l.b16 %v4846
    %v4979 = vunpack.c.l.b16 %v4847
    %v4980 = vunpack.c.l.b16 %v4848
    %v4981 = vunpack.c.l.b16 %v4849
    %v4982 = vunpack.c.l.b16 %v4850
    %v4983 = vunpack.c.l.b16 %v4851
    %v4984 = vunpack.c.l.b16 %v4852
    %v4985 = vpack.c.b16 %v4922, %v4921
    %v4986 = vpack.c.b16 %v4924, %v4923
    %v4987 = vpack.c.b16 %v4926, %v4925
    %v4988 = vpack.c.b16 %v4928, %v4927
    %v4989 = vpack.c.b16 %v4930, %v4929
    %v4990 = vpack.c.b16 %v4932, %v4931
    %v4991 = vpack.c.b16 %v4934, %v4933
    %v4992 = vpack.c.b16 %v4936, %v4935
    %v4993 = vpack.c.b16 %v4938, %v4937
    %v4994 = vpack.c.b16 %v4940, %v4939
    %v4995 = vpack.c.b16 %v4942, %v4941
    %v4996 = vpack.c.b16 %v4944, %v4943
    %v4997 = vpack.c.b16 %v4946, %v4945
    %v4998 = vpack.c.b16 %v4948, %v4947
    %v4999 = vpack.c.b16 %v4950, %v4949
    %v5000 = vpack.c.b16 %v4952, %v4951
    %v5001 = vpack.c.b16 %v4954, %v4953
    %v5002 = vpack.c.b16 %v4956, %v4955
    %v5003 = vpack.c.b16 %v4958, %v4957
    %v5004 = vpack.c.b16 %v4960, %v4959
    %v5005 = vpack.c.b16 %v4962, %v4961
    %v5006 = vpack.c.b16 %v4964, %v4963
    %v5007 = vpack.c.b16 %v4966, %v4965
    %v5008 = vpack.c.b16 %v4968, %v4967
    %v5009 = vpack.c.b16 %v4970, %v4969
    %v5010 = vpack.c.b16 %v4972, %v4971
    %v5011 = vpack.c.b16 %v4974, %v4973
    %v5012 = vpack.c.b16 %v4976, %v4975
    %v5013 = vpack.c.b16 %v4978, %v4977
    %v5014 = vpack.c.b16 %v4980, %v4979
    %v5015 = vpack.c.b16 %v4982, %v4981
    %v5016 = vpack.c.b16 %v4984, %v4983
    %5049 = vmatpush.bf16.msra.mxu0 %v4992
    %5050 = vmatpush.bf16.msra.mxu0 %v4991
    %5051 = vmatpush.bf16.msra.mxu0 %v4990
    %5052 = vmatpush.bf16.msra.mxu0 %v4989
    %5053 = vmatpush.bf16.msra.mxu0 %v4988
    %5054 = vmatpush.bf16.msra.mxu0 %v4987
    %5055 = vmatpush.bf16.msra.mxu0 %v4986
    %5056 = vmatpush.bf16.msra.mxu0 %v4985
    %5057 = vmatmul.bf16.gmra.mxu0 %v4785
    %v5058 = vpop.f32.mrf.mxu0
    %v5059 = vadd.f32 %v4855, %v5058
    %v5060 = vpop.f32.mrf.mxu0
    %5061 = vdwg.mxu0
    %5062 = vmatpush.bf16.msra.mxu0 %v5000
    %5063 = vmatpush.bf16.msra.mxu0 %v4999
    %5064 = vmatpush.bf16.msra.mxu0 %v4998
    %5065 = vmatpush.bf16.msra.mxu0 %v4997
    %5066 = vmatpush.bf16.msra.mxu0 %v4996
    %5067 = vmatpush.bf16.msra.mxu0 %v4995
    %5068 = vmatpush.bf16.msra.mxu0 %v4994
    %5069 = vmatpush.bf16.msra.mxu0 %v4993
    %5070 = vmatmul.bf16.gmra.mxu0 %v4786
    %v5071 = vpop.f32.mrf.mxu0
    %v5072 = vadd.f32 %v5059, %v5071
    %v5073 = vpop.f32.mrf.mxu0
    %5074 = vdwg.mxu0
    %5075 = vmatpush.bf16.msra.mxu0 %v5008
    %5076 = vmatpush.bf16.msra.mxu0 %v5007
    %5077 = vmatpush.bf16.msra.mxu0 %v5006
    %5078 = vmatpush.bf16.msra.mxu0 %v5005
    %5079 = vmatpush.bf16.msra.mxu0 %v5004
    %5080 = vmatpush.bf16.msra.mxu0 %v5003
    %5081 = vmatpush.bf16.msra.mxu0 %v5002
    %5082 = vmatpush.bf16.msra.mxu0 %v5001
    %5083 = vmatmul.bf16.gmra.mxu0 %v4787
    %v5084 = vpop.f32.mrf.mxu0
    %v5085 = vadd.f32 %v5072, %v5084
    %v5086 = vpop.f32.mrf.mxu0
    %5087 = vdwg.mxu0
    %5088 = vmatpush.bf16.msra.mxu0 %v5016
    %5089 = vmatpush.bf16.msra.mxu0 %v5015
    %5090 = vmatpush.bf16.msra.mxu0 %v5014
    %5091 = vmatpush.bf16.msra.mxu0 %v5013
    %5092 = vmatpush.bf16.msra.mxu0 %v5012
    %5093 = vmatpush.bf16.msra.mxu0 %v5011
    %5094 = vmatpush.bf16.msra.mxu0 %v5010
    %5095 = vmatpush.bf16.msra.mxu0 %v5009
    %5096 = vmatmul.bf16.gmra.mxu0 %v4788
    %v5097 = vpop.f32.mrf.mxu0
    %v5098 = vadd.f32 %v5085, %v5097
    %v5099 = vpop.f32.mrf.mxu0
    %5100 = vdwg.mxu0
    %5101 = vst [vmem:[#allocation5] sm:$0x3] %v5098
    // Predicated region
    $region58: #{hybrid_forward.1} parent=1 // pred_check
      _
    $region59: #{hybrid_forward.1} parent=1 // pred_check_branch
      %5103 = sbr.rel (0) target = $region61
    $region60: #{hybrid_forward.1} parent=1 // pred_region
      %5105 = vsyncadd [#allocation4], 0
      %s5107 = sshll.u32 [#allocation5], 4
      %s5108 = int_to_ptr.vmem [resolvable:$true] %s5107
      %s5109 = sshll.u32 %s13, 4
      %s5110 = int_to_ptr.hbm [resolvable:$true] %s5109
      %5112 = dma.vmem_to_hbm [thread:$0]  %s5108, 32, %s5110, [#allocation4]
    $region61: #{hybrid_forward.1} parent=1 // pred_fallthru
      _
    // Predicated region
    $region62: #{hybrid_forward.1} parent=1 // pred_check
      _
    $region63: #{hybrid_forward.1} parent=1 // pred_check_branch
      %5114 = sbr.rel (0) target = $region65
    $region64: #{hybrid_forward.1} parent=1 // pred_region
      %5116 = dma.done [#allocation4], 32
    $region65: #{hybrid_forward.1} parent=1 // pred_fallthru
      _
    %5117 = vsyncpa [#allocation3], 1
    %5118 = vsyncpa [#allocation4], 1

</llo_original>
